<compile_context>
chip_gen: v6e
topology: v6e:2x2x1
jax: 0.10.0
libtpu: 0.0.40
codegen_flags: <defaults>
</compile_context>

<pallas_src>
import numpy as np
import jax
import jax.numpy as jnp
from jax.experimental import pallas as pl
from jax.experimental.pallas import tpu as pltpu

# ----------------------------- model sizes ---------------------------------
V = 64              # char vocab size
E = 16              # char embedding dim
MAX_CHARS = 16      # chars per token
CNN_WIDTHS = (1, 2, 3)
CNN_FILTERS = (8, 8, 16)
CNN_OUT = sum(CNN_FILTERS)        # 32
CNN_COLS = sum((MAX_CHARS - w + 1) * f for w, f in zip(CNN_WIDTHS, CNN_FILTERS))  # 472
D = 32              # final "ELMo" embedding size (stands in for 1024)
H = 16              # LSTM hidden per direction (2*H == D)
G4 = 4 * H          # gate width per direction
G8 = 8 * H          # fused fwd+bwd gate width (= 128 lanes: one vreg row)
DROPOUT_P = 0.5
KEEP_THRESHOLD_U32 = min(int((1.0 - DROPOUT_P) * 4294967296.0), 4294967295)

ROW_TILE = 1024     # row tile for the gridded row-parallel kernels (>=0.5 MiB blocks at scale)
LSTM_B_TILE = 8     # batch tile for the biLSTM grid (raise at production batch sizes)

# bf16 matmul operands pay off at real ELMo sizes on v6e/v7x (keep all
# elementwise / gate math in f32, especially on v5e whose VPU has no bf16).
# At this toy scale we keep f32 so the reference numerics are exact.
MATMUL_DTYPE = jnp.float32        # set to jnp.bfloat16 at production sizes


def _mm(a, b):
    return jnp.dot(a.astype(MATMUL_DTYPE), b.astype(MATMUL_DTYPE),
                   preferred_element_type=jnp.float32)


def _round_up(x, m):
    return (x + m - 1) // m * m


def _row_tile(n):
    return ROW_TILE if n >= ROW_TILE else _round_up(max(n, 1), 8)


# ------------------------- glue: batch_to_ids ------------------------------
def batch_to_ids_simple(batch_tokens, max_chars=MAX_CHARS):
    """Deterministic stand-in for allennlp batch_to_ids (host-side python glue)."""
    # TODO(synk): real batch_to_ids uses ELMo's 262-symbol char vocab with
    # BOW/EOW markers; string tokenization has no Pallas equivalent.
    max_len = max(len(s) for s in batch_tokens)
    ids = []
    for sent in batch_tokens:
        rows = []
        for tok in sent:
            chars = [(ord(c) % (V - 1)) + 1 for c in tok[:max_chars]]
            chars += [0] * (max_chars - len(chars))
            rows.append(chars)
        for _ in range(max_len - len(sent)):
            rows.append([0] * max_chars)
        ids.append(rows)
    return jnp.array(ids, dtype=jnp.int32)   # (B, max_len, max_chars)


# ----------------------------- kernels --------------------------------------
def token_encoder_kernel(ids_ref, bigw_ref, b1, b2, b3,
                         hw1_w, hw1_b, hw2_w, hw2_b, wp, bp, o_ref):
    """Fused (char-embed ∘ char-CNN) -> max-over-time + ReLU -> 2 highway -> proj.

    ids_ref : (TN, MAX_CHARS) int32 char ids for TN tokens (no float char
              embeddings ever touch HBM: the embedding is folded into bigw).
    bigw_ref: (MAX_CHARS, V, COLS_PAD) banded weight, bigw[c, v, col(p,f)] =
              (emb[v] @ conv_w[dc]) with dc = c - p; columns grouped
              position-major per conv width.
    o_ref   : (TN, D).  All intermediates stay in VMEM.
    """
    tn = ids_ref.shape[0]
    cols = bigw_ref.shape[2]
    ids = ids_ref[...]
    v_iota = jax.lax.broadcasted_iota(jnp.int32, (tn, V), 1)

    # One wide MXU accumulation per char position: (TN,V) @ (V,COLS) with
    # 472+ output lanes, vs. the old 45 lane-starved (8/16-lane) matmuls.
    y = jnp.zeros((tn, cols), jnp.float32)
    for c in range(MAX_CHARS):                               # static unroll
        onehot = (ids[:, c:c + 1] == v_iota).astype(jnp.float32)   # (TN, V)
        y = y + _mm(onehot, bigw_ref[c])

    # max-over-time pooling per (width, position) group -> VPU maxes only.
    feats = []
    off = 0
    for (width, nf, b_ref) in zip(CNN_WIDTHS, CNN_FILTERS, (b1, b2, b3)):
        npos = MAX_CHARS - width + 1
        m = y[:, off:off + nf]
        for p in range(1, npos):
            m = jnp.maximum(m, y[:, off + p * nf:off + (p + 1) * nf])
        feats.append(jnp.maximum(m + b_ref[...], 0.0))       # bias hoisted; ReLU
        off += npos * nf
    h = jnp.concatenate(feats, axis=-1)                      # (TN, CNN_OUT)

    for hw_w, hw_b in ((hw1_w, hw1_b), (hw2_w, hw2_b)):
        tg = _mm(h, hw_w[...]) + hw_b[...]                   # fused [transform | gate]
        t_part = jnp.maximum(tg[:, :CNN_OUT], 0.0)
        g_part = jax.nn.sigmoid(tg[:, CNN_OUT:])
        h = g_part * h + (1.0 - g_part) * t_part             # highway skip

    o_ref[...] = _mm(h, wp[...]) + bp[...]                   # projection to D


def bilstm_kernel(x_ref, wi_ref, bi_ref, wh_ref, o_ref, xproj, hcat, cf, cb):
    """One biLSTM layer for one batch tile, time-major.

    x_ref : (L, BT, Din) time-major inputs for BT batch rows.
    wi_ref: (Din, 8H) = [W_x^fwd | W_x^bwd],  bi_ref: (1, 8H).
    wh_ref: (2H, 8H) block-diagonal [[W_h^fwd, 0], [0, W_h^bwd]] so both
            directions' recurrent matmuls fuse into ONE 128-lane dot/step.
            TODO(synk): at production H drop this (half-zero weight = 2x MXU
            work / VMEM); use two (BT,H)@(H,4H) dots instead.
    o_ref : (L, BT, 2H) with [:, :, :H] = fwd, [:, :, H:] = bwd.
    """
    L, BT, Din = x_ref.shape
    wh = wh_ref[...]

    # ONE GEMM for every timestep and both directions (hoisted out of the
    # serial recurrence); bias broadcast exactly once.
    x2 = x_ref[...].reshape(L * BT, Din)
    xproj[...] = _mm(x2, wi_ref[...]) + bi_ref[...]          # (L*BT, 8H)

    hcat[...] = jnp.zeros(hcat.shape, hcat.dtype)            # [h_fwd | h_bwd]
    cf[...] = jnp.zeros(cf.shape, cf.dtype)
    cb[...] = jnp.zeros(cb.shape, cb.dtype)

    def gates_to_hc(gates, c):                               # gates: (BT, 4H) = [i|f|g|o]
        i = jax.nn.sigmoid(gates[:, 0:H])
        f = jax.nn.sigmoid(gates[:, H:2 * H])
        g = jnp.tanh(gates[:, 2 * H:3 * H])
        o = jax.nn.sigmoid(gates[:, 3 * H:4 * H])
        c_new = f * c + i * g
        return o * jnp.tanh(c_new), c_new

    @pl.loop(0, L)
    def _(t):
        tb = L - 1 - t
        # single fused recurrent matmul for both directions: (BT,2H) @ (2H,128)
        hh = _mm(hcat[...], wh)
        xp_f = xproj[pl.ds(pl.multiple_of(t * BT, BT), BT), :]
        xp_b = xproj[pl.ds(pl.multiple_of(tb * BT, BT), BT), :]
        gates_f = hh[:, :G4] + xp_f[:, :G4]                  # fwd consumes position t
        gates_b = hh[:, G4:] + xp_b[:, G4:]                  # bwd consumes position L-1-t
        h_f, c_f = gates_to_hc(gates_f, cf[...])
        h_b, c_b = gates_to_hc(gates_b, cb[...])
        cf[...] = c_f
        cb[...] = c_b
        hcat[...] = jnp.concatenate([h_f, h_b], axis=-1)     # single full-lane store
        # write each direction straight into the output: no per-direction
        # scratch buffers and no trailing concat copy.
        o_ref[t, :, 0:H] = h_f
        o_ref[tb, :, H:2 * H] = h_b


def mix_dropout_kernel(coef_ref, seed_ref, l0_ref, l1_ref, l2_ref, o_ref):
    """Scalar mix of layers (coefs already softmax*gamma) + inverted dropout.

    Inputs/outputs are lane-dense (rows, 128) views of the flattened (N, D)
    activations, so every store is a full-lane vst.
    """
    mix = (coef_ref[0] * l0_ref[...]
           + coef_ref[1] * l1_ref[...]
           + coef_ref[2] * l2_ref[...])
    n, d = mix.shape
    # Counter-based hash RNG (murmur3-style finalizer) instead of pltpu.prng_*:
    # lowers on both the TPU and CPU/interpret backends; the program_id offset
    # gives every grid block its own stream (masks stay i.i.d. under tiling).
    base = (pl.program_id(0) * (n * d)).astype(jnp.uint32)
    row = jax.lax.broadcasted_iota(jnp.int32, (n, d), 0).astype(jnp.uint32)
    col = jax.lax.broadcasted_iota(jnp.int32, (n, d), 1).astype(jnp.uint32)
    bits = base + row * jnp.uint32(d) + col
    bits = bits + seed_ref[0].astype(jnp.uint32) * jnp.uint32(0x9E3779B9)
    bits = (bits ^ (bits >> 16)) * jnp.uint32(0x85EBCA6B)
    bits = (bits ^ (bits >> 13)) * jnp.uint32(0xC2B2AE35)
    bits = bits ^ (bits >> 16)
    keep = bits < jnp.uint32(KEEP_THRESHOLD_U32)             # keep prob = 1 - DROPOUT_P
    scale = jnp.float32(1.0 / (1.0 - DROPOUT_P))
    # TODO(synk): no train/eval switch -- mirrors the reference forward(), which
    # applies nn.Dropout unconditionally.
    o_ref[...] = jnp.where(keep, mix * scale, jnp.zeros_like(mix))


# ----------------------------- wrappers --------------------------------------
def _full_spec(a):
    nd = a.ndim
    return pl.BlockSpec(a.shape, lambda i: (0,) * nd)


def token_encoder(ids, p):
    """ids: (N, MAX_CHARS) int32 char ids -> (N, D) token encodings."""
    n = ids.shape[0]
    tn = _row_tile(n)
    n_pad = _round_up(n, tn)
    if n_pad != n:
        ids = jnp.pad(ids, ((0, n_pad - n), (0, 0)))
    weights = (p["cnn_bigw"], p["cnn_b1"], p["cnn_b2"], p["cnn_b3"],
               p["hw_w1"], p["hw_b1"], p["hw_w2"], p["hw_b2"],
               p["proj_w"], p["proj_b"])

    out = pl.pallas_call(
        token_encoder_kernel,
        out_shape=jax.ShapeDtypeStruct((n_pad, D), jnp.float32),
        grid=(n_pad // tn,),
        in_specs=[pl.BlockSpec((tn, MAX_CHARS), lambda i: (i, 0))]
                 + [_full_spec(w) for w in weights],
        out_specs=pl.BlockSpec((tn, D), lambda i: (i, 0)),
        compiler_params=pltpu.CompilerParams(
            dimension_semantics=("parallel",)),          # pipelined + megacore-shardable
    )(ids, *weights)
    return out[:n]


def bilstm_layer(x_lbd, lp):
    """x_lbd: (L, B, Din) time-major -> (L, B, 2H) time-major (no transposes).

    Gridded over independent batch tiles: HBM<->VMEM pipelining of x/o and
    (on v7x) sharding of the serial recurrence across both TensorCores.
    """
    L, B, Din = x_lbd.shape
    b_pad = _round_up(B, LSTM_B_TILE)
    if b_pad != B:
        x_lbd = jnp.pad(x_lbd, ((0, 0), (0, b_pad - B), (0, 0)))
    bt = LSTM_B_TILE
    out = pl.pallas_call(
        bilstm_kernel,
        out_shape=jax.ShapeDtypeStruct((L, b_pad, 2 * H), jnp.float32),
        grid=(b_pad // bt,),
        in_specs=[
            pl.BlockSpec((L, bt, Din), lambda b: (0, b, 0)),
            pl.BlockSpec(lp["wi"].shape, lambda b: (0, 0)),
            pl.BlockSpec(lp["bi"].shape, lambda b: (0, 0)),
            pl.BlockSpec(lp["wh"].shape, lambda b: (0, 0)),
        ],
        out_specs=pl.BlockSpec((L, bt, 2 * H), lambda b: (0, b, 0)),
        scratch_shapes=[
            pltpu.VMEM((L * bt, G8), jnp.float32),   # hoisted x-projections, both dirs
            pltpu.VMEM((bt, 2 * H), jnp.float32),    # [h_fwd | h_bwd]
            pltpu.VMEM((bt, H), jnp.float32),        # c fwd
            pltpu.VMEM((bt, H), jnp.float32),        # c bwd
        ],
        compiler_params=pltpu.CompilerParams(
            dimension_semantics=("parallel",)),
    )(x_lbd, lp["wi"], lp["bi"], lp["wh"])
    # TODO(synk): at production sizes (H=512) stream xproj in time chunks via
    # double-buffered DMA to fit v7x's 64 MiB VMEM instead of one scratch.
    return out[:, :B, :]


def scalar_mix_dropout(l0, l1, l2, coefs, seed):
    """l*: (N, D) layer activations -> (N, D) mixed + dropped-out embeddings."""
    n, d = l0.shape
    flat = n * d
    lanes = 128
    rows = pl.cdiv(flat, lanes)
    tile = _row_tile(rows)
    rows_pad = _round_up(rows, tile)
    flat_pad = rows_pad * lanes

    def lane_dense(a):          # (N, D) -> (rows_pad, 128): full-lane stores
        a = a.reshape(-1)
        if flat_pad != flat:
            a = jnp.pad(a, (0, flat_pad - flat))
        return a.reshape(rows_pad, lanes)

    smem = pl.BlockSpec(memory_space=pltpu.MemorySpace.SMEM)
    row = pl.BlockSpec((tile, lanes), lambda i: (i, 0))
    out = pl.pallas_call(
        mix_dropout_kernel,
        out_shape=jax.ShapeDtypeStruct((rows_pad, lanes), jnp.float32),
        grid=(rows_pad // tile,),
        in_specs=[smem, smem, row, row, row],
        out_specs=row,
        compiler_params=pltpu.CompilerParams(
            dimension_semantics=("parallel",)),
    )(coefs, seed, lane_dense(l0), lane_dense(l1), lane_dense(l2))
    return out.reshape(-1)[:flat].reshape(n, d)


def elmo_embedding_forward(char_ids, params, seed):
    """char_ids: (B, max_len, max_chars) int32 -> (B, max_len, D) float32."""
    B, L, C = char_ids.shape
    # Pad batch once to the LSTM batch tile; slice back at the very end.
    b_pad = _round_up(B, LSTM_B_TILE)
    if b_pad != B:
        char_ids = jnp.pad(char_ids, ((0, b_pad - B), (0, 0), (0, 0)))
    # Time-major end-to-end: one tiny int32 transpose up front instead of
    # transposing float activations around every biLSTM layer.
    ids_t = jnp.transpose(char_ids, (1, 0, 2))                  # (L, B_pad, C)
    ids_flat = ids_t.reshape(L * b_pad, C)                      # int32 only -> kernel
    # TODO(synk): padded tokens (all-zero char ids) are not masked out of the
    # convs/LSTM the way AllenNLP's Elmo masks padded timesteps.
    tok = token_encoder(ids_flat, params)                       # (L*B_pad, D) [Pallas]
    tok_lbd = tok.reshape(L, b_pad, D)
    l1 = bilstm_layer(tok_lbd, params["lstm1"])                 # (L, B_pad, 2H) [Pallas]
    l2 = bilstm_layer(l1, params["lstm2"])                      # (L, B_pad, 2H) [Pallas]
    # softmax of the 3 scalar-mix weights * gamma is tiny glue
    coefs = (jax.nn.softmax(params["mix_w"]) * params["mix_gamma"]).astype(jnp.float32)
    out = scalar_mix_dropout(tok, l1.reshape(L * b_pad, D), l2.reshape(L * b_pad, D),
                             coefs, seed)                       # (L*B_pad, D) [Pallas]
    out = jnp.transpose(out.reshape(L, b_pad, D), (1, 0, 2))    # (B_pad, max_len, D)
    return out[:B]


# --------------------------- parameter init ----------------------------------
def _build_bigw(emb, conv_ws):
    """Fold char embedding into a banded per-char-position conv weight.

    bigw[c, v, col(width, p, f)] = (emb[v] @ conv_w[width][(c-p) block])[f]
    for every conv window position p that covers char position c.
    Columns are position-major within each width; padded to a multiple of 128.
    """
    emb = np.asarray(emb, np.float32)
    cols_pad = _round_up(CNN_COLS, 128)
    bigw = np.zeros((MAX_CHARS, V, cols_pad), np.float32)
    off = 0
    for width, f, w_conv in zip(CNN_WIDTHS, CNN_FILTERS, conv_ws):
        w_conv = np.asarray(w_conv, np.float32)                 # (width*E, F)
        npos = MAX_CHARS - width + 1
        for p in range(npos):
            for dc in range(width):
                c = p + dc
                bigw[c, :, off + p * f: off + (p + 1) * f] += emb @ w_conv[dc * E:(dc + 1) * E, :]
        off += npos * f
    return jnp.asarray(bigw)


def init_params(key):
    ks = iter(jax.random.split(key, 40))
    n = lambda shape, s=0.1: (s * jax.random.normal(next(ks), shape)).astype(jnp.float32)
    params = {}
    emb = n((V, E))
    params["char_emb"] = emb.at[0].set(0.0)            # padding char -> zeros
    for width, f, i in zip(CNN_WIDTHS, CNN_FILTERS, (1, 2, 3)):
        params[f"cnn_w{i}"] = n((width * E, f))        # conv kernel flattened (width*E, F)
        params[f"cnn_b{i}"] = n((1, f))
    # embedding-folded banded conv weight consumed by the token-encoder kernel
    params["cnn_bigw"] = _build_bigw(params["char_emb"],
                                     [params["cnn_w1"], params["cnn_w2"], params["cnn_w3"]])
    for i in (1, 2):
        # highway transform / gate weights fused column-wise: [W_t | W_g]
        params[f"hw_w{i}"] = n((CNN_OUT, 2 * CNN_OUT))
        params[f"hw_b{i}"] = n((1, 2 * CNN_OUT))
    params["proj_w"] = n((CNN_OUT, D))
    params["proj_b"] = n((1, D))
    for name, din in (("lstm1", D), ("lstm2", 2 * H)):
        wif, wib = n((din, G4)), n((din, G4))
        whf, whb = n((H, G4)), n((H, G4))
        bf, bb = n((1, G4)), n((1, G4))
        wh = jnp.zeros((2 * H, G8), jnp.float32)
        wh = wh.at[:H, :G4].set(whf).at[H:, G4:].set(whb)   # block-diag fwd/bwd
        params[name] = {
            "wi": jnp.concatenate([wif, wib], axis=1),      # (din, 8H)
            "bi": jnp.concatenate([bf, bb], axis=1),        # (1, 8H)
            "wh": wh,                                       # (2H, 8H)
        }
    params["mix_w"] = n((3,), 1.0)
    params["mix_gamma"] = jnp.float32(1.0)
    return params


# --------------------------------- main ---------------------------------------
if __name__ == "__main__":
    inputs = [["hello", "world"], ["i", "love", "nlp", "."]]
    char_ids = batch_to_ids_simple(inputs)             # (2, 4, 16) int32
    params = init_params(jax.random.PRNGKey(0))
    seed = jnp.array([1234], dtype=jnp.int32)

    out = elmo_embedding_forward(char_ids, params, seed)
    out = jax.block_until_ready(out)

    B, L = char_ids.shape[:2]
    assert out.shape == (B, L, D), out.shape
    assert out.dtype == jnp.float32
    assert bool(jnp.all(jnp.isfinite(out)))
    print("KERNEL_OK")
</pallas_src>

<mosaic_0001>
module attributes {stable_mosaic.version = 11 : i64} {
  func.func @token_encoder_kernel(%arg0: i32, %arg1: memref<32x16xi32, #tpu.memory_space<vmem>>, %arg2: memref<16x64x512xf32, #tpu.memory_space<vmem>>, %arg3: memref<1x8xf32, #tpu.memory_space<vmem>>, %arg4: memref<1x8xf32, #tpu.memory_space<vmem>>, %arg5: memref<1x16xf32, #tpu.memory_space<vmem>>, %arg6: memref<32x64xf32, #tpu.memory_space<vmem>>, %arg7: memref<1x64xf32, #tpu.memory_space<vmem>>, %arg8: memref<32x64xf32, #tpu.memory_space<vmem>>, %arg9: memref<1x64xf32, #tpu.memory_space<vmem>>, %arg10: memref<32x32xf32, #tpu.memory_space<vmem>>, %arg11: memref<1x32xf32, #tpu.memory_space<vmem>>, %arg12: memref<32x32xf32, #tpu.memory_space<vmem>>) attributes {dimension_semantics = [#tpu.dimension_semantics<parallel>], iteration_bounds = array<i64: 1>, scalar_prefetch = 0 : i64, scratch_operands = 0 : i64, tpu.core_type = #tpu.core_type<tc>, window_params = [{transform_indices = @transform_0, window_bounds = array<i64: 32, 16>}, {pipeline_mode = #tpu.pipeline_mode<synchronous>, transform_indices = @transform_1, window_bounds = array<i64: 16, 64, 512>}, {pipeline_mode = #tpu.pipeline_mode<synchronous>, transform_indices = @transform_2, window_bounds = array<i64: 1, 8>}, {pipeline_mode = #tpu.pipeline_mode<synchronous>, transform_indices = @transform_3, window_bounds = array<i64: 1, 8>}, {pipeline_mode = #tpu.pipeline_mode<synchronous>, transform_indices = @transform_4, window_bounds = array<i64: 1, 16>}, {pipeline_mode = #tpu.pipeline_mode<synchronous>, transform_indices = @transform_5, window_bounds = array<i64: 32, 64>}, {pipeline_mode = #tpu.pipeline_mode<synchronous>, transform_indices = @transform_6, window_bounds = array<i64: 1, 64>}, {pipeline_mode = #tpu.pipeline_mode<synchronous>, transform_indices = @transform_7, window_bounds = array<i64: 32, 64>}, {pipeline_mode = #tpu.pipeline_mode<synchronous>, transform_indices = @transform_8, window_bounds = array<i64: 1, 64>}, {pipeline_mode = #tpu.pipeline_mode<synchronous>, transform_indices = @transform_9, window_bounds = array<i64: 32, 32>}, {pipeline_mode = #tpu.pipeline_mode<synchronous>, transform_indices = @transform_10, window_bounds = array<i64: 1, 32>}, {transform_indices = @transform_11, window_bounds = array<i64: 32, 32>}]} {
    %c0 = arith.constant 0 : index
    %c0_0 = arith.constant 0 : index
    %0 = vector.load %arg1[%c0, %c0_0] : memref<32x16xi32, #tpu.memory_space<vmem>>, vector<32x16xi32>
    %1 = tpu.iota {dimensions = array<i32: 1>} : vector<32x64xi32>
    %cst = arith.constant 0.000000e+00 : f32
    %2 = vector.broadcast %cst : f32 to vector<32x512xf32>
    %3 = vector.extract_strided_slice %0 {offsets = [0, 0], sizes = [32, 1], strides = [1, 1]} : vector<32x16xi32> to vector<32x1xi32>
    %4 = vector.broadcast %3 : vector<32x1xi32> to vector<32x64xi32>
    %5 = arith.cmpi eq, %4, %1 : vector<32x64xi32>
    %6 = arith.extui %5 : vector<32x64xi1> to vector<32x64xi32>
    %7 = arith.sitofp %6 : vector<32x64xi32> to vector<32x64xf32>
    %c0_1 = arith.constant 0 : index
    %c0_2 = arith.constant 0 : index
    %c0_3 = arith.constant 0 : index
    %8 = vector.load %arg2[%c0_1, %c0_2, %c0_3] : memref<16x64x512xf32, #tpu.memory_space<vmem>>, vector<1x64x512xf32>
    %9 = vector.shape_cast %8 : vector<1x64x512xf32> to vector<64x512xf32>
    %cst_4 = arith.constant dense<0.000000e+00> : vector<32x512xf32>
    %10 = tpu.matmul %7, %9, %cst_4 {dimension_numbers = #tpu.dot_dimension_numbers<[1], [0], [0], [1], [0, 0, 1, 1], [], []>} : vector<32x64xf32>, vector<64x512xf32>, vector<32x512xf32> -> vector<32x512xf32>
    %11 = arith.addf %2, %10 : vector<32x512xf32>
    %12 = vector.extract_strided_slice %0 {offsets = [0, 1], sizes = [32, 1], strides = [1, 1]} : vector<32x16xi32> to vector<32x1xi32>
    %13 = vector.broadcast %12 : vector<32x1xi32> to vector<32x64xi32>
    %14 = arith.cmpi eq, %13, %1 : vector<32x64xi32>
    %15 = arith.extui %14 : vector<32x64xi1> to vector<32x64xi32>
    %16 = arith.sitofp %15 : vector<32x64xi32> to vector<32x64xf32>
    %c1 = arith.constant 1 : index
    %c0_5 = arith.constant 0 : index
    %c0_6 = arith.constant 0 : index
    %17 = vector.load %arg2[%c1, %c0_5, %c0_6] : memref<16x64x512xf32, #tpu.memory_space<vmem>>, vector<1x64x512xf32>
    %18 = vector.shape_cast %17 : vector<1x64x512xf32> to vector<64x512xf32>
    %cst_7 = arith.constant dense<0.000000e+00> : vector<32x512xf32>
    %19 = tpu.matmul %16, %18, %cst_7 {dimension_numbers = #tpu.dot_dimension_numbers<[1], [0], [0], [1], [0, 0, 1, 1], [], []>} : vector<32x64xf32>, vector<64x512xf32>, vector<32x512xf32> -> vector<32x512xf32>
    %20 = arith.addf %11, %19 : vector<32x512xf32>
    %21 = vector.extract_strided_slice %0 {offsets = [0, 2], sizes = [32, 1], strides = [1, 1]} : vector<32x16xi32> to vector<32x1xi32>
    %22 = vector.broadcast %21 : vector<32x1xi32> to vector<32x64xi32>
    %23 = arith.cmpi eq, %22, %1 : vector<32x64xi32>
    %24 = arith.extui %23 : vector<32x64xi1> to vector<32x64xi32>
    %25 = arith.sitofp %24 : vector<32x64xi32> to vector<32x64xf32>
    %c2 = arith.constant 2 : index
    %c0_8 = arith.constant 0 : index
    %c0_9 = arith.constant 0 : index
    %26 = vector.load %arg2[%c2, %c0_8, %c0_9] : memref<16x64x512xf32, #tpu.memory_space<vmem>>, vector<1x64x512xf32>
    %27 = vector.shape_cast %26 : vector<1x64x512xf32> to vector<64x512xf32>
    %cst_10 = arith.constant dense<0.000000e+00> : vector<32x512xf32>
    %28 = tpu.matmul %25, %27, %cst_10 {dimension_numbers = #tpu.dot_dimension_numbers<[1], [0], [0], [1], [0, 0, 1, 1], [], []>} : vector<32x64xf32>, vector<64x512xf32>, vector<32x512xf32> -> vector<32x512xf32>
    %29 = arith.addf %20, %28 : vector<32x512xf32>
    %30 = vector.extract_strided_slice %0 {offsets = [0, 3], sizes = [32, 1], strides = [1, 1]} : vector<32x16xi32> to vector<32x1xi32>
    %31 = vector.broadcast %30 : vector<32x1xi32> to vector<32x64xi32>
    %32 = arith.cmpi eq, %31, %1 : vector<32x64xi32>
    %33 = arith.extui %32 : vector<32x64xi1> to vector<32x64xi32>
    %34 = arith.sitofp %33 : vector<32x64xi32> to vector<32x64xf32>
    %c3 = arith.constant 3 : index
    %c0_11 = arith.constant 0 : index
    %c0_12 = arith.constant 0 : index
    %35 = vector.load %arg2[%c3, %c0_11, %c0_12] : memref<16x64x512xf32, #tpu.memory_space<vmem>>, vector<1x64x512xf32>
    %36 = vector.shape_cast %35 : vector<1x64x512xf32> to vector<64x512xf32>
    %cst_13 = arith.constant dense<0.000000e+00> : vector<32x512xf32>
    %37 = tpu.matmul %34, %36, %cst_13 {dimension_numbers = #tpu.dot_dimension_numbers<[1], [0], [0], [1], [0, 0, 1, 1], [], []>} : vector<32x64xf32>, vector<64x512xf32>, vector<32x512xf32> -> vector<32x512xf32>
    %38 = arith.addf %29, %37 : vector<32x512xf32>
    %39 = vector.extract_strided_slice %0 {offsets = [0, 4], sizes = [32, 1], strides = [1, 1]} : vector<32x16xi32> to vector<32x1xi32>
    %40 = vector.broadcast %39 : vector<32x1xi32> to vector<32x64xi32>
    %41 = arith.cmpi eq, %40, %1 : vector<32x64xi32>
    %42 = arith.extui %41 : vector<32x64xi1> to vector<32x64xi32>
    %43 = arith.sitofp %42 : vector<32x64xi32> to vector<32x64xf32>
    %c4 = arith.constant 4 : index
    %c0_14 = arith.constant 0 : index
    %c0_15 = arith.constant 0 : index
    %44 = vector.load %arg2[%c4, %c0_14, %c0_15] : memref<16x64x512xf32, #tpu.memory_space<vmem>>, vector<1x64x512xf32>
    %45 = vector.shape_cast %44 : vector<1x64x512xf32> to vector<64x512xf32>
    %cst_16 = arith.constant dense<0.000000e+00> : vector<32x512xf32>
    %46 = tpu.matmul %43, %45, %cst_16 {dimension_numbers = #tpu.dot_dimension_numbers<[1], [0], [0], [1], [0, 0, 1, 1], [], []>} : vector<32x64xf32>, vector<64x512xf32>, vector<32x512xf32> -> vector<32x512xf32>
    %47 = arith.addf %38, %46 : vector<32x512xf32>
    %48 = vector.extract_strided_slice %0 {offsets = [0, 5], sizes = [32, 1], strides = [1, 1]} : vector<32x16xi32> to vector<32x1xi32>
    %49 = vector.broadcast %48 : vector<32x1xi32> to vector<32x64xi32>
    %50 = arith.cmpi eq, %49, %1 : vector<32x64xi32>
    %51 = arith.extui %50 : vector<32x64xi1> to vector<32x64xi32>
    %52 = arith.sitofp %51 : vector<32x64xi32> to vector<32x64xf32>
    %c5 = arith.constant 5 : index
    %c0_17 = arith.constant 0 : index
    %c0_18 = arith.constant 0 : index
    %53 = vector.load %arg2[%c5, %c0_17, %c0_18] : memref<16x64x512xf32, #tpu.memory_space<vmem>>, vector<1x64x512xf32>
    %54 = vector.shape_cast %53 : vector<1x64x512xf32> to vector<64x512xf32>
    %cst_19 = arith.constant dense<0.000000e+00> : vector<32x512xf32>
    %55 = tpu.matmul %52, %54, %cst_19 {dimension_numbers = #tpu.dot_dimension_numbers<[1], [0], [0], [1], [0, 0, 1, 1], [], []>} : vector<32x64xf32>, vector<64x512xf32>, vector<32x512xf32> -> vector<32x512xf32>
    %56 = arith.addf %47, %55 : vector<32x512xf32>
    %57 = vector.extract_strided_slice %0 {offsets = [0, 6], sizes = [32, 1], strides = [1, 1]} : vector<32x16xi32> to vector<32x1xi32>
    %58 = vector.broadcast %57 : vector<32x1xi32> to vector<32x64xi32>
    %59 = arith.cmpi eq, %58, %1 : vector<32x64xi32>
    %60 = arith.extui %59 : vector<32x64xi1> to vector<32x64xi32>
    %61 = arith.sitofp %60 : vector<32x64xi32> to vector<32x64xf32>
    %c6 = arith.constant 6 : index
    %c0_20 = arith.constant 0 : index
    %c0_21 = arith.constant 0 : index
    %62 = vector.load %arg2[%c6, %c0_20, %c0_21] : memref<16x64x512xf32, #tpu.memory_space<vmem>>, vector<1x64x512xf32>
    %63 = vector.shape_cast %62 : vector<1x64x512xf32> to vector<64x512xf32>
    %cst_22 = arith.constant dense<0.000000e+00> : vector<32x512xf32>
    %64 = tpu.matmul %61, %63, %cst_22 {dimension_numbers = #tpu.dot_dimension_numbers<[1], [0], [0], [1], [0, 0, 1, 1], [], []>} : vector<32x64xf32>, vector<64x512xf32>, vector<32x512xf32> -> vector<32x512xf32>
    %65 = arith.addf %56, %64 : vector<32x512xf32>
    %66 = vector.extract_strided_slice %0 {offsets = [0, 7], sizes = [32, 1], strides = [1, 1]} : vector<32x16xi32> to vector<32x1xi32>
    %67 = vector.broadcast %66 : vector<32x1xi32> to vector<32x64xi32>
    %68 = arith.cmpi eq, %67, %1 : vector<32x64xi32>
    %69 = arith.extui %68 : vector<32x64xi1> to vector<32x64xi32>
    %70 = arith.sitofp %69 : vector<32x64xi32> to vector<32x64xf32>
    %c7 = arith.constant 7 : index
    %c0_23 = arith.constant 0 : index
    %c0_24 = arith.constant 0 : index
    %71 = vector.load %arg2[%c7, %c0_23, %c0_24] : memref<16x64x512xf32, #tpu.memory_space<vmem>>, vector<1x64x512xf32>
    %72 = vector.shape_cast %71 : vector<1x64x512xf32> to vector<64x512xf32>
    %cst_25 = arith.constant dense<0.000000e+00> : vector<32x512xf32>
    %73 = tpu.matmul %70, %72, %cst_25 {dimension_numbers = #tpu.dot_dimension_numbers<[1], [0], [0], [1], [0, 0, 1, 1], [], []>} : vector<32x64xf32>, vector<64x512xf32>, vector<32x512xf32> -> vector<32x512xf32>
    %74 = arith.addf %65, %73 : vector<32x512xf32>
    %75 = vector.extract_strided_slice %0 {offsets = [0, 8], sizes = [32, 1], strides = [1, 1]} : vector<32x16xi32> to vector<32x1xi32>
    %76 = vector.broadcast %75 : vector<32x1xi32> to vector<32x64xi32>
    %77 = arith.cmpi eq, %76, %1 : vector<32x64xi32>
    %78 = arith.extui %77 : vector<32x64xi1> to vector<32x64xi32>
    %79 = arith.sitofp %78 : vector<32x64xi32> to vector<32x64xf32>
    %c8 = arith.constant 8 : index
    %c0_26 = arith.constant 0 : index
    %c0_27 = arith.constant 0 : index
    %80 = vector.load %arg2[%c8, %c0_26, %c0_27] : memref<16x64x512xf32, #tpu.memory_space<vmem>>, vector<1x64x512xf32>
    %81 = vector.shape_cast %80 : vector<1x64x512xf32> to vector<64x512xf32>
    %cst_28 = arith.constant dense<0.000000e+00> : vector<32x512xf32>
    %82 = tpu.matmul %79, %81, %cst_28 {dimension_numbers = #tpu.dot_dimension_numbers<[1], [0], [0], [1], [0, 0, 1, 1], [], []>} : vector<32x64xf32>, vector<64x512xf32>, vector<32x512xf32> -> vector<32x512xf32>
    %83 = arith.addf %74, %82 : vector<32x512xf32>
    %84 = vector.extract_strided_slice %0 {offsets = [0, 9], sizes = [32, 1], strides = [1, 1]} : vector<32x16xi32> to vector<32x1xi32>
    %85 = vector.broadcast %84 : vector<32x1xi32> to vector<32x64xi32>
    %86 = arith.cmpi eq, %85, %1 : vector<32x64xi32>
    %87 = arith.extui %86 : vector<32x64xi1> to vector<32x64xi32>
    %88 = arith.sitofp %87 : vector<32x64xi32> to vector<32x64xf32>
    %c9 = arith.constant 9 : index
    %c0_29 = arith.constant 0 : index
    %c0_30 = arith.constant 0 : index
    %89 = vector.load %arg2[%c9, %c0_29, %c0_30] : memref<16x64x512xf32, #tpu.memory_space<vmem>>, vector<1x64x512xf32>
    %90 = vector.shape_cast %89 : vector<1x64x512xf32> to vector<64x512xf32>
    %cst_31 = arith.constant dense<0.000000e+00> : vector<32x512xf32>
    %91 = tpu.matmul %88, %90, %cst_31 {dimension_numbers = #tpu.dot_dimension_numbers<[1], [0], [0], [1], [0, 0, 1, 1], [], []>} : vector<32x64xf32>, vector<64x512xf32>, vector<32x512xf32> -> vector<32x512xf32>
    %92 = arith.addf %83, %91 : vector<32x512xf32>
    %93 = vector.extract_strided_slice %0 {offsets = [0, 10], sizes = [32, 1], strides = [1, 1]} : vector<32x16xi32> to vector<32x1xi32>
    %94 = vector.broadcast %93 : vector<32x1xi32> to vector<32x64xi32>
    %95 = arith.cmpi eq, %94, %1 : vector<32x64xi32>
    %96 = arith.extui %95 : vector<32x64xi1> to vector<32x64xi32>
    %97 = arith.sitofp %96 : vector<32x64xi32> to vector<32x64xf32>
    %c10 = arith.constant 10 : index
    %c0_32 = arith.constant 0 : index
    %c0_33 = arith.constant 0 : index
    %98 = vector.load %arg2[%c10, %c0_32, %c0_33] : memref<16x64x512xf32, #tpu.memory_space<vmem>>, vector<1x64x512xf32>
    %99 = vector.shape_cast %98 : vector<1x64x512xf32> to vector<64x512xf32>
    %cst_34 = arith.constant dense<0.000000e+00> : vector<32x512xf32>
    %100 = tpu.matmul %97, %99, %cst_34 {dimension_numbers = #tpu.dot_dimension_numbers<[1], [0], [0], [1], [0, 0, 1, 1], [], []>} : vector<32x64xf32>, vector<64x512xf32>, vector<32x512xf32> -> vector<32x512xf32>
    %101 = arith.addf %92, %100 : vector<32x512xf32>
    %102 = vector.extract_strided_slice %0 {offsets = [0, 11], sizes = [32, 1], strides = [1, 1]} : vector<32x16xi32> to vector<32x1xi32>
    %103 = vector.broadcast %102 : vector<32x1xi32> to vector<32x64xi32>
    %104 = arith.cmpi eq, %103, %1 : vector<32x64xi32>
    %105 = arith.extui %104 : vector<32x64xi1> to vector<32x64xi32>
    %106 = arith.sitofp %105 : vector<32x64xi32> to vector<32x64xf32>
    %c11 = arith.constant 11 : index
    %c0_35 = arith.constant 0 : index
    %c0_36 = arith.constant 0 : index
    %107 = vector.load %arg2[%c11, %c0_35, %c0_36] : memref<16x64x512xf32, #tpu.memory_space<vmem>>, vector<1x64x512xf32>
    %108 = vector.shape_cast %107 : vector<1x64x512xf32> to vector<64x512xf32>
    %cst_37 = arith.constant dense<0.000000e+00> : vector<32x512xf32>
    %109 = tpu.matmul %106, %108, %cst_37 {dimension_numbers = #tpu.dot_dimension_numbers<[1], [0], [0], [1], [0, 0, 1, 1], [], []>} : vector<32x64xf32>, vector<64x512xf32>, vector<32x512xf32> -> vector<32x512xf32>
    %110 = arith.addf %101, %109 : vector<32x512xf32>
    %111 = vector.extract_strided_slice %0 {offsets = [0, 12], sizes = [32, 1], strides = [1, 1]} : vector<32x16xi32> to vector<32x1xi32>
    %112 = vector.broadcast %111 : vector<32x1xi32> to vector<32x64xi32>
    %113 = arith.cmpi eq, %112, %1 : vector<32x64xi32>
    %114 = arith.extui %113 : vector<32x64xi1> to vector<32x64xi32>
    %115 = arith.sitofp %114 : vector<32x64xi32> to vector<32x64xf32>
    %c12 = arith.constant 12 : index
    %c0_38 = arith.constant 0 : index
    %c0_39 = arith.constant 0 : index
    %116 = vector.load %arg2[%c12, %c0_38, %c0_39] : memref<16x64x512xf32, #tpu.memory_space<vmem>>, vector<1x64x512xf32>
    %117 = vector.shape_cast %116 : vector<1x64x512xf32> to vector<64x512xf32>
    %cst_40 = arith.constant dense<0.000000e+00> : vector<32x512xf32>
    %118 = tpu.matmul %115, %117, %cst_40 {dimension_numbers = #tpu.dot_dimension_numbers<[1], [0], [0], [1], [0, 0, 1, 1], [], []>} : vector<32x64xf32>, vector<64x512xf32>, vector<32x512xf32> -> vector<32x512xf32>
    %119 = arith.addf %110, %118 : vector<32x512xf32>
    %120 = vector.extract_strided_slice %0 {offsets = [0, 13], sizes = [32, 1], strides = [1, 1]} : vector<32x16xi32> to vector<32x1xi32>
    %121 = vector.broadcast %120 : vector<32x1xi32> to vector<32x64xi32>
    %122 = arith.cmpi eq, %121, %1 : vector<32x64xi32>
    %123 = arith.extui %122 : vector<32x64xi1> to vector<32x64xi32>
    %124 = arith.sitofp %123 : vector<32x64xi32> to vector<32x64xf32>
    %c13 = arith.constant 13 : index
    %c0_41 = arith.constant 0 : index
    %c0_42 = arith.constant 0 : index
    %125 = vector.load %arg2[%c13, %c0_41, %c0_42] : memref<16x64x512xf32, #tpu.memory_space<vmem>>, vector<1x64x512xf32>
    %126 = vector.shape_cast %125 : vector<1x64x512xf32> to vector<64x512xf32>
    %cst_43 = arith.constant dense<0.000000e+00> : vector<32x512xf32>
    %127 = tpu.matmul %124, %126, %cst_43 {dimension_numbers = #tpu.dot_dimension_numbers<[1], [0], [0], [1], [0, 0, 1, 1], [], []>} : vector<32x64xf32>, vector<64x512xf32>, vector<32x512xf32> -> vector<32x512xf32>
    %128 = arith.addf %119, %127 : vector<32x512xf32>
    %129 = vector.extract_strided_slice %0 {offsets = [0, 14], sizes = [32, 1], strides = [1, 1]} : vector<32x16xi32> to vector<32x1xi32>
    %130 = vector.broadcast %129 : vector<32x1xi32> to vector<32x64xi32>
    %131 = arith.cmpi eq, %130, %1 : vector<32x64xi32>
    %132 = arith.extui %131 : vector<32x64xi1> to vector<32x64xi32>
    %133 = arith.sitofp %132 : vector<32x64xi32> to vector<32x64xf32>
    %c14 = arith.constant 14 : index
    %c0_44 = arith.constant 0 : index
    %c0_45 = arith.constant 0 : index
    %134 = vector.load %arg2[%c14, %c0_44, %c0_45] : memref<16x64x512xf32, #tpu.memory_space<vmem>>, vector<1x64x512xf32>
    %135 = vector.shape_cast %134 : vector<1x64x512xf32> to vector<64x512xf32>
    %cst_46 = arith.constant dense<0.000000e+00> : vector<32x512xf32>
    %136 = tpu.matmul %133, %135, %cst_46 {dimension_numbers = #tpu.dot_dimension_numbers<[1], [0], [0], [1], [0, 0, 1, 1], [], []>} : vector<32x64xf32>, vector<64x512xf32>, vector<32x512xf32> -> vector<32x512xf32>
    %137 = arith.addf %128, %136 : vector<32x512xf32>
    %138 = vector.extract_strided_slice %0 {offsets = [0, 15], sizes = [32, 1], strides = [1, 1]} : vector<32x16xi32> to vector<32x1xi32>
    %139 = vector.broadcast %138 : vector<32x1xi32> to vector<32x64xi32>
    %140 = arith.cmpi eq, %139, %1 : vector<32x64xi32>
    %141 = arith.extui %140 : vector<32x64xi1> to vector<32x64xi32>
    %142 = arith.sitofp %141 : vector<32x64xi32> to vector<32x64xf32>
    %c15 = arith.constant 15 : index
    %c0_47 = arith.constant 0 : index
    %c0_48 = arith.constant 0 : index
    %143 = vector.load %arg2[%c15, %c0_47, %c0_48] : memref<16x64x512xf32, #tpu.memory_space<vmem>>, vector<1x64x512xf32>
    %144 = vector.shape_cast %143 : vector<1x64x512xf32> to vector<64x512xf32>
    %cst_49 = arith.constant dense<0.000000e+00> : vector<32x512xf32>
    %145 = tpu.matmul %142, %144, %cst_49 {dimension_numbers = #tpu.dot_dimension_numbers<[1], [0], [0], [1], [0, 0, 1, 1], [], []>} : vector<32x64xf32>, vector<64x512xf32>, vector<32x512xf32> -> vector<32x512xf32>
    %146 = arith.addf %137, %145 : vector<32x512xf32>
    %147 = vector.extract_strided_slice %146 {offsets = [0, 0], sizes = [32, 8], strides = [1, 1]} : vector<32x512xf32> to vector<32x8xf32>
    %148 = vector.extract_strided_slice %146 {offsets = [0, 8], sizes = [32, 8], strides = [1, 1]} : vector<32x512xf32> to vector<32x8xf32>
    %149 = arith.maximumf %147, %148 : vector<32x8xf32>
    %150 = vector.extract_strided_slice %146 {offsets = [0, 16], sizes = [32, 8], strides = [1, 1]} : vector<32x512xf32> to vector<32x8xf32>
    %151 = arith.maximumf %149, %150 : vector<32x8xf32>
    %152 = vector.extract_strided_slice %146 {offsets = [0, 24], sizes = [32, 8], strides = [1, 1]} : vector<32x512xf32> to vector<32x8xf32>
    %153 = arith.maximumf %151, %152 : vector<32x8xf32>
    %154 = vector.extract_strided_slice %146 {offsets = [0, 32], sizes = [32, 8], strides = [1, 1]} : vector<32x512xf32> to vector<32x8xf32>
    %155 = arith.maximumf %153, %154 : vector<32x8xf32>
    %156 = vector.extract_strided_slice %146 {offsets = [0, 40], sizes = [32, 8], strides = [1, 1]} : vector<32x512xf32> to vector<32x8xf32>
    %157 = arith.maximumf %155, %156 : vector<32x8xf32>
    %158 = vector.extract_strided_slice %146 {offsets = [0, 48], sizes = [32, 8], strides = [1, 1]} : vector<32x512xf32> to vector<32x8xf32>
    %159 = arith.maximumf %157, %158 : vector<32x8xf32>
    %160 = vector.extract_strided_slice %146 {offsets = [0, 56], sizes = [32, 8], strides = [1, 1]} : vector<32x512xf32> to vector<32x8xf32>
    %161 = arith.maximumf %159, %160 : vector<32x8xf32>
    %162 = vector.extract_strided_slice %146 {offsets = [0, 64], sizes = [32, 8], strides = [1, 1]} : vector<32x512xf32> to vector<32x8xf32>
    %163 = arith.maximumf %161, %162 : vector<32x8xf32>
    %164 = vector.extract_strided_slice %146 {offsets = [0, 72], sizes = [32, 8], strides = [1, 1]} : vector<32x512xf32> to vector<32x8xf32>
    %165 = arith.maximumf %163, %164 : vector<32x8xf32>
    %166 = vector.extract_strided_slice %146 {offsets = [0, 80], sizes = [32, 8], strides = [1, 1]} : vector<32x512xf32> to vector<32x8xf32>
    %167 = arith.maximumf %165, %166 : vector<32x8xf32>
    %168 = vector.extract_strided_slice %146 {offsets = [0, 88], sizes = [32, 8], strides = [1, 1]} : vector<32x512xf32> to vector<32x8xf32>
    %169 = arith.maximumf %167, %168 : vector<32x8xf32>
    %170 = vector.extract_strided_slice %146 {offsets = [0, 96], sizes = [32, 8], strides = [1, 1]} : vector<32x512xf32> to vector<32x8xf32>
    %171 = arith.maximumf %169, %170 : vector<32x8xf32>
    %172 = vector.extract_strided_slice %146 {offsets = [0, 104], sizes = [32, 8], strides = [1, 1]} : vector<32x512xf32> to vector<32x8xf32>
    %173 = arith.maximumf %171, %172 : vector<32x8xf32>
    %174 = vector.extract_strided_slice %146 {offsets = [0, 112], sizes = [32, 8], strides = [1, 1]} : vector<32x512xf32> to vector<32x8xf32>
    %175 = arith.maximumf %173, %174 : vector<32x8xf32>
    %176 = vector.extract_strided_slice %146 {offsets = [0, 120], sizes = [32, 8], strides = [1, 1]} : vector<32x512xf32> to vector<32x8xf32>
    %177 = arith.maximumf %175, %176 : vector<32x8xf32>
    %c0_50 = arith.constant 0 : index
    %c0_51 = arith.constant 0 : index
    %178 = vector.load %arg3[%c0_50, %c0_51] : memref<1x8xf32, #tpu.memory_space<vmem>>, vector<1x8xf32>
    %179 = vector.broadcast %178 : vector<1x8xf32> to vector<32x8xf32>
    %180 = arith.addf %177, %179 : vector<32x8xf32>
    %cst_52 = arith.constant 0.000000e+00 : f32
    %181 = vector.broadcast %cst_52 : f32 to vector<32x8xf32>
    %182 = arith.maximumf %180, %181 : vector<32x8xf32>
    %183 = vector.extract_strided_slice %146 {offsets = [0, 128], sizes = [32, 8], strides = [1, 1]} : vector<32x512xf32> to vector<32x8xf32>
    %184 = vector.extract_strided_slice %146 {offsets = [0, 136], sizes = [32, 8], strides = [1, 1]} : vector<32x512xf32> to vector<32x8xf32>
    %185 = arith.maximumf %183, %184 : vector<32x8xf32>
    %186 = vector.extract_strided_slice %146 {offsets = [0, 144], sizes = [32, 8], strides = [1, 1]} : vector<32x512xf32> to vector<32x8xf32>
    %187 = arith.maximumf %185, %186 : vector<32x8xf32>
    %188 = vector.extract_strided_slice %146 {offsets = [0, 152], sizes = [32, 8], strides = [1, 1]} : vector<32x512xf32> to vector<32x8xf32>
    %189 = arith.maximumf %187, %188 : vector<32x8xf32>
    %190 = vector.extract_strided_slice %146 {offsets = [0, 160], sizes = [32, 8], strides = [1, 1]} : vector<32x512xf32> to vector<32x8xf32>
    %191 = arith.maximumf %189, %190 : vector<32x8xf32>
    %192 = vector.extract_strided_slice %146 {offsets = [0, 168], sizes = [32, 8], strides = [1, 1]} : vector<32x512xf32> to vector<32x8xf32>
    %193 = arith.maximumf %191, %192 : vector<32x8xf32>
    %194 = vector.extract_strided_slice %146 {offsets = [0, 176], sizes = [32, 8], strides = [1, 1]} : vector<32x512xf32> to vector<32x8xf32>
    %195 = arith.maximumf %193, %194 : vector<32x8xf32>
    %196 = vector.extract_strided_slice %146 {offsets = [0, 184], sizes = [32, 8], strides = [1, 1]} : vector<32x512xf32> to vector<32x8xf32>
    %197 = arith.maximumf %195, %196 : vector<32x8xf32>
    %198 = vector.extract_strided_slice %146 {offsets = [0, 192], sizes = [32, 8], strides = [1, 1]} : vector<32x512xf32> to vector<32x8xf32>
    %199 = arith.maximumf %197, %198 : vector<32x8xf32>
    %200 = vector.extract_strided_slice %146 {offsets = [0, 200], sizes = [32, 8], strides = [1, 1]} : vector<32x512xf32> to vector<32x8xf32>
    %201 = arith.maximumf %199, %200 : vector<32x8xf32>
    %202 = vector.extract_strided_slice %146 {offsets = [0, 208], sizes = [32, 8], strides = [1, 1]} : vector<32x512xf32> to vector<32x8xf32>
    %203 = arith.maximumf %201, %202 : vector<32x8xf32>
    %204 = vector.extract_strided_slice %146 {offsets = [0, 216], sizes = [32, 8], strides = [1, 1]} : vector<32x512xf32> to vector<32x8xf32>
    %205 = arith.maximumf %203, %204 : vector<32x8xf32>
    %206 = vector.extract_strided_slice %146 {offsets = [0, 224], sizes = [32, 8], strides = [1, 1]} : vector<32x512xf32> to vector<32x8xf32>
    %207 = arith.maximumf %205, %206 : vector<32x8xf32>
    %208 = vector.extract_strided_slice %146 {offsets = [0, 232], sizes = [32, 8], strides = [1, 1]} : vector<32x512xf32> to vector<32x8xf32>
    %209 = arith.maximumf %207, %208 : vector<32x8xf32>
    %210 = vector.extract_strided_slice %146 {offsets = [0, 240], sizes = [32, 8], strides = [1, 1]} : vector<32x512xf32> to vector<32x8xf32>
    %211 = arith.maximumf %209, %210 : vector<32x8xf32>
    %c0_53 = arith.constant 0 : index
    %c0_54 = arith.constant 0 : index
    %212 = vector.load %arg4[%c0_53, %c0_54] : memref<1x8xf32, #tpu.memory_space<vmem>>, vector<1x8xf32>
    %213 = vector.broadcast %212 : vector<1x8xf32> to vector<32x8xf32>
    %214 = arith.addf %211, %213 : vector<32x8xf32>
    %cst_55 = arith.constant 0.000000e+00 : f32
    %215 = vector.broadcast %cst_55 : f32 to vector<32x8xf32>
    %216 = arith.maximumf %214, %215 : vector<32x8xf32>
    %217 = vector.extract_strided_slice %146 {offsets = [0, 248], sizes = [32, 16], strides = [1, 1]} : vector<32x512xf32> to vector<32x16xf32>
    %218 = vector.extract_strided_slice %146 {offsets = [0, 264], sizes = [32, 16], strides = [1, 1]} : vector<32x512xf32> to vector<32x16xf32>
    %219 = arith.maximumf %217, %218 : vector<32x16xf32>
    %220 = vector.extract_strided_slice %146 {offsets = [0, 280], sizes = [32, 16], strides = [1, 1]} : vector<32x512xf32> to vector<32x16xf32>
    %221 = arith.maximumf %219, %220 : vector<32x16xf32>
    %222 = vector.extract_strided_slice %146 {offsets = [0, 296], sizes = [32, 16], strides = [1, 1]} : vector<32x512xf32> to vector<32x16xf32>
    %223 = arith.maximumf %221, %222 : vector<32x16xf32>
    %224 = vector.extract_strided_slice %146 {offsets = [0, 312], sizes = [32, 16], strides = [1, 1]} : vector<32x512xf32> to vector<32x16xf32>
    %225 = arith.maximumf %223, %224 : vector<32x16xf32>
    %226 = vector.extract_strided_slice %146 {offsets = [0, 328], sizes = [32, 16], strides = [1, 1]} : vector<32x512xf32> to vector<32x16xf32>
    %227 = arith.maximumf %225, %226 : vector<32x16xf32>
    %228 = vector.extract_strided_slice %146 {offsets = [0, 344], sizes = [32, 16], strides = [1, 1]} : vector<32x512xf32> to vector<32x16xf32>
    %229 = arith.maximumf %227, %228 : vector<32x16xf32>
    %230 = vector.extract_strided_slice %146 {offsets = [0, 360], sizes = [32, 16], strides = [1, 1]} : vector<32x512xf32> to vector<32x16xf32>
    %231 = arith.maximumf %229, %230 : vector<32x16xf32>
    %232 = vector.extract_strided_slice %146 {offsets = [0, 376], sizes = [32, 16], strides = [1, 1]} : vector<32x512xf32> to vector<32x16xf32>
    %233 = arith.maximumf %231, %232 : vector<32x16xf32>
    %234 = vector.extract_strided_slice %146 {offsets = [0, 392], sizes = [32, 16], strides = [1, 1]} : vector<32x512xf32> to vector<32x16xf32>
    %235 = arith.maximumf %233, %234 : vector<32x16xf32>
    %236 = vector.extract_strided_slice %146 {offsets = [0, 408], sizes = [32, 16], strides = [1, 1]} : vector<32x512xf32> to vector<32x16xf32>
    %237 = arith.maximumf %235, %236 : vector<32x16xf32>
    %238 = vector.extract_strided_slice %146 {offsets = [0, 424], sizes = [32, 16], strides = [1, 1]} : vector<32x512xf32> to vector<32x16xf32>
    %239 = arith.maximumf %237, %238 : vector<32x16xf32>
    %240 = vector.extract_strided_slice %146 {offsets = [0, 440], sizes = [32, 16], strides = [1, 1]} : vector<32x512xf32> to vector<32x16xf32>
    %241 = arith.maximumf %239, %240 : vector<32x16xf32>
    %242 = vector.extract_strided_slice %146 {offsets = [0, 456], sizes = [32, 16], strides = [1, 1]} : vector<32x512xf32> to vector<32x16xf32>
    %243 = arith.maximumf %241, %242 : vector<32x16xf32>
    %c0_56 = arith.constant 0 : index
    %c0_57 = arith.constant 0 : index
    %244 = vector.load %arg5[%c0_56, %c0_57] : memref<1x16xf32, #tpu.memory_space<vmem>>, vector<1x16xf32>
    %245 = vector.broadcast %244 : vector<1x16xf32> to vector<32x16xf32>
    %246 = arith.addf %243, %245 : vector<32x16xf32>
    %cst_58 = arith.constant 0.000000e+00 : f32
    %247 = vector.broadcast %cst_58 : f32 to vector<32x16xf32>
    %248 = arith.maximumf %246, %247 : vector<32x16xf32>
    %249 = tpu.concatenate %182, %216, %248 in 1 : vector<32x8xf32>, vector<32x8xf32>, vector<32x16xf32> -> vector<32x32xf32>
    %c0_59 = arith.constant 0 : index
    %c0_60 = arith.constant 0 : index
    %250 = vector.load %arg6[%c0_59, %c0_60] : memref<32x64xf32, #tpu.memory_space<vmem>>, vector<32x64xf32>
    %cst_61 = arith.constant dense<0.000000e+00> : vector<32x64xf32>
    %251 = tpu.matmul %249, %250, %cst_61 {dimension_numbers = #tpu.dot_dimension_numbers<[1], [0], [0], [1], [0, 0, 1, 1], [], []>} : vector<32x32xf32>, vector<32x64xf32>, vector<32x64xf32> -> vector<32x64xf32>
    %c0_62 = arith.constant 0 : index
    %c0_63 = arith.constant 0 : index
    %252 = vector.load %arg7[%c0_62, %c0_63] : memref<1x64xf32, #tpu.memory_space<vmem>>, vector<1x64xf32>
    %253 = vector.broadcast %252 : vector<1x64xf32> to vector<32x64xf32>
    %254 = arith.addf %251, %253 : vector<32x64xf32>
    %255 = vector.extract_strided_slice %254 {offsets = [0, 0], sizes = [32, 32], strides = [1, 1]} : vector<32x64xf32> to vector<32x32xf32>
    %cst_64 = arith.constant 0.000000e+00 : f32
    %256 = vector.broadcast %cst_64 : f32 to vector<32x32xf32>
    %257 = arith.maximumf %255, %256 : vector<32x32xf32>
    %258 = vector.extract_strided_slice %254 {offsets = [0, 32], sizes = [32, 32], strides = [1, 1]} : vector<32x64xf32> to vector<32x32xf32>
    %259 = arith.negf %258 : vector<32x32xf32>
    %260 = math.exp %259 : vector<32x32xf32>
    %cst_65 = arith.constant 1.000000e+00 : f32
    %261 = vector.broadcast %cst_65 : f32 to vector<32x32xf32>
    %262 = arith.addf %261, %260 : vector<32x32xf32>
    %263 = arith.divf %261, %262 : vector<32x32xf32>
    %264 = arith.mulf %263, %249 : vector<32x32xf32>
    %cst_66 = arith.constant 1.000000e+00 : f32
    %265 = vector.broadcast %cst_66 : f32 to vector<32x32xf32>
    %266 = arith.subf %265, %263 : vector<32x32xf32>
    %267 = arith.mulf %266, %257 : vector<32x32xf32>
    %268 = arith.addf %264, %267 : vector<32x32xf32>
    %c0_67 = arith.constant 0 : index
    %c0_68 = arith.constant 0 : index
    %269 = vector.load %arg8[%c0_67, %c0_68] : memref<32x64xf32, #tpu.memory_space<vmem>>, vector<32x64xf32>
    %cst_69 = arith.constant dense<0.000000e+00> : vector<32x64xf32>
    %270 = tpu.matmul %268, %269, %cst_69 {dimension_numbers = #tpu.dot_dimension_numbers<[1], [0], [0], [1], [0, 0, 1, 1], [], []>} : vector<32x32xf32>, vector<32x64xf32>, vector<32x64xf32> -> vector<32x64xf32>
    %c0_70 = arith.constant 0 : index
    %c0_71 = arith.constant 0 : index
    %271 = vector.load %arg9[%c0_70, %c0_71] : memref<1x64xf32, #tpu.memory_space<vmem>>, vector<1x64xf32>
    %272 = vector.broadcast %271 : vector<1x64xf32> to vector<32x64xf32>
    %273 = arith.addf %270, %272 : vector<32x64xf32>
    %274 = vector.extract_strided_slice %273 {offsets = [0, 0], sizes = [32, 32], strides = [1, 1]} : vector<32x64xf32> to vector<32x32xf32>
    %cst_72 = arith.constant 0.000000e+00 : f32
    %275 = vector.broadcast %cst_72 : f32 to vector<32x32xf32>
    %276 = arith.maximumf %274, %275 : vector<32x32xf32>
    %277 = vector.extract_strided_slice %273 {offsets = [0, 32], sizes = [32, 32], strides = [1, 1]} : vector<32x64xf32> to vector<32x32xf32>
    %278 = arith.negf %277 : vector<32x32xf32>
    %279 = math.exp %278 : vector<32x32xf32>
    %cst_73 = arith.constant 1.000000e+00 : f32
    %280 = vector.broadcast %cst_73 : f32 to vector<32x32xf32>
    %281 = arith.addf %280, %279 : vector<32x32xf32>
    %282 = arith.divf %280, %281 : vector<32x32xf32>
    %283 = arith.mulf %282, %268 : vector<32x32xf32>
    %cst_74 = arith.constant 1.000000e+00 : f32
    %284 = vector.broadcast %cst_74 : f32 to vector<32x32xf32>
    %285 = arith.subf %284, %282 : vector<32x32xf32>
    %286 = arith.mulf %285, %276 : vector<32x32xf32>
    %287 = arith.addf %283, %286 : vector<32x32xf32>
    %c0_75 = arith.constant 0 : index
    %c0_76 = arith.constant 0 : index
    %288 = vector.load %arg10[%c0_75, %c0_76] : memref<32x32xf32, #tpu.memory_space<vmem>>, vector<32x32xf32>
    %cst_77 = arith.constant dense<0.000000e+00> : vector<32x32xf32>
    %289 = tpu.matmul %287, %288, %cst_77 {dimension_numbers = #tpu.dot_dimension_numbers<[1], [0], [0], [1], [0, 0, 1, 1], [], []>} : vector<32x32xf32>, vector<32x32xf32>, vector<32x32xf32> -> vector<32x32xf32>
    %c0_78 = arith.constant 0 : index
    %c0_79 = arith.constant 0 : index
    %290 = vector.load %arg11[%c0_78, %c0_79] : memref<1x32xf32, #tpu.memory_space<vmem>>, vector<1x32xf32>
    %291 = vector.broadcast %290 : vector<1x32xf32> to vector<32x32xf32>
    %292 = arith.addf %289, %291 : vector<32x32xf32>
    %c0_80 = arith.constant 0 : index
    %c0_81 = arith.constant 0 : index
    %293 = vector.load %arg12[%c0_80, %c0_81] : memref<32x32xf32, #tpu.memory_space<vmem>>, vector<32x32xf32>
    tpu.vector_store %arg12[%c0_80, %c0_81], %292 {strides = array<i32>} : memref<32x32xf32, #tpu.memory_space<vmem>>, vector<32x32xf32>,
    return
  }
  func.func @transform_0(%arg0: i32) -> (i32, i32) {
    %c0_i32 = arith.constant 0 : i32
    %c0_i32_0 = arith.constant 0 : i32
    return %arg0, %c0_i32 : i32, i32
  }
  func.func @transform_1(%arg0: i32) -> (i32, i32, i32) {
    %c0_i32 = arith.constant 0 : i32
    %c0_i32_0 = arith.constant 0 : i32
    %c0_i32_1 = arith.constant 0 : i32
    %c0_i32_2 = arith.constant 0 : i32
    return %c0_i32, %c0_i32_0, %c0_i32_1 : i32, i32, i32
  }
  func.func @transform_2(%arg0: i32) -> (i32, i32) {
    %c0_i32 = arith.constant 0 : i32
    %c0_i32_0 = arith.constant 0 : i32
    %c0_i32_1 = arith.constant 0 : i32
    return %c0_i32, %c0_i32_0 : i32, i32
  }
  func.func @transform_3(%arg0: i32) -> (i32, i32) {
    %c0_i32 = arith.constant 0 : i32
    %c0_i32_0 = arith.constant 0 : i32
    %c0_i32_1 = arith.constant 0 : i32
    return %c0_i32, %c0_i32_0 : i32, i32
  }
  func.func @transform_4(%arg0: i32) -> (i32, i32) {
    %c0_i32 = arith.constant 0 : i32
    %c0_i32_0 = arith.constant 0 : i32
    %c0_i32_1 = arith.constant 0 : i32
    return %c0_i32, %c0_i32_0 : i32, i32
  }
  func.func @transform_5(%arg0: i32) -> (i32, i32) {
    %c0_i32 = arith.constant 0 : i32
    %c0_i32_0 = arith.constant 0 : i32
    %c0_i32_1 = arith.constant 0 : i32
    return %c0_i32, %c0_i32_0 : i32, i32
  }
  func.func @transform_6(%arg0: i32) -> (i32, i32) {
    %c0_i32 = arith.constant 0 : i32
    %c0_i32_0 = arith.constant 0 : i32
    %c0_i32_1 = arith.constant 0 : i32
    return %c0_i32, %c0_i32_0 : i32, i32
  }
  func.func @transform_7(%arg0: i32) -> (i32, i32) {
    %c0_i32 = arith.constant 0 : i32
    %c0_i32_0 = arith.constant 0 : i32
    %c0_i32_1 = arith.constant 0 : i32
    return %c0_i32, %c0_i32_0 : i32, i32
  }
  func.func @transform_8(%arg0: i32) -> (i32, i32) {
    %c0_i32 = arith.constant 0 : i32
    %c0_i32_0 = arith.constant 0 : i32
    %c0_i32_1 = arith.constant 0 : i32
    return %c0_i32, %c0_i32_0 : i32, i32
  }
  func.func @transform_9(%arg0: i32) -> (i32, i32) {
    %c0_i32 = arith.constant 0 : i32
    %c0_i32_0 = arith.constant 0 : i32
    %c0_i32_1 = arith.constant 0 : i32
    return %c0_i32, %c0_i32_0 : i32, i32
  }
  func.func @transform_10(%arg0: i32) -> (i32, i32) {
    %c0_i32 = arith.constant 0 : i32
    %c0_i32_0 = arith.constant 0 : i32
    %c0_i32_1 = arith.constant 0 : i32
    return %c0_i32, %c0_i32_0 : i32, i32
  }
  func.func @transform_11(%arg0: i32) -> (i32, i32) {
    %c0_i32 = arith.constant 0 : i32
    %c0_i32_0 = arith.constant 0 : i32
    return %arg0, %c0_i32 : i32, i32
  }
}

</mosaic_0001>

<llo_original>
// kernel: tpu_custom_call.1
$region0: #{tpu_custom_call.1}
  #allocation0 [shape = 'u32[]', space=smem, size = 0x4, offset = 0x4, fixed_abs, tag = 'smem constant byte address 0x4 - core index']
  #allocation1 [shape = 'u32[144,128]{1,0:T(1,128)}', space=vmem, size = 0x12000, scoped, tag = 'internal scratch']
  %s0 = inlined_call_operand.vmem [shape: s32[32,16], index: 0, kind: input, shape index: {}]
  %s1 = inlined_call_operand.hbm [shape: f32[16,64,512], index: 1, kind: input, shape index: {}]
  %s2 = inlined_call_operand.hbm [shape: f32[1,8], index: 2, kind: input, shape index: {}]
  %s3 = inlined_call_operand.hbm [shape: f32[1,8], index: 3, kind: input, shape index: {}]
  %s4 = inlined_call_operand.hbm [shape: f32[1,16], index: 4, kind: input, shape index: {}]
  %s5 = inlined_call_operand.hbm [shape: f32[32,64], index: 5, kind: input, shape index: {}]
  %s6 = inlined_call_operand.hbm [shape: f32[1,64], index: 6, kind: input, shape index: {}]
  %s7 = inlined_call_operand.hbm [shape: f32[32,64], index: 7, kind: input, shape index: {}]
  %s8 = inlined_call_operand.hbm [shape: f32[1,64], index: 8, kind: input, shape index: {}]
  %s9 = inlined_call_operand.hbm [shape: f32[32,32], index: 9, kind: input, shape index: {}]
  %s10 = inlined_call_operand.hbm [shape: f32[1,32], index: 10, kind: input, shape index: {}]
  %s11 = inlined_call_operand.hbm [shape: f32[32,32], index: 11, kind: output, shape index: {}]
  %s12 = sld [smem:[#allocation0]]
  $region94: #{tpu_custom_call.1} parent=0
    _
  %s14 = ssub.s32 1, %s12
  %s15 = scalar_select 0, %s14, %s12
  $region1: #{tpu_custom_call.1} parent=0
    #allocation2 [shape = 'u8[2097152]{0}', space=vmem, size = 0x200000, scoped, tag = 'input window, operand 1, single buffered']
    #allocation3 [shape = 's32[1]{0}', space=sflag, size = 0x4, scoped, tag = 'scoped memory for tpu_custom_call.1']
    #allocation4 [shape = 's32[1]{0}', space=sflag, size = 0x4, scoped, tag = 'scoped memory for tpu_custom_call.1']
    #allocation5 [shape = 'u8[512]{0}', space=vmem, size = 0x400, scoped, tag = 'input window, operand 2, single buffered']
    #allocation6 [shape = 's32[1]{0}', space=sflag, size = 0x4, scoped, tag = 'scoped memory for tpu_custom_call.1']
    #allocation7 [shape = 'u8[512]{0}', space=vmem, size = 0x400, scoped, tag = 'input window, operand 3, single buffered']
    #allocation8 [shape = 'u8[512]{0}', space=vmem, size = 0x400, scoped, tag = 'input window, operand 4, single buffered']
    #allocation9 [shape = 's32[1]{0}', space=sflag, size = 0x4, scoped, tag = 'scoped memory for tpu_custom_call.1']
    #allocation10 [shape = 'u8[16384]{0}', space=vmem, size = 0x4000, scoped, tag = 'input window, operand 5, single buffered']
    #allocation11 [shape = 'u8[512]{0}', space=vmem, size = 0x400, scoped, tag = 'input window, operand 6, single buffered']
    #allocation12 [shape = 's32[1]{0}', space=sflag, size = 0x4, scoped, tag = 'scoped memory for tpu_custom_call.1']
    #allocation13 [shape = 'u8[16384]{0}', space=vmem, size = 0x4000, scoped, tag = 'input window, operand 7, single buffered']
    #allocation14 [shape = 'u8[512]{0}', space=vmem, size = 0x400, scoped, tag = 'input window, operand 8, single buffered']
    #allocation15 [shape = 's32[1]{0}', space=sflag, size = 0x4, scoped, tag = 'scoped memory for tpu_custom_call.1']
    #allocation16 [shape = 'u8[16384]{0}', space=vmem, size = 0x4000, scoped, tag = 'input window, operand 9, single buffered']
    #allocation17 [shape = 'u8[512]{0}', space=vmem, size = 0x400, scoped, tag = 'input window, operand 10, single buffered']
    #allocation18 [shape = 's32[1]{0}', space=sflag, size = 0x4, scoped, tag = 'scoped memory for tpu_custom_call.1']
    #allocation19 [shape = 'u8[16384]{0}', space=vmem, size = 0x4000, scoped, tag = 'output window, operand 0, single buffered']
    %16 = vsyncpa [#allocation3], 0
    %17 = vsyncpa [#allocation6], 0
    %18 = vsyncpa [#allocation9], 0
    %19 = vsyncpa [#allocation12], 0
    %20 = vsyncpa [#allocation15], 0
    %21 = vsyncpa [#allocation18], 0
    %22 = vsyncpa [#allocation4], 0
    // Predicated region
    $region2: #{tpu_custom_call.1} parent=1 // pred_check
      _
    $region3: #{tpu_custom_call.1} parent=1 // pred_check_branch
      %24 = sbr.rel (0) target = $region5
    $region4: #{tpu_custom_call.1} parent=1 // pred_region
      _
    $region5: #{tpu_custom_call.1} parent=1 // pred_fallthru
      _
    // Predicated region
    $region6: #{tpu_custom_call.1} parent=1 // pred_check
      _
    $region7: #{tpu_custom_call.1} parent=1 // pred_check_branch
      %26 = sbr.rel (0) target = $region9
    $region8: #{tpu_custom_call.1} parent=1 // pred_region
      %s28 = ssub.s32 65536, 65536
      %29 = vsyncadd [#allocation3], %s28
      %s30 = sshll.u32 [#allocation2], 4
      %s31 = int_to_ptr.vmem [resolvable:$true] %s30
      %36 = dma.hbm_to_vmem [thread:$0]  %s1, 65536, %s31, [#allocation3], 512, 512, 32
    $region9: #{tpu_custom_call.1} parent=1 // pred_fallthru
      _
    // Predicated region
    $region10: #{tpu_custom_call.1} parent=1 // pred_check
      _
    $region11: #{tpu_custom_call.1} parent=1 // pred_check_branch
      %38 = sbr.rel (0) target = $region13
    $region12: #{tpu_custom_call.1} parent=1 // pred_region
      %s40 = ssub.s32 16, 16
      %41 = vsyncadd [#allocation6], %s40
      %s43 = sshll.u32 [#allocation5], 4
      %s44 = int_to_ptr.vmem [resolvable:$true] %s43
      %46 = dma.hbm_to_vmem [thread:$0]  %s2, 16, %s44, [#allocation6]
    $region13: #{tpu_custom_call.1} parent=1 // pred_fallthru
      _
    // Predicated region
    $region14: #{tpu_custom_call.1} parent=1 // pred_check
      _
    $region15: #{tpu_custom_call.1} parent=1 // pred_check_branch
      %48 = sbr.rel (0) target = $region17
    $region16: #{tpu_custom_call.1} parent=1 // pred_region
      %s50 = ssub.s32 16, 16
      %51 = vsyncadd [#allocation6], %s50
      %s53 = sshll.u32 [#allocation7], 4
      %s54 = int_to_ptr.vmem [resolvable:$true] %s53
      %56 = dma.hbm_to_vmem [thread:$0]  %s3, 16, %s54, [#allocation6]
    $region17: #{tpu_custom_call.1} parent=1 // pred_fallthru
      _
    // Predicated region
    $region18: #{tpu_custom_call.1} parent=1 // pred_check
      _
    $region19: #{tpu_custom_call.1} parent=1 // pred_check_branch
      %58 = sbr.rel (0) target = $region21
    $region20: #{tpu_custom_call.1} parent=1 // pred_region
      %s60 = ssub.s32 16, 16
      %61 = vsyncadd [#allocation9], %s60
      %s63 = sshll.u32 [#allocation8], 4
      %s64 = int_to_ptr.vmem [resolvable:$true] %s63
      %66 = dma.hbm_to_vmem [thread:$0]  %s4, 16, %s64, [#allocation9]
    $region21: #{tpu_custom_call.1} parent=1 // pred_fallthru
      _
    // Predicated region
    $region22: #{tpu_custom_call.1} parent=1 // pred_check
      _
    $region23: #{tpu_custom_call.1} parent=1 // pred_check_branch
      %68 = sbr.rel (0) target = $region25
    $region24: #{tpu_custom_call.1} parent=1 // pred_region
      %s70 = ssub.s32 512, 512
      %71 = vsyncadd [#allocation9], %s70
      %s72 = sshll.u32 [#allocation10], 4
      %s73 = int_to_ptr.vmem [resolvable:$true] %s72
      %78 = dma.hbm_to_vmem [thread:$0]  %s5, 512, %s73, [#allocation9], 128, 128, 8
    $region25: #{tpu_custom_call.1} parent=1 // pred_fallthru
      _
    // Predicated region
    $region26: #{tpu_custom_call.1} parent=1 // pred_check
      _
    $region27: #{tpu_custom_call.1} parent=1 // pred_check_branch
      %80 = sbr.rel (0) target = $region29
    $region28: #{tpu_custom_call.1} parent=1 // pred_region
      %s82 = ssub.s32 16, 16
      %83 = vsyncadd [#allocation12], %s82
      %s85 = sshll.u32 [#allocation11], 4
      %s86 = int_to_ptr.vmem [resolvable:$true] %s85
      %88 = dma.hbm_to_vmem [thread:$0]  %s6, 16, %s86, [#allocation12]
    $region29: #{tpu_custom_call.1} parent=1 // pred_fallthru
      _
    // Predicated region
    $region30: #{tpu_custom_call.1} parent=1 // pred_check
      _
    $region31: #{tpu_custom_call.1} parent=1 // pred_check_branch
      %90 = sbr.rel (0) target = $region33
    $region32: #{tpu_custom_call.1} parent=1 // pred_region
      %s92 = ssub.s32 512, 512
      %93 = vsyncadd [#allocation12], %s92
      %s94 = sshll.u32 [#allocation13], 4
      %s95 = int_to_ptr.vmem [resolvable:$true] %s94
      %100 = dma.hbm_to_vmem [thread:$0]  %s7, 512, %s95, [#allocation12], 128, 128, 8
    $region33: #{tpu_custom_call.1} parent=1 // pred_fallthru
      _
    // Predicated region
    $region34: #{tpu_custom_call.1} parent=1 // pred_check
      _
    $region35: #{tpu_custom_call.1} parent=1 // pred_check_branch
      %102 = sbr.rel (0) target = $region37
    $region36: #{tpu_custom_call.1} parent=1 // pred_region
      %s104 = ssub.s32 16, 16
      %105 = vsyncadd [#allocation15], %s104
      %s107 = sshll.u32 [#allocation14], 4
      %s108 = int_to_ptr.vmem [resolvable:$true] %s107
      %110 = dma.hbm_to_vmem [thread:$0]  %s8, 16, %s108, [#allocation15]
    $region37: #{tpu_custom_call.1} parent=1 // pred_fallthru
      _
    // Predicated region
    $region38: #{tpu_custom_call.1} parent=1 // pred_check
      _
    $region39: #{tpu_custom_call.1} parent=1 // pred_check_branch
      %112 = sbr.rel (0) target = $region41
    $region40: #{tpu_custom_call.1} parent=1 // pred_region
      %s114 = ssub.s32 512, 512
      %115 = vsyncadd [#allocation15], %s114
      %s116 = sshll.u32 [#allocation16], 4
      %s117 = int_to_ptr.vmem [resolvable:$true] %s116
      %122 = dma.hbm_to_vmem [thread:$0]  %s9, 512, %s117, [#allocation15], 128, 128, 8
    $region41: #{tpu_custom_call.1} parent=1 // pred_fallthru
      _
    // Predicated region
    $region42: #{tpu_custom_call.1} parent=1 // pred_check
      _
    $region43: #{tpu_custom_call.1} parent=1 // pred_check_branch
      %124 = sbr.rel (0) target = $region45
    $region44: #{tpu_custom_call.1} parent=1 // pred_region
      %s126 = ssub.s32 16, 16
      %127 = vsyncadd [#allocation18], %s126
      %s129 = sshll.u32 [#allocation17], 4
      %s130 = int_to_ptr.vmem [resolvable:$true] %s129
      %132 = dma.hbm_to_vmem [thread:$0]  %s10, 16, %s130, [#allocation18]
    $region45: #{tpu_custom_call.1} parent=1 // pred_fallthru
      _
    // Predicated region
    $region46: #{tpu_custom_call.1} parent=1 // pred_check
      _
    $region47: #{tpu_custom_call.1} parent=1 // pred_check_branch
      %134 = sbr.rel (0) target = $region49
    $region48: #{tpu_custom_call.1} parent=1 // pred_region
      %135 = dma.done [#allocation3], 65536
    $region49: #{tpu_custom_call.1} parent=1 // pred_fallthru
      _
    // Predicated region
    $region50: #{tpu_custom_call.1} parent=1 // pred_check
      _
    $region51: #{tpu_custom_call.1} parent=1 // pred_check_branch
      %137 = sbr.rel (0) target = $region53
    $region52: #{tpu_custom_call.1} parent=1 // pred_region
      %138 = dma.done [#allocation6], 16
    $region53: #{tpu_custom_call.1} parent=1 // pred_fallthru
      _
    // Predicated region
    $region54: #{tpu_custom_call.1} parent=1 // pred_check
      _
    $region55: #{tpu_custom_call.1} parent=1 // pred_check_branch
      %140 = sbr.rel (0) target = $region57
    $region56: #{tpu_custom_call.1} parent=1 // pred_region
      %141 = dma.done [#allocation6], 16
    $region57: #{tpu_custom_call.1} parent=1 // pred_fallthru
      _
    // Predicated region
    $region58: #{tpu_custom_call.1} parent=1 // pred_check
      _
    $region59: #{tpu_custom_call.1} parent=1 // pred_check_branch
      %143 = sbr.rel (0) target = $region61
    $region60: #{tpu_custom_call.1} parent=1 // pred_region
      %144 = dma.done [#allocation9], 16
    $region61: #{tpu_custom_call.1} parent=1 // pred_fallthru
      _
    // Predicated region
    $region62: #{tpu_custom_call.1} parent=1 // pred_check
      _
    $region63: #{tpu_custom_call.1} parent=1 // pred_check_branch
      %146 = sbr.rel (0) target = $region65
    $region64: #{tpu_custom_call.1} parent=1 // pred_region
      %147 = dma.done [#allocation9], 512
    $region65: #{tpu_custom_call.1} parent=1 // pred_fallthru
      _
    // Predicated region
    $region66: #{tpu_custom_call.1} parent=1 // pred_check
      _
    $region67: #{tpu_custom_call.1} parent=1 // pred_check_branch
      %149 = sbr.rel (0) target = $region69
    $region68: #{tpu_custom_call.1} parent=1 // pred_region
      %150 = dma.done [#allocation12], 16
    $region69: #{tpu_custom_call.1} parent=1 // pred_fallthru
      _
    // Predicated region
    $region70: #{tpu_custom_call.1} parent=1 // pred_check
      _
    $region71: #{tpu_custom_call.1} parent=1 // pred_check_branch
      %152 = sbr.rel (0) target = $region73
    $region72: #{tpu_custom_call.1} parent=1 // pred_region
      %153 = dma.done [#allocation12], 512
    $region73: #{tpu_custom_call.1} parent=1 // pred_fallthru
      _
    // Predicated region
    $region74: #{tpu_custom_call.1} parent=1 // pred_check
      _
    $region75: #{tpu_custom_call.1} parent=1 // pred_check_branch
      %155 = sbr.rel (0) target = $region77
    $region76: #{tpu_custom_call.1} parent=1 // pred_region
      %156 = dma.done [#allocation15], 16
    $region77: #{tpu_custom_call.1} parent=1 // pred_fallthru
      _
    // Predicated region
    $region78: #{tpu_custom_call.1} parent=1 // pred_check
      _
    $region79: #{tpu_custom_call.1} parent=1 // pred_check_branch
      %158 = sbr.rel (0) target = $region81
    $region80: #{tpu_custom_call.1} parent=1 // pred_region
      %159 = dma.done [#allocation15], 512
    $region81: #{tpu_custom_call.1} parent=1 // pred_fallthru
      _
    // Predicated region
    $region82: #{tpu_custom_call.1} parent=1 // pred_check
      _
    $region83: #{tpu_custom_call.1} parent=1 // pred_check_branch
      %161 = sbr.rel (0) target = $region85
    $region84: #{tpu_custom_call.1} parent=1 // pred_region
      %162 = dma.done [#allocation18], 16
    $region85: #{tpu_custom_call.1} parent=1 // pred_fallthru
      _
    %v163 = vld [vmem:[%s0] sm:$0xff]
    %v164 = vld [vmem:[%s0 + $0x8] sm:$0xff]
    %v165 = vld [vmem:[%s0 + $0x10] sm:$0xff]
    %v166 = vld [vmem:[%s0 + $0x18] sm:$0xff]
    %v167 = vlaneseq
    %v168 = vand.u32 %v167, 127
    %169 = vset.pattern.permute.xlu0 0
    %170 = vperm.xlu0 %169, %v163
    %v171 = vpop.permute.xlu0 %170
    %172 = vset.pattern.permute.xlu0 0
    %173 = vperm.xlu0 %172, %v164
    %v174 = vpop.permute.xlu0 %173
    %175 = vset.pattern.permute.xlu0 0
    %176 = vperm.xlu0 %175, %v165
    %v177 = vpop.permute.xlu0 %176
    %178 = vset.pattern.permute.xlu0 0
    %179 = vperm.xlu0 %178, %v166
    %v180 = vpop.permute.xlu0 %179
    %vm181 = vcmp.eq.s32.totalorder %v171, %v168
    %vm182 = vcmp.eq.s32.totalorder %v174, %v168
    %vm183 = vcmp.eq.s32.totalorder %v177, %v168
    %vm184 = vcmp.eq.s32.totalorder %v180, %v168
    %v185 = vsel %vm181, 1, 0
    %v186 = vsel %vm182, 1, 0
    %v187 = vsel %vm183, 1, 0
    %v188 = vsel %vm184, 1, 0
    %v189 = vcvt.s32.f32 %v185
    %v190 = vcvt.s32.f32 %v186
    %v191 = vcvt.s32.f32 %v187
    %v192 = vcvt.s32.f32 %v188
    %v193 = vld [vmem:[#allocation2] sm:$0xff]
    %v194 = vld [vmem:[#allocation2 + $0x8] sm:$0xff]
    %v195 = vld [vmem:[#allocation2 + $0x10] sm:$0xff]
    %v196 = vld [vmem:[#allocation2 + $0x18] sm:$0xff]
    %v197 = vld [vmem:[#allocation2 + $0x20] sm:$0xff]
    %v198 = vld [vmem:[#allocation2 + $0x28] sm:$0xff]
    %v199 = vld [vmem:[#allocation2 + $0x30] sm:$0xff]
    %v200 = vld [vmem:[#allocation2 + $0x38] sm:$0xff]
    %v201 = vld [vmem:[#allocation2 + $0x40] sm:$0xff]
    %v202 = vld [vmem:[#allocation2 + $0x48] sm:$0xff]
    %v203 = vld [vmem:[#allocation2 + $0x50] sm:$0xff]
    %v204 = vld [vmem:[#allocation2 + $0x58] sm:$0xff]
    %v205 = vld [vmem:[#allocation2 + $0x60] sm:$0xff]
    %v206 = vld [vmem:[#allocation2 + $0x68] sm:$0xff]
    %v207 = vld [vmem:[#allocation2 + $0x70] sm:$0xff]
    %v208 = vld [vmem:[#allocation2 + $0x78] sm:$0xff]
    %v209 = vld [vmem:[#allocation2 + $0x80] sm:$0xff]
    %v210 = vld [vmem:[#allocation2 + $0x88] sm:$0xff]
    %v211 = vld [vmem:[#allocation2 + $0x90] sm:$0xff]
    %v212 = vld [vmem:[#allocation2 + $0x98] sm:$0xff]
    %v213 = vld [vmem:[#allocation2 + $0xa0] sm:$0xff]
    %v214 = vld [vmem:[#allocation2 + $0xa8] sm:$0xff]
    %v215 = vld [vmem:[#allocation2 + $0xb0] sm:$0xff]
    %v216 = vld [vmem:[#allocation2 + $0xb8] sm:$0xff]
    %v217 = vld [vmem:[#allocation2 + $0xc0] sm:$0xff]
    %v218 = vld [vmem:[#allocation2 + $0xc8] sm:$0xff]
    %v219 = vld [vmem:[#allocation2 + $0xd0] sm:$0xff]
    %v220 = vld [vmem:[#allocation2 + $0xd8] sm:$0xff]
    %v221 = vld [vmem:[#allocation2 + $0xe0] sm:$0xff]
    %v222 = vld [vmem:[#allocation2 + $0xe8] sm:$0xff]
    %v223 = vld [vmem:[#allocation2 + $0xf0] sm:$0xff]
    %v224 = vld [vmem:[#allocation2 + $0xf8] sm:$0xff]
    %225 = vset.pattern.permute.xlu0 1
    %226 = vperm.xlu0 %225, %v163
    %v227 = vpop.permute.xlu0 %226
    %228 = vset.pattern.permute.xlu0 1
    %229 = vperm.xlu0 %228, %v164
    %v230 = vpop.permute.xlu0 %229
    %231 = vset.pattern.permute.xlu0 1
    %232 = vperm.xlu0 %231, %v165
    %v233 = vpop.permute.xlu0 %232
    %234 = vset.pattern.permute.xlu0 1
    %235 = vperm.xlu0 %234, %v166
    %v236 = vpop.permute.xlu0 %235
    %vm237 = vcmp.eq.s32.totalorder %v227, %v168
    %vm238 = vcmp.eq.s32.totalorder %v230, %v168
    %vm239 = vcmp.eq.s32.totalorder %v233, %v168
    %vm240 = vcmp.eq.s32.totalorder %v236, %v168
    %v241 = vsel %vm237, 1, 0
    %v242 = vsel %vm238, 1, 0
    %v243 = vsel %vm239, 1, 0
    %v244 = vsel %vm240, 1, 0
    %v245 = vcvt.s32.f32 %v241
    %v246 = vcvt.s32.f32 %v242
    %v247 = vcvt.s32.f32 %v243
    %v248 = vcvt.s32.f32 %v244
    %s249 = scalar_lea.vmem [#allocation2], 256
    %v250 = vld [vmem:[%s249] sm:$0xff]
    %v251 = vld [vmem:[%s249 + $0x8] sm:$0xff]
    %v252 = vld [vmem:[%s249 + $0x10] sm:$0xff]
    %v253 = vld [vmem:[%s249 + $0x18] sm:$0xff]
    %v254 = vld [vmem:[%s249 + $0x20] sm:$0xff]
    %v255 = vld [vmem:[%s249 + $0x28] sm:$0xff]
    %v256 = vld [vmem:[%s249 + $0x30] sm:$0xff]
    %v257 = vld [vmem:[%s249 + $0x38] sm:$0xff]
    %v258 = vld [vmem:[%s249 + $0x40] sm:$0xff]
    %v259 = vld [vmem:[%s249 + $0x48] sm:$0xff]
    %v260 = vld [vmem:[%s249 + $0x50] sm:$0xff]
    %v261 = vld [vmem:[%s249 + $0x58] sm:$0xff]
    %v262 = vld [vmem:[%s249 + $0x60] sm:$0xff]
    %v263 = vld [vmem:[%s249 + $0x68] sm:$0xff]
    %v264 = vld [vmem:[%s249 + $0x70] sm:$0xff]
    %v265 = vld [vmem:[%s249 + $0x78] sm:$0xff]
    %v266 = vld [vmem:[%s249 + $0x80] sm:$0xff]
    %v267 = vld [vmem:[%s249 + $0x88] sm:$0xff]
    %v268 = vld [vmem:[%s249 + $0x90] sm:$0xff]
    %v269 = vld [vmem:[%s249 + $0x98] sm:$0xff]
    %v270 = vld [vmem:[%s249 + $0xa0] sm:$0xff]
    %v271 = vld [vmem:[%s249 + $0xa8] sm:$0xff]
    %v272 = vld [vmem:[%s249 + $0xb0] sm:$0xff]
    %v273 = vld [vmem:[%s249 + $0xb8] sm:$0xff]
    %v274 = vld [vmem:[%s249 + $0xc0] sm:$0xff]
    %v275 = vld [vmem:[%s249 + $0xc8] sm:$0xff]
    %v276 = vld [vmem:[%s249 + $0xd0] sm:$0xff]
    %v277 = vld [vmem:[%s249 + $0xd8] sm:$0xff]
    %v278 = vld [vmem:[%s249 + $0xe0] sm:$0xff]
    %v279 = vld [vmem:[%s249 + $0xe8] sm:$0xff]
    %v280 = vld [vmem:[%s249 + $0xf0] sm:$0xff]
    %v281 = vld [vmem:[%s249 + $0xf8] sm:$0xff]
    %vm282 = vcmask 523264
    %v284 = vsel %vm282, %v245, 0
    %v287 = vsel %vm282, %v246, 0
    %v290 = vsel %vm282, %v247, 0
    %v293 = vsel %vm282, %v248, 0
    %295 = vmatprep.subr.mxu0 0.0
    %296 = vmatpush1.msra.mxu0 0.0
    %297 = vmatprep.subr.mxu0 0.0
    %298 = vmatpush1.msra.mxu0 0.0
    %299 = vmatprep.subr.mxu0 0.0
    %300 = vmatpush1.msra.mxu0 0.0
    %301 = vmatprep.subr.mxu0 0.0
    %302 = vmatpush1.msra.mxu0 0.0
    %303 = vmatprep.subr.mxu0 0.0
    %304 = vmatpush1.msra.mxu0 0.0
    %305 = vmatprep.subr.mxu0 0.0
    %306 = vmatpush1.msra.mxu0 0.0
    %307 = vmatprep.subr.mxu0 0.0
    %308 = vmatpush1.msra.mxu0 0.0
    %309 = vmatprep.subr.mxu0 0.0
    %310 = vmatpush1.msra.mxu0 0.0
    %311 = vmatprep.subr.mxu0 %v279
    %312 = vmatpush1.msra.mxu0 %v278
    %313 = vmatprep.subr.mxu0 %v275
    %314 = vmatpush1.msra.mxu0 %v274
    %315 = vmatprep.subr.mxu0 %v271
    %316 = vmatpush1.msra.mxu0 %v270
    %317 = vmatprep.subr.mxu0 %v267
    %318 = vmatpush1.msra.mxu0 %v266
    %319 = vmatprep.subr.mxu0 %v263
    %320 = vmatpush1.msra.mxu0 %v262
    %321 = vmatprep.subr.mxu0 %v259
    %322 = vmatpush1.msra.mxu0 %v258
    %323 = vmatprep.subr.mxu0 %v255
    %324 = vmatpush1.msra.mxu0 %v254
    %325 = vmatprep.subr.mxu0 %v251
    %326 = vmatpush1.msra.mxu0 %v250
    %327 = vmatprep.subr.mxu0 0.0
    %328 = vmatpush2.msra.mxu0 0.0
    %329 = vmatprep.subr.mxu0 0.0
    %330 = vmatpush2.msra.mxu0 0.0
    %331 = vmatprep.subr.mxu0 0.0
    %332 = vmatpush2.msra.mxu0 0.0
    %333 = vmatprep.subr.mxu0 0.0
    %334 = vmatpush2.msra.mxu0 0.0
    %335 = vmatprep.subr.mxu0 0.0
    %336 = vmatpush2.msra.mxu0 0.0
    %337 = vmatprep.subr.mxu0 0.0
    %338 = vmatpush2.msra.mxu0 0.0
    %339 = vmatprep.subr.mxu0 0.0
    %340 = vmatpush2.msra.mxu0 0.0
    %341 = vmatprep.subr.mxu0 0.0
    %342 = vmatpush2.msra.mxu0 0.0
    %343 = vmatprep.subr.mxu0 0.0
    %344 = vmatpush2.msra.mxu0 0.0
    %345 = vmatprep.subr.mxu0 0.0
    %346 = vmatpush2.msra.mxu0 0.0
    %347 = vmatprep.subr.mxu0 0.0
    %348 = vmatpush2.msra.mxu0 0.0
    %349 = vmatprep.subr.mxu0 0.0
    %350 = vmatpush2.msra.mxu0 0.0
    %351 = vmatprep.subr.mxu0 0.0
    %352 = vmatpush2.msra.mxu0 0.0
    %353 = vmatprep.subr.mxu0 0.0
    %354 = vmatpush2.msra.mxu0 0.0
    %355 = vmatprep.subr.mxu0 0.0
    %356 = vmatpush2.msra.mxu0 0.0
    %357 = vmatprep.subr.mxu0 0.0
    %358 = vmatpush2.msra.mxu0 0.0
    %359 = vmatprep.mubr.f32.mxu0 0.0
    %360 = vmatmul.mubr.f32.gmra.mxu0 %v284
    %v361 = vpop.f32.mrf.mxu0
    %v362 = vadd.f32 0.0, %v361
    %v363 = vpop.f32.mrf.mxu0
    %v364 = vadd.f32 0.0, %v363
    %365 = vmatprep.mubr.f32.mxu0 0.0
    %366 = vmatmul.mubr.f32.gmra.mxu0 %v287
    %v367 = vpop.f32.mrf.mxu0
    %v368 = vadd.f32 0.0, %v367
    %v369 = vpop.f32.mrf.mxu0
    %v370 = vadd.f32 0.0, %v369
    %371 = vmatprep.mubr.f32.mxu0 0.0
    %372 = vmatmul.mubr.f32.gmra.mxu0 %v290
    %v373 = vpop.f32.mrf.mxu0
    %v374 = vadd.f32 0.0, %v373
    %v375 = vpop.f32.mrf.mxu0
    %v376 = vadd.f32 0.0, %v375
    %377 = vmatprep.mubr.f32.mxu0 0.0
    %378 = vmatmul.mubr.f32.gmra.mxu0 %v293
    %v379 = vpop.f32.mrf.mxu0
    %v380 = vadd.f32 0.0, %v379
    %v381 = vpop.f32.mrf.mxu0
    %v382 = vadd.f32 0.0, %v381
    %383 = vdwg.mxu0
    %384 = vmatprep.subr.mxu0 0.0
    %385 = vmatpush1.msra.mxu0 0.0
    %386 = vmatprep.subr.mxu0 0.0
    %387 = vmatpush1.msra.mxu0 0.0
    %388 = vmatprep.subr.mxu0 0.0
    %389 = vmatpush1.msra.mxu0 0.0
    %390 = vmatprep.subr.mxu0 0.0
    %391 = vmatpush1.msra.mxu0 0.0
    %392 = vmatprep.subr.mxu0 0.0
    %393 = vmatpush1.msra.mxu0 0.0
    %394 = vmatprep.subr.mxu0 0.0
    %395 = vmatpush1.msra.mxu0 0.0
    %396 = vmatprep.subr.mxu0 0.0
    %397 = vmatpush1.msra.mxu0 0.0
    %398 = vmatprep.subr.mxu0 0.0
    %399 = vmatpush1.msra.mxu0 0.0
    %400 = vmatprep.subr.mxu0 %v281
    %401 = vmatpush1.msra.mxu0 %v280
    %402 = vmatprep.subr.mxu0 %v277
    %403 = vmatpush1.msra.mxu0 %v276
    %404 = vmatprep.subr.mxu0 %v273
    %405 = vmatpush1.msra.mxu0 %v272
    %406 = vmatprep.subr.mxu0 %v269
    %407 = vmatpush1.msra.mxu0 %v268
    %408 = vmatprep.subr.mxu0 %v265
    %409 = vmatpush1.msra.mxu0 %v264
    %410 = vmatprep.subr.mxu0 %v261
    %411 = vmatpush1.msra.mxu0 %v260
    %412 = vmatprep.subr.mxu0 %v257
    %413 = vmatpush1.msra.mxu0 %v256
    %414 = vmatprep.subr.mxu0 %v253
    %415 = vmatpush1.msra.mxu0 %v252
    %416 = vmatprep.subr.mxu0 0.0
    %417 = vmatpush2.msra.mxu0 0.0
    %418 = vmatprep.subr.mxu0 0.0
    %419 = vmatpush2.msra.mxu0 0.0
    %420 = vmatprep.subr.mxu0 0.0
    %421 = vmatpush2.msra.mxu0 0.0
    %422 = vmatprep.subr.mxu0 0.0
    %423 = vmatpush2.msra.mxu0 0.0
    %424 = vmatprep.subr.mxu0 0.0
    %425 = vmatpush2.msra.mxu0 0.0
    %426 = vmatprep.subr.mxu0 0.0
    %427 = vmatpush2.msra.mxu0 0.0
    %428 = vmatprep.subr.mxu0 0.0
    %429 = vmatpush2.msra.mxu0 0.0
    %430 = vmatprep.subr.mxu0 0.0
    %431 = vmatpush2.msra.mxu0 0.0
    %432 = vmatprep.subr.mxu0 0.0
    %433 = vmatpush2.msra.mxu0 0.0
    %434 = vmatprep.subr.mxu0 0.0
    %435 = vmatpush2.msra.mxu0 0.0
    %436 = vmatprep.subr.mxu0 0.0
    %437 = vmatpush2.msra.mxu0 0.0
    %438 = vmatprep.subr.mxu0 0.0
    %439 = vmatpush2.msra.mxu0 0.0
    %440 = vmatprep.subr.mxu0 0.0
    %441 = vmatpush2.msra.mxu0 0.0
    %442 = vmatprep.subr.mxu0 0.0
    %443 = vmatpush2.msra.mxu0 0.0
    %444 = vmatprep.subr.mxu0 0.0
    %445 = vmatpush2.msra.mxu0 0.0
    %446 = vmatprep.subr.mxu0 0.0
    %447 = vmatpush2.msra.mxu0 0.0
    %448 = vmatprep.mubr.f32.mxu0 0.0
    %449 = vmatmul.mubr.f32.gmra.mxu0 %v284
    %v450 = vpop.f32.mrf.mxu0
    %v451 = vadd.f32 0.0, %v450
    %v452 = vpop.f32.mrf.mxu0
    %v453 = vadd.f32 0.0, %v452
    %454 = vmatprep.mubr.f32.mxu0 0.0
    %455 = vmatmul.mubr.f32.gmra.mxu0 %v287
    %v456 = vpop.f32.mrf.mxu0
    %v457 = vadd.f32 0.0, %v456
    %v458 = vpop.f32.mrf.mxu0
    %v459 = vadd.f32 0.0, %v458
    %460 = vmatprep.mubr.f32.mxu0 0.0
    %461 = vmatmul.mubr.f32.gmra.mxu0 %v290
    %v462 = vpop.f32.mrf.mxu0
    %v463 = vadd.f32 0.0, %v462
    %v464 = vpop.f32.mrf.mxu0
    %v465 = vadd.f32 0.0, %v464
    %466 = vmatprep.mubr.f32.mxu0 0.0
    %467 = vmatmul.mubr.f32.gmra.mxu0 %v293
    %v468 = vpop.f32.mrf.mxu0
    %v469 = vadd.f32 0.0, %v468
    %v470 = vpop.f32.mrf.mxu0
    %v471 = vadd.f32 0.0, %v470
    %472 = vdwg.mxu0
    %v474 = vsel %vm282, %v189, 0
    %v477 = vsel %vm282, %v190, 0
    %v480 = vsel %vm282, %v191, 0
    %v483 = vsel %vm282, %v192, 0
    %485 = vmatprep.subr.mxu0 0.0
    %486 = vmatpush1.msra.mxu0 0.0
    %487 = vmatprep.subr.mxu0 0.0
    %488 = vmatpush1.msra.mxu0 0.0
    %489 = vmatprep.subr.mxu0 0.0
    %490 = vmatpush1.msra.mxu0 0.0
    %491 = vmatprep.subr.mxu0 0.0
    %492 = vmatpush1.msra.mxu0 0.0
    %493 = vmatprep.subr.mxu0 0.0
    %494 = vmatpush1.msra.mxu0 0.0
    %495 = vmatprep.subr.mxu0 0.0
    %496 = vmatpush1.msra.mxu0 0.0
    %497 = vmatprep.subr.mxu0 0.0
    %498 = vmatpush1.msra.mxu0 0.0
    %499 = vmatprep.subr.mxu0 0.0
    %500 = vmatpush1.msra.mxu0 0.0
    %501 = vmatprep.subr.mxu0 %v222
    %502 = vmatpush1.msra.mxu0 %v221
    %503 = vmatprep.subr.mxu0 %v218
    %504 = vmatpush1.msra.mxu0 %v217
    %505 = vmatprep.subr.mxu0 %v214
    %506 = vmatpush1.msra.mxu0 %v213
    %507 = vmatprep.subr.mxu0 %v210
    %508 = vmatpush1.msra.mxu0 %v209
    %509 = vmatprep.subr.mxu0 %v206
    %510 = vmatpush1.msra.mxu0 %v205
    %511 = vmatprep.subr.mxu0 %v202
    %512 = vmatpush1.msra.mxu0 %v201
    %513 = vmatprep.subr.mxu0 %v198
    %514 = vmatpush1.msra.mxu0 %v197
    %515 = vmatprep.subr.mxu0 %v194
    %516 = vmatpush1.msra.mxu0 %v193
    %517 = vmatprep.subr.mxu0 0.0
    %518 = vmatpush2.msra.mxu0 0.0
    %519 = vmatprep.subr.mxu0 0.0
    %520 = vmatpush2.msra.mxu0 0.0
    %521 = vmatprep.subr.mxu0 0.0
    %522 = vmatpush2.msra.mxu0 0.0
    %523 = vmatprep.subr.mxu0 0.0
    %524 = vmatpush2.msra.mxu0 0.0
    %525 = vmatprep.subr.mxu0 0.0
    %526 = vmatpush2.msra.mxu0 0.0
    %527 = vmatprep.subr.mxu0 0.0
    %528 = vmatpush2.msra.mxu0 0.0
    %529 = vmatprep.subr.mxu0 0.0
    %530 = vmatpush2.msra.mxu0 0.0
    %531 = vmatprep.subr.mxu0 0.0
    %532 = vmatpush2.msra.mxu0 0.0
    %533 = vmatprep.subr.mxu0 0.0
    %534 = vmatpush2.msra.mxu0 0.0
    %535 = vmatprep.subr.mxu0 0.0
    %536 = vmatpush2.msra.mxu0 0.0
    %537 = vmatprep.subr.mxu0 0.0
    %538 = vmatpush2.msra.mxu0 0.0
    %539 = vmatprep.subr.mxu0 0.0
    %540 = vmatpush2.msra.mxu0 0.0
    %541 = vmatprep.subr.mxu0 0.0
    %542 = vmatpush2.msra.mxu0 0.0
    %543 = vmatprep.subr.mxu0 0.0
    %544 = vmatpush2.msra.mxu0 0.0
    %545 = vmatprep.subr.mxu0 0.0
    %546 = vmatpush2.msra.mxu0 0.0
    %547 = vmatprep.subr.mxu0 0.0
    %548 = vmatpush2.msra.mxu0 0.0
    %549 = vmatprep.mubr.f32.mxu0 0.0
    %550 = vmatmul.mubr.f32.gmra.mxu0 %v474
    %v551 = vpop.f32.mrf.mxu0
    %v552 = vadd.f32 %v362, %v551
    %v553 = vpop.f32.mrf.mxu0
    %v554 = vadd.f32 %v364, %v553
    %555 = vmatprep.mubr.f32.mxu0 0.0
    %556 = vmatmul.mubr.f32.gmra.mxu0 %v477
    %v557 = vpop.f32.mrf.mxu0
    %v558 = vadd.f32 %v368, %v557
    %v559 = vpop.f32.mrf.mxu0
    %v560 = vadd.f32 %v370, %v559
    %561 = vmatprep.mubr.f32.mxu0 0.0
    %562 = vmatmul.mubr.f32.gmra.mxu0 %v480
    %v563 = vpop.f32.mrf.mxu0
    %v564 = vadd.f32 %v374, %v563
    %v565 = vpop.f32.mrf.mxu0
    %v566 = vadd.f32 %v376, %v565
    %567 = vmatprep.mubr.f32.mxu0 0.0
    %568 = vmatmul.mubr.f32.gmra.mxu0 %v483
    %v569 = vpop.f32.mrf.mxu0
    %v570 = vadd.f32 %v380, %v569
    %v571 = vpop.f32.mrf.mxu0
    %v572 = vadd.f32 %v382, %v571
    %573 = vdwg.mxu0
    %574 = vmatprep.subr.mxu0 0.0
    %575 = vmatpush1.msra.mxu0 0.0
    %576 = vmatprep.subr.mxu0 0.0
    %577 = vmatpush1.msra.mxu0 0.0
    %578 = vmatprep.subr.mxu0 0.0
    %579 = vmatpush1.msra.mxu0 0.0
    %580 = vmatprep.subr.mxu0 0.0
    %581 = vmatpush1.msra.mxu0 0.0
    %582 = vmatprep.subr.mxu0 0.0
    %583 = vmatpush1.msra.mxu0 0.0
    %584 = vmatprep.subr.mxu0 0.0
    %585 = vmatpush1.msra.mxu0 0.0
    %586 = vmatprep.subr.mxu0 0.0
    %587 = vmatpush1.msra.mxu0 0.0
    %588 = vmatprep.subr.mxu0 0.0
    %589 = vmatpush1.msra.mxu0 0.0
    %590 = vmatprep.subr.mxu0 %v224
    %591 = vmatpush1.msra.mxu0 %v223
    %592 = vmatprep.subr.mxu0 %v220
    %593 = vmatpush1.msra.mxu0 %v219
    %594 = vmatprep.subr.mxu0 %v216
    %595 = vmatpush1.msra.mxu0 %v215
    %596 = vmatprep.subr.mxu0 %v212
    %597 = vmatpush1.msra.mxu0 %v211
    %598 = vmatprep.subr.mxu0 %v208
    %599 = vmatpush1.msra.mxu0 %v207
    %600 = vmatprep.subr.mxu0 %v204
    %601 = vmatpush1.msra.mxu0 %v203
    %602 = vmatprep.subr.mxu0 %v200
    %603 = vmatpush1.msra.mxu0 %v199
    %604 = vmatprep.subr.mxu0 %v196
    %605 = vmatpush1.msra.mxu0 %v195
    %606 = vmatprep.subr.mxu0 0.0
    %607 = vmatpush2.msra.mxu0 0.0
    %608 = vmatprep.subr.mxu0 0.0
    %609 = vmatpush2.msra.mxu0 0.0
    %610 = vmatprep.subr.mxu0 0.0
    %611 = vmatpush2.msra.mxu0 0.0
    %612 = vmatprep.subr.mxu0 0.0
    %613 = vmatpush2.msra.mxu0 0.0
    %614 = vmatprep.subr.mxu0 0.0
    %615 = vmatpush2.msra.mxu0 0.0
    %616 = vmatprep.subr.mxu0 0.0
    %617 = vmatpush2.msra.mxu0 0.0
    %618 = vmatprep.subr.mxu0 0.0
    %619 = vmatpush2.msra.mxu0 0.0
    %620 = vmatprep.subr.mxu0 0.0
    %621 = vmatpush2.msra.mxu0 0.0
    %622 = vmatprep.subr.mxu0 0.0
    %623 = vmatpush2.msra.mxu0 0.0
    %624 = vmatprep.subr.mxu0 0.0
    %625 = vmatpush2.msra.mxu0 0.0
    %626 = vmatprep.subr.mxu0 0.0
    %627 = vmatpush2.msra.mxu0 0.0
    %628 = vmatprep.subr.mxu0 0.0
    %629 = vmatpush2.msra.mxu0 0.0
    %630 = vmatprep.subr.mxu0 0.0
    %631 = vmatpush2.msra.mxu0 0.0
    %632 = vmatprep.subr.mxu0 0.0
    %633 = vmatpush2.msra.mxu0 0.0
    %634 = vmatprep.subr.mxu0 0.0
    %635 = vmatpush2.msra.mxu0 0.0
    %636 = vmatprep.subr.mxu0 0.0
    %637 = vmatpush2.msra.mxu0 0.0
    %638 = vmatprep.mubr.f32.mxu0 0.0
    %639 = vmatmul.mubr.f32.gmra.mxu0 %v474
    %v640 = vpop.f32.mrf.mxu0
    %v641 = vadd.f32 %v451, %v640
    %v642 = vpop.f32.mrf.mxu0
    %v643 = vadd.f32 %v453, %v642
    %644 = vmatprep.mubr.f32.mxu0 0.0
    %645 = vmatmul.mubr.f32.gmra.mxu0 %v477
    %v646 = vpop.f32.mrf.mxu0
    %v647 = vadd.f32 %v457, %v646
    %v648 = vpop.f32.mrf.mxu0
    %v649 = vadd.f32 %v459, %v648
    %650 = vmatprep.mubr.f32.mxu0 0.0
    %651 = vmatmul.mubr.f32.gmra.mxu0 %v480
    %v652 = vpop.f32.mrf.mxu0
    %v653 = vadd.f32 %v463, %v652
    %v654 = vpop.f32.mrf.mxu0
    %v655 = vadd.f32 %v465, %v654
    %656 = vmatprep.mubr.f32.mxu0 0.0
    %657 = vmatmul.mubr.f32.gmra.mxu0 %v483
    %v658 = vpop.f32.mrf.mxu0
    %v659 = vadd.f32 %v469, %v658
    %v660 = vpop.f32.mrf.mxu0
    %v661 = vadd.f32 %v471, %v660
    %662 = vdwg.mxu0
    %663 = vset.pattern.permute.xlu0 2
    %664 = vperm.xlu0 %663, %v163
    %v665 = vpop.permute.xlu0 %664
    %666 = vset.pattern.permute.xlu0 2
    %667 = vperm.xlu0 %666, %v164
    %v668 = vpop.permute.xlu0 %667
    %669 = vset.pattern.permute.xlu0 2
    %670 = vperm.xlu0 %669, %v165
    %v671 = vpop.permute.xlu0 %670
    %672 = vset.pattern.permute.xlu0 2
    %673 = vperm.xlu0 %672, %v166
    %v674 = vpop.permute.xlu0 %673
    %vm675 = vcmp.eq.s32.totalorder %v665, %v168
    %vm676 = vcmp.eq.s32.totalorder %v668, %v168
    %vm677 = vcmp.eq.s32.totalorder %v671, %v168
    %vm678 = vcmp.eq.s32.totalorder %v674, %v168
    %v679 = vsel %vm675, 1, 0
    %v680 = vsel %vm676, 1, 0
    %v681 = vsel %vm677, 1, 0
    %v682 = vsel %vm678, 1, 0
    %v683 = vcvt.s32.f32 %v679
    %v684 = vcvt.s32.f32 %v680
    %v685 = vcvt.s32.f32 %v681
    %v686 = vcvt.s32.f32 %v682
    %s687 = scalar_lea.vmem [#allocation2], 512
    %v688 = vld [vmem:[%s687] sm:$0xff]
    %v689 = vld [vmem:[%s687 + $0x8] sm:$0xff]
    %v690 = vld [vmem:[%s687 + $0x10] sm:$0xff]
    %v691 = vld [vmem:[%s687 + $0x18] sm:$0xff]
    %v692 = vld [vmem:[%s687 + $0x20] sm:$0xff]
    %v693 = vld [vmem:[%s687 + $0x28] sm:$0xff]
    %v694 = vld [vmem:[%s687 + $0x30] sm:$0xff]
    %v695 = vld [vmem:[%s687 + $0x38] sm:$0xff]
    %v696 = vld [vmem:[%s687 + $0x40] sm:$0xff]
    %v697 = vld [vmem:[%s687 + $0x48] sm:$0xff]
    %v698 = vld [vmem:[%s687 + $0x50] sm:$0xff]
    %v699 = vld [vmem:[%s687 + $0x58] sm:$0xff]
    %v700 = vld [vmem:[%s687 + $0x60] sm:$0xff]
    %v701 = vld [vmem:[%s687 + $0x68] sm:$0xff]
    %v702 = vld [vmem:[%s687 + $0x70] sm:$0xff]
    %v703 = vld [vmem:[%s687 + $0x78] sm:$0xff]
    %v704 = vld [vmem:[%s687 + $0x80] sm:$0xff]
    %v705 = vld [vmem:[%s687 + $0x88] sm:$0xff]
    %v706 = vld [vmem:[%s687 + $0x90] sm:$0xff]
    %v707 = vld [vmem:[%s687 + $0x98] sm:$0xff]
    %v708 = vld [vmem:[%s687 + $0xa0] sm:$0xff]
    %v709 = vld [vmem:[%s687 + $0xa8] sm:$0xff]
    %v710 = vld [vmem:[%s687 + $0xb0] sm:$0xff]
    %v711 = vld [vmem:[%s687 + $0xb8] sm:$0xff]
    %v712 = vld [vmem:[%s687 + $0xc0] sm:$0xff]
    %v713 = vld [vmem:[%s687 + $0xc8] sm:$0xff]
    %v714 = vld [vmem:[%s687 + $0xd0] sm:$0xff]
    %v715 = vld [vmem:[%s687 + $0xd8] sm:$0xff]
    %v716 = vld [vmem:[%s687 + $0xe0] sm:$0xff]
    %v717 = vld [vmem:[%s687 + $0xe8] sm:$0xff]
    %v718 = vld [vmem:[%s687 + $0xf0] sm:$0xff]
    %v719 = vld [vmem:[%s687 + $0xf8] sm:$0xff]
    %v721 = vsel %vm282, %v683, 0
    %v724 = vsel %vm282, %v684, 0
    %v727 = vsel %vm282, %v685, 0
    %v730 = vsel %vm282, %v686, 0
    %732 = vmatprep.subr.mxu0 0.0
    %733 = vmatpush1.msra.mxu0 0.0
    %734 = vmatprep.subr.mxu0 0.0
    %735 = vmatpush1.msra.mxu0 0.0
    %736 = vmatprep.subr.mxu0 0.0
    %737 = vmatpush1.msra.mxu0 0.0
    %738 = vmatprep.subr.mxu0 0.0
    %739 = vmatpush1.msra.mxu0 0.0
    %740 = vmatprep.subr.mxu0 0.0
    %741 = vmatpush1.msra.mxu0 0.0
    %742 = vmatprep.subr.mxu0 0.0
    %743 = vmatpush1.msra.mxu0 0.0
    %744 = vmatprep.subr.mxu0 0.0
    %745 = vmatpush1.msra.mxu0 0.0
    %746 = vmatprep.subr.mxu0 0.0
    %747 = vmatpush1.msra.mxu0 0.0
    %748 = vmatprep.subr.mxu0 %v717
    %749 = vmatpush1.msra.mxu0 %v716
    %750 = vmatprep.subr.mxu0 %v713
    %751 = vmatpush1.msra.mxu0 %v712
    %752 = vmatprep.subr.mxu0 %v709
    %753 = vmatpush1.msra.mxu0 %v708
    %754 = vmatprep.subr.mxu0 %v705
    %755 = vmatpush1.msra.mxu0 %v704
    %756 = vmatprep.subr.mxu0 %v701
    %757 = vmatpush1.msra.mxu0 %v700
    %758 = vmatprep.subr.mxu0 %v697
    %759 = vmatpush1.msra.mxu0 %v696
    %760 = vmatprep.subr.mxu0 %v693
    %761 = vmatpush1.msra.mxu0 %v692
    %762 = vmatprep.subr.mxu0 %v689
    %763 = vmatpush1.msra.mxu0 %v688
    %764 = vmatprep.subr.mxu0 0.0
    %765 = vmatpush2.msra.mxu0 0.0
    %766 = vmatprep.subr.mxu0 0.0
    %767 = vmatpush2.msra.mxu0 0.0
    %768 = vmatprep.subr.mxu0 0.0
    %769 = vmatpush2.msra.mxu0 0.0
    %770 = vmatprep.subr.mxu0 0.0
    %771 = vmatpush2.msra.mxu0 0.0
    %772 = vmatprep.subr.mxu0 0.0
    %773 = vmatpush2.msra.mxu0 0.0
    %774 = vmatprep.subr.mxu0 0.0
    %775 = vmatpush2.msra.mxu0 0.0
    %776 = vmatprep.subr.mxu0 0.0
    %777 = vmatpush2.msra.mxu0 0.0
    %778 = vmatprep.subr.mxu0 0.0
    %779 = vmatpush2.msra.mxu0 0.0
    %780 = vmatprep.subr.mxu0 0.0
    %781 = vmatpush2.msra.mxu0 0.0
    %782 = vmatprep.subr.mxu0 0.0
    %783 = vmatpush2.msra.mxu0 0.0
    %784 = vmatprep.subr.mxu0 0.0
    %785 = vmatpush2.msra.mxu0 0.0
    %786 = vmatprep.subr.mxu0 0.0
    %787 = vmatpush2.msra.mxu0 0.0
    %788 = vmatprep.subr.mxu0 0.0
    %789 = vmatpush2.msra.mxu0 0.0
    %790 = vmatprep.subr.mxu0 0.0
    %791 = vmatpush2.msra.mxu0 0.0
    %792 = vmatprep.subr.mxu0 0.0
    %793 = vmatpush2.msra.mxu0 0.0
    %794 = vmatprep.subr.mxu0 0.0
    %795 = vmatpush2.msra.mxu0 0.0
    %796 = vmatprep.mubr.f32.mxu0 0.0
    %797 = vmatmul.mubr.f32.gmra.mxu0 %v721
    %v798 = vpop.f32.mrf.mxu0
    %v799 = vadd.f32 0.0, %v798
    %v800 = vpop.f32.mrf.mxu0
    %v801 = vadd.f32 0.0, %v800
    %802 = vmatprep.mubr.f32.mxu0 0.0
    %803 = vmatmul.mubr.f32.gmra.mxu0 %v724
    %v804 = vpop.f32.mrf.mxu0
    %v805 = vadd.f32 0.0, %v804
    %v806 = vpop.f32.mrf.mxu0
    %v807 = vadd.f32 0.0, %v806
    %808 = vmatprep.mubr.f32.mxu0 0.0
    %809 = vmatmul.mubr.f32.gmra.mxu0 %v727
    %v810 = vpop.f32.mrf.mxu0
    %v811 = vadd.f32 0.0, %v810
    %v812 = vpop.f32.mrf.mxu0
    %v813 = vadd.f32 0.0, %v812
    %814 = vmatprep.mubr.f32.mxu0 0.0
    %815 = vmatmul.mubr.f32.gmra.mxu0 %v730
    %v816 = vpop.f32.mrf.mxu0
    %v817 = vadd.f32 0.0, %v816
    %v818 = vpop.f32.mrf.mxu0
    %v819 = vadd.f32 0.0, %v818
    %820 = vdwg.mxu0
    %821 = vmatprep.subr.mxu0 0.0
    %822 = vmatpush1.msra.mxu0 0.0
    %823 = vmatprep.subr.mxu0 0.0
    %824 = vmatpush1.msra.mxu0 0.0
    %825 = vmatprep.subr.mxu0 0.0
    %826 = vmatpush1.msra.mxu0 0.0
    %827 = vmatprep.subr.mxu0 0.0
    %828 = vmatpush1.msra.mxu0 0.0
    %829 = vmatprep.subr.mxu0 0.0
    %830 = vmatpush1.msra.mxu0 0.0
    %831 = vmatprep.subr.mxu0 0.0
    %832 = vmatpush1.msra.mxu0 0.0
    %833 = vmatprep.subr.mxu0 0.0
    %834 = vmatpush1.msra.mxu0 0.0
    %835 = vmatprep.subr.mxu0 0.0
    %836 = vmatpush1.msra.mxu0 0.0
    %837 = vmatprep.subr.mxu0 %v719
    %838 = vmatpush1.msra.mxu0 %v718
    %839 = vmatprep.subr.mxu0 %v715
    %840 = vmatpush1.msra.mxu0 %v714
    %841 = vmatprep.subr.mxu0 %v711
    %842 = vmatpush1.msra.mxu0 %v710
    %843 = vmatprep.subr.mxu0 %v707
    %844 = vmatpush1.msra.mxu0 %v706
    %845 = vmatprep.subr.mxu0 %v703
    %846 = vmatpush1.msra.mxu0 %v702
    %847 = vmatprep.subr.mxu0 %v699
    %848 = vmatpush1.msra.mxu0 %v698
    %849 = vmatprep.subr.mxu0 %v695
    %850 = vmatpush1.msra.mxu0 %v694
    %851 = vmatprep.subr.mxu0 %v691
    %852 = vmatpush1.msra.mxu0 %v690
    %853 = vmatprep.subr.mxu0 0.0
    %854 = vmatpush2.msra.mxu0 0.0
    %855 = vmatprep.subr.mxu0 0.0
    %856 = vmatpush2.msra.mxu0 0.0
    %857 = vmatprep.subr.mxu0 0.0
    %858 = vmatpush2.msra.mxu0 0.0
    %859 = vmatprep.subr.mxu0 0.0
    %860 = vmatpush2.msra.mxu0 0.0
    %861 = vmatprep.subr.mxu0 0.0
    %862 = vmatpush2.msra.mxu0 0.0
    %863 = vmatprep.subr.mxu0 0.0
    %864 = vmatpush2.msra.mxu0 0.0
    %865 = vmatprep.subr.mxu0 0.0
    %866 = vmatpush2.msra.mxu0 0.0
    %867 = vmatprep.subr.mxu0 0.0
    %868 = vmatpush2.msra.mxu0 0.0
    %869 = vmatprep.subr.mxu0 0.0
    %870 = vmatpush2.msra.mxu0 0.0
    %871 = vmatprep.subr.mxu0 0.0
    %872 = vmatpush2.msra.mxu0 0.0
    %873 = vmatprep.subr.mxu0 0.0
    %874 = vmatpush2.msra.mxu0 0.0
    %875 = vmatprep.subr.mxu0 0.0
    %876 = vmatpush2.msra.mxu0 0.0
    %877 = vmatprep.subr.mxu0 0.0
    %878 = vmatpush2.msra.mxu0 0.0
    %879 = vmatprep.subr.mxu0 0.0
    %880 = vmatpush2.msra.mxu0 0.0
    %881 = vmatprep.subr.mxu0 0.0
    %882 = vmatpush2.msra.mxu0 0.0
    %883 = vmatprep.subr.mxu0 0.0
    %884 = vmatpush2.msra.mxu0 0.0
    %885 = vmatprep.mubr.f32.mxu0 0.0
    %886 = vmatmul.mubr.f32.gmra.mxu0 %v721
    %v887 = vpop.f32.mrf.mxu0
    %v888 = vadd.f32 0.0, %v887
    %v889 = vpop.f32.mrf.mxu0
    %v890 = vadd.f32 0.0, %v889
    %891 = vmatprep.mubr.f32.mxu0 0.0
    %892 = vmatmul.mubr.f32.gmra.mxu0 %v724
    %v893 = vpop.f32.mrf.mxu0
    %v894 = vadd.f32 0.0, %v893
    %v895 = vpop.f32.mrf.mxu0
    %v896 = vadd.f32 0.0, %v895
    %897 = vmatprep.mubr.f32.mxu0 0.0
    %898 = vmatmul.mubr.f32.gmra.mxu0 %v727
    %v899 = vpop.f32.mrf.mxu0
    %v900 = vadd.f32 0.0, %v899
    %v901 = vpop.f32.mrf.mxu0
    %v902 = vadd.f32 0.0, %v901
    %903 = vmatprep.mubr.f32.mxu0 0.0
    %904 = vmatmul.mubr.f32.gmra.mxu0 %v730
    %v905 = vpop.f32.mrf.mxu0
    %v906 = vadd.f32 0.0, %v905
    %v907 = vpop.f32.mrf.mxu0
    %v908 = vadd.f32 0.0, %v907
    %909 = vdwg.mxu0
    %v910 = vadd.f32 %v552, %v799
    %v911 = vadd.f32 %v554, %v801
    %v912 = vadd.f32 %v641, %v888
    %v913 = vadd.f32 %v643, %v890
    %v914 = vadd.f32 %v558, %v805
    %v915 = vadd.f32 %v560, %v807
    %v916 = vadd.f32 %v647, %v894
    %v917 = vadd.f32 %v649, %v896
    %v918 = vadd.f32 %v564, %v811
    %v919 = vadd.f32 %v566, %v813
    %v920 = vadd.f32 %v653, %v900
    %v921 = vadd.f32 %v655, %v902
    %v922 = vadd.f32 %v570, %v817
    %v923 = vadd.f32 %v572, %v819
    %v924 = vadd.f32 %v659, %v906
    %v925 = vadd.f32 %v661, %v908
    %926 = vset.pattern.permute.xlu0 3
    %927 = vperm.xlu0 %926, %v163
    %v928 = vpop.permute.xlu0 %927
    %929 = vset.pattern.permute.xlu0 3
    %930 = vperm.xlu0 %929, %v164
    %v931 = vpop.permute.xlu0 %930
    %932 = vset.pattern.permute.xlu0 3
    %933 = vperm.xlu0 %932, %v165
    %v934 = vpop.permute.xlu0 %933
    %935 = vset.pattern.permute.xlu0 3
    %936 = vperm.xlu0 %935, %v166
    %v937 = vpop.permute.xlu0 %936
    %vm938 = vcmp.eq.s32.totalorder %v928, %v168
    %vm939 = vcmp.eq.s32.totalorder %v931, %v168
    %vm940 = vcmp.eq.s32.totalorder %v934, %v168
    %vm941 = vcmp.eq.s32.totalorder %v937, %v168
    %v942 = vsel %vm938, 1, 0
    %v943 = vsel %vm939, 1, 0
    %v944 = vsel %vm940, 1, 0
    %v945 = vsel %vm941, 1, 0
    %v946 = vcvt.s32.f32 %v942
    %v947 = vcvt.s32.f32 %v943
    %v948 = vcvt.s32.f32 %v944
    %v949 = vcvt.s32.f32 %v945
    %s950 = scalar_lea.vmem [#allocation2], 768
    %v951 = vld [vmem:[%s950] sm:$0xff]
    %v952 = vld [vmem:[%s950 + $0x8] sm:$0xff]
    %v953 = vld [vmem:[%s950 + $0x10] sm:$0xff]
    %v954 = vld [vmem:[%s950 + $0x18] sm:$0xff]
    %v955 = vld [vmem:[%s950 + $0x20] sm:$0xff]
    %v956 = vld [vmem:[%s950 + $0x28] sm:$0xff]
    %v957 = vld [vmem:[%s950 + $0x30] sm:$0xff]
    %v958 = vld [vmem:[%s950 + $0x38] sm:$0xff]
    %v959 = vld [vmem:[%s950 + $0x40] sm:$0xff]
    %v960 = vld [vmem:[%s950 + $0x48] sm:$0xff]
    %v961 = vld [vmem:[%s950 + $0x50] sm:$0xff]
    %v962 = vld [vmem:[%s950 + $0x58] sm:$0xff]
    %v963 = vld [vmem:[%s950 + $0x60] sm:$0xff]
    %v964 = vld [vmem:[%s950 + $0x68] sm:$0xff]
    %v965 = vld [vmem:[%s950 + $0x70] sm:$0xff]
    %v966 = vld [vmem:[%s950 + $0x78] sm:$0xff]
    %v967 = vld [vmem:[%s950 + $0x80] sm:$0xff]
    %v968 = vld [vmem:[%s950 + $0x88] sm:$0xff]
    %v969 = vld [vmem:[%s950 + $0x90] sm:$0xff]
    %v970 = vld [vmem:[%s950 + $0x98] sm:$0xff]
    %v971 = vld [vmem:[%s950 + $0xa0] sm:$0xff]
    %v972 = vld [vmem:[%s950 + $0xa8] sm:$0xff]
    %v973 = vld [vmem:[%s950 + $0xb0] sm:$0xff]
    %v974 = vld [vmem:[%s950 + $0xb8] sm:$0xff]
    %v975 = vld [vmem:[%s950 + $0xc0] sm:$0xff]
    %v976 = vld [vmem:[%s950 + $0xc8] sm:$0xff]
    %v977 = vld [vmem:[%s950 + $0xd0] sm:$0xff]
    %v978 = vld [vmem:[%s950 + $0xd8] sm:$0xff]
    %v979 = vld [vmem:[%s950 + $0xe0] sm:$0xff]
    %v980 = vld [vmem:[%s950 + $0xe8] sm:$0xff]
    %v981 = vld [vmem:[%s950 + $0xf0] sm:$0xff]
    %v982 = vld [vmem:[%s950 + $0xf8] sm:$0xff]
    %v984 = vsel %vm282, %v946, 0
    %v987 = vsel %vm282, %v947, 0
    %v990 = vsel %vm282, %v948, 0
    %v993 = vsel %vm282, %v949, 0
    %995 = vmatprep.subr.mxu0 0.0
    %996 = vmatpush1.msra.mxu0 0.0
    %997 = vmatprep.subr.mxu0 0.0
    %998 = vmatpush1.msra.mxu0 0.0
    %999 = vmatprep.subr.mxu0 0.0
    %1000 = vmatpush1.msra.mxu0 0.0
    %1001 = vmatprep.subr.mxu0 0.0
    %1002 = vmatpush1.msra.mxu0 0.0
    %1003 = vmatprep.subr.mxu0 0.0
    %1004 = vmatpush1.msra.mxu0 0.0
    %1005 = vmatprep.subr.mxu0 0.0
    %1006 = vmatpush1.msra.mxu0 0.0
    %1007 = vmatprep.subr.mxu0 0.0
    %1008 = vmatpush1.msra.mxu0 0.0
    %1009 = vmatprep.subr.mxu0 0.0
    %1010 = vmatpush1.msra.mxu0 0.0
    %1011 = vmatprep.subr.mxu0 %v980
    %1012 = vmatpush1.msra.mxu0 %v979
    %1013 = vmatprep.subr.mxu0 %v976
    %1014 = vmatpush1.msra.mxu0 %v975
    %1015 = vmatprep.subr.mxu0 %v972
    %1016 = vmatpush1.msra.mxu0 %v971
    %1017 = vmatprep.subr.mxu0 %v968
    %1018 = vmatpush1.msra.mxu0 %v967
    %1019 = vmatprep.subr.mxu0 %v964
    %1020 = vmatpush1.msra.mxu0 %v963
    %1021 = vmatprep.subr.mxu0 %v960
    %1022 = vmatpush1.msra.mxu0 %v959
    %1023 = vmatprep.subr.mxu0 %v956
    %1024 = vmatpush1.msra.mxu0 %v955
    %1025 = vmatprep.subr.mxu0 %v952
    %1026 = vmatpush1.msra.mxu0 %v951
    %1027 = vmatprep.subr.mxu0 0.0
    %1028 = vmatpush2.msra.mxu0 0.0
    %1029 = vmatprep.subr.mxu0 0.0
    %1030 = vmatpush2.msra.mxu0 0.0
    %1031 = vmatprep.subr.mxu0 0.0
    %1032 = vmatpush2.msra.mxu0 0.0
    %1033 = vmatprep.subr.mxu0 0.0
    %1034 = vmatpush2.msra.mxu0 0.0
    %1035 = vmatprep.subr.mxu0 0.0
    %1036 = vmatpush2.msra.mxu0 0.0
    %1037 = vmatprep.subr.mxu0 0.0
    %1038 = vmatpush2.msra.mxu0 0.0
    %1039 = vmatprep.subr.mxu0 0.0
    %1040 = vmatpush2.msra.mxu0 0.0
    %1041 = vmatprep.subr.mxu0 0.0
    %1042 = vmatpush2.msra.mxu0 0.0
    %1043 = vmatprep.subr.mxu0 0.0
    %1044 = vmatpush2.msra.mxu0 0.0
    %1045 = vmatprep.subr.mxu0 0.0
    %1046 = vmatpush2.msra.mxu0 0.0
    %1047 = vmatprep.subr.mxu0 0.0
    %1048 = vmatpush2.msra.mxu0 0.0
    %1049 = vmatprep.subr.mxu0 0.0
    %1050 = vmatpush2.msra.mxu0 0.0
    %1051 = vmatprep.subr.mxu0 0.0
    %1052 = vmatpush2.msra.mxu0 0.0
    %1053 = vmatprep.subr.mxu0 0.0
    %1054 = vmatpush2.msra.mxu0 0.0
    %1055 = vmatprep.subr.mxu0 0.0
    %1056 = vmatpush2.msra.mxu0 0.0
    %1057 = vmatprep.subr.mxu0 0.0
    %1058 = vmatpush2.msra.mxu0 0.0
    %1059 = vmatprep.mubr.f32.mxu0 0.0
    %1060 = vmatmul.mubr.f32.gmra.mxu0 %v984
    %v1061 = vpop.f32.mrf.mxu0
    %v1062 = vadd.f32 0.0, %v1061
    %v1063 = vpop.f32.mrf.mxu0
    %v1064 = vadd.f32 0.0, %v1063
    %1065 = vmatprep.mubr.f32.mxu0 0.0
    %1066 = vmatmul.mubr.f32.gmra.mxu0 %v987
    %v1067 = vpop.f32.mrf.mxu0
    %v1068 = vadd.f32 0.0, %v1067
    %v1069 = vpop.f32.mrf.mxu0
    %v1070 = vadd.f32 0.0, %v1069
    %1071 = vmatprep.mubr.f32.mxu0 0.0
    %1072 = vmatmul.mubr.f32.gmra.mxu0 %v990
    %v1073 = vpop.f32.mrf.mxu0
    %v1074 = vadd.f32 0.0, %v1073
    %v1075 = vpop.f32.mrf.mxu0
    %v1076 = vadd.f32 0.0, %v1075
    %1077 = vmatprep.mubr.f32.mxu0 0.0
    %1078 = vmatmul.mubr.f32.gmra.mxu0 %v993
    %v1079 = vpop.f32.mrf.mxu0
    %v1080 = vadd.f32 0.0, %v1079
    %v1081 = vpop.f32.mrf.mxu0
    %v1082 = vadd.f32 0.0, %v1081
    %1083 = vdwg.mxu0
    %1084 = vmatprep.subr.mxu0 0.0
    %1085 = vmatpush1.msra.mxu0 0.0
    %1086 = vmatprep.subr.mxu0 0.0
    %1087 = vmatpush1.msra.mxu0 0.0
    %1088 = vmatprep.subr.mxu0 0.0
    %1089 = vmatpush1.msra.mxu0 0.0
    %1090 = vmatprep.subr.mxu0 0.0
    %1091 = vmatpush1.msra.mxu0 0.0
    %1092 = vmatprep.subr.mxu0 0.0
    %1093 = vmatpush1.msra.mxu0 0.0
    %1094 = vmatprep.subr.mxu0 0.0
    %1095 = vmatpush1.msra.mxu0 0.0
    %1096 = vmatprep.subr.mxu0 0.0
    %1097 = vmatpush1.msra.mxu0 0.0
    %1098 = vmatprep.subr.mxu0 0.0
    %1099 = vmatpush1.msra.mxu0 0.0
    %1100 = vmatprep.subr.mxu0 %v982
    %1101 = vmatpush1.msra.mxu0 %v981
    %1102 = vmatprep.subr.mxu0 %v978
    %1103 = vmatpush1.msra.mxu0 %v977
    %1104 = vmatprep.subr.mxu0 %v974
    %1105 = vmatpush1.msra.mxu0 %v973
    %1106 = vmatprep.subr.mxu0 %v970
    %1107 = vmatpush1.msra.mxu0 %v969
    %1108 = vmatprep.subr.mxu0 %v966
    %1109 = vmatpush1.msra.mxu0 %v965
    %1110 = vmatprep.subr.mxu0 %v962
    %1111 = vmatpush1.msra.mxu0 %v961
    %1112 = vmatprep.subr.mxu0 %v958
    %1113 = vmatpush1.msra.mxu0 %v957
    %1114 = vmatprep.subr.mxu0 %v954
    %1115 = vmatpush1.msra.mxu0 %v953
    %1116 = vmatprep.subr.mxu0 0.0
    %1117 = vmatpush2.msra.mxu0 0.0
    %1118 = vmatprep.subr.mxu0 0.0
    %1119 = vmatpush2.msra.mxu0 0.0
    %1120 = vmatprep.subr.mxu0 0.0
    %1121 = vmatpush2.msra.mxu0 0.0
    %1122 = vmatprep.subr.mxu0 0.0
    %1123 = vmatpush2.msra.mxu0 0.0
    %1124 = vmatprep.subr.mxu0 0.0
    %1125 = vmatpush2.msra.mxu0 0.0
    %1126 = vmatprep.subr.mxu0 0.0
    %1127 = vmatpush2.msra.mxu0 0.0
    %1128 = vmatprep.subr.mxu0 0.0
    %1129 = vmatpush2.msra.mxu0 0.0
    %1130 = vmatprep.subr.mxu0 0.0
    %1131 = vmatpush2.msra.mxu0 0.0
    %1132 = vmatprep.subr.mxu0 0.0
    %1133 = vmatpush2.msra.mxu0 0.0
    %1134 = vmatprep.subr.mxu0 0.0
    %1135 = vmatpush2.msra.mxu0 0.0
    %1136 = vmatprep.subr.mxu0 0.0
    %1137 = vmatpush2.msra.mxu0 0.0
    %1138 = vmatprep.subr.mxu0 0.0
    %1139 = vmatpush2.msra.mxu0 0.0
    %1140 = vmatprep.subr.mxu0 0.0
    %1141 = vmatpush2.msra.mxu0 0.0
    %1142 = vmatprep.subr.mxu0 0.0
    %1143 = vmatpush2.msra.mxu0 0.0
    %1144 = vmatprep.subr.mxu0 0.0
    %1145 = vmatpush2.msra.mxu0 0.0
    %1146 = vmatprep.subr.mxu0 0.0
    %1147 = vmatpush2.msra.mxu0 0.0
    %1148 = vmatprep.mubr.f32.mxu0 0.0
    %1149 = vmatmul.mubr.f32.gmra.mxu0 %v984
    %v1150 = vpop.f32.mrf.mxu0
    %v1151 = vadd.f32 0.0, %v1150
    %v1152 = vpop.f32.mrf.mxu0
    %v1153 = vadd.f32 0.0, %v1152
    %1154 = vmatprep.mubr.f32.mxu0 0.0
    %1155 = vmatmul.mubr.f32.gmra.mxu0 %v987
    %v1156 = vpop.f32.mrf.mxu0
    %v1157 = vadd.f32 0.0, %v1156
    %v1158 = vpop.f32.mrf.mxu0
    %v1159 = vadd.f32 0.0, %v1158
    %1160 = vmatprep.mubr.f32.mxu0 0.0
    %1161 = vmatmul.mubr.f32.gmra.mxu0 %v990
    %v1162 = vpop.f32.mrf.mxu0
    %v1163 = vadd.f32 0.0, %v1162
    %v1164 = vpop.f32.mrf.mxu0
    %v1165 = vadd.f32 0.0, %v1164
    %1166 = vmatprep.mubr.f32.mxu0 0.0
    %1167 = vmatmul.mubr.f32.gmra.mxu0 %v993
    %v1168 = vpop.f32.mrf.mxu0
    %v1169 = vadd.f32 0.0, %v1168
    %v1170 = vpop.f32.mrf.mxu0
    %v1171 = vadd.f32 0.0, %v1170
    %1172 = vdwg.mxu0
    %v1173 = vadd.f32 %v910, %v1062
    %v1174 = vadd.f32 %v911, %v1064
    %v1175 = vadd.f32 %v912, %v1151
    %v1176 = vadd.f32 %v913, %v1153
    %v1177 = vadd.f32 %v914, %v1068
    %v1178 = vadd.f32 %v915, %v1070
    %v1179 = vadd.f32 %v916, %v1157
    %v1180 = vadd.f32 %v917, %v1159
    %v1181 = vadd.f32 %v918, %v1074
    %v1182 = vadd.f32 %v919, %v1076
    %v1183 = vadd.f32 %v920, %v1163
    %v1184 = vadd.f32 %v921, %v1165
    %v1185 = vadd.f32 %v922, %v1080
    %v1186 = vadd.f32 %v923, %v1082
    %v1187 = vadd.f32 %v924, %v1169
    %v1188 = vadd.f32 %v925, %v1171
    %1189 = vset.pattern.permute.xlu0 4
    %1190 = vperm.xlu0 %1189, %v163
    %v1191 = vpop.permute.xlu0 %1190
    %1192 = vset.pattern.permute.xlu0 4
    %1193 = vperm.xlu0 %1192, %v164
    %v1194 = vpop.permute.xlu0 %1193
    %1195 = vset.pattern.permute.xlu0 4
    %1196 = vperm.xlu0 %1195, %v165
    %v1197 = vpop.permute.xlu0 %1196
    %1198 = vset.pattern.permute.xlu0 4
    %1199 = vperm.xlu0 %1198, %v166
    %v1200 = vpop.permute.xlu0 %1199
    %vm1201 = vcmp.eq.s32.totalorder %v1191, %v168
    %vm1202 = vcmp.eq.s32.totalorder %v1194, %v168
    %vm1203 = vcmp.eq.s32.totalorder %v1197, %v168
    %vm1204 = vcmp.eq.s32.totalorder %v1200, %v168
    %v1205 = vsel %vm1201, 1, 0
    %v1206 = vsel %vm1202, 1, 0
    %v1207 = vsel %vm1203, 1, 0
    %v1208 = vsel %vm1204, 1, 0
    %v1209 = vcvt.s32.f32 %v1205
    %v1210 = vcvt.s32.f32 %v1206
    %v1211 = vcvt.s32.f32 %v1207
    %v1212 = vcvt.s32.f32 %v1208
    %s1213 = scalar_lea.vmem [#allocation2], 1024
    %v1214 = vld [vmem:[%s1213] sm:$0xff]
    %v1215 = vld [vmem:[%s1213 + $0x8] sm:$0xff]
    %v1216 = vld [vmem:[%s1213 + $0x10] sm:$0xff]
    %v1217 = vld [vmem:[%s1213 + $0x18] sm:$0xff]
    %v1218 = vld [vmem:[%s1213 + $0x20] sm:$0xff]
    %v1219 = vld [vmem:[%s1213 + $0x28] sm:$0xff]
    %v1220 = vld [vmem:[%s1213 + $0x30] sm:$0xff]
    %v1221 = vld [vmem:[%s1213 + $0x38] sm:$0xff]
    %v1222 = vld [vmem:[%s1213 + $0x40] sm:$0xff]
    %v1223 = vld [vmem:[%s1213 + $0x48] sm:$0xff]
    %v1224 = vld [vmem:[%s1213 + $0x50] sm:$0xff]
    %v1225 = vld [vmem:[%s1213 + $0x58] sm:$0xff]
    %v1226 = vld [vmem:[%s1213 + $0x60] sm:$0xff]
    %v1227 = vld [vmem:[%s1213 + $0x68] sm:$0xff]
    %v1228 = vld [vmem:[%s1213 + $0x70] sm:$0xff]
    %v1229 = vld [vmem:[%s1213 + $0x78] sm:$0xff]
    %v1230 = vld [vmem:[%s1213 + $0x80] sm:$0xff]
    %v1231 = vld [vmem:[%s1213 + $0x88] sm:$0xff]
    %v1232 = vld [vmem:[%s1213 + $0x90] sm:$0xff]
    %v1233 = vld [vmem:[%s1213 + $0x98] sm:$0xff]
    %v1234 = vld [vmem:[%s1213 + $0xa0] sm:$0xff]
    %v1235 = vld [vmem:[%s1213 + $0xa8] sm:$0xff]
    %v1236 = vld [vmem:[%s1213 + $0xb0] sm:$0xff]
    %v1237 = vld [vmem:[%s1213 + $0xb8] sm:$0xff]
    %v1238 = vld [vmem:[%s1213 + $0xc0] sm:$0xff]
    %v1239 = vld [vmem:[%s1213 + $0xc8] sm:$0xff]
    %v1240 = vld [vmem:[%s1213 + $0xd0] sm:$0xff]
    %v1241 = vld [vmem:[%s1213 + $0xd8] sm:$0xff]
    %v1242 = vld [vmem:[%s1213 + $0xe0] sm:$0xff]
    %v1243 = vld [vmem:[%s1213 + $0xe8] sm:$0xff]
    %v1244 = vld [vmem:[%s1213 + $0xf0] sm:$0xff]
    %v1245 = vld [vmem:[%s1213 + $0xf8] sm:$0xff]
    %v1247 = vsel %vm282, %v1209, 0
    %v1250 = vsel %vm282, %v1210, 0
    %v1253 = vsel %vm282, %v1211, 0
    %v1256 = vsel %vm282, %v1212, 0
    %1258 = vmatprep.subr.mxu0 0.0
    %1259 = vmatpush1.msra.mxu0 0.0
    %1260 = vmatprep.subr.mxu0 0.0
    %1261 = vmatpush1.msra.mxu0 0.0
    %1262 = vmatprep.subr.mxu0 0.0
    %1263 = vmatpush1.msra.mxu0 0.0
    %1264 = vmatprep.subr.mxu0 0.0
    %1265 = vmatpush1.msra.mxu0 0.0
    %1266 = vmatprep.subr.mxu0 0.0
    %1267 = vmatpush1.msra.mxu0 0.0
    %1268 = vmatprep.subr.mxu0 0.0
    %1269 = vmatpush1.msra.mxu0 0.0
    %1270 = vmatprep.subr.mxu0 0.0
    %1271 = vmatpush1.msra.mxu0 0.0
    %1272 = vmatprep.subr.mxu0 0.0
    %1273 = vmatpush1.msra.mxu0 0.0
    %1274 = vmatprep.subr.mxu0 %v1243
    %1275 = vmatpush1.msra.mxu0 %v1242
    %1276 = vmatprep.subr.mxu0 %v1239
    %1277 = vmatpush1.msra.mxu0 %v1238
    %1278 = vmatprep.subr.mxu0 %v1235
    %1279 = vmatpush1.msra.mxu0 %v1234
    %1280 = vmatprep.subr.mxu0 %v1231
    %1281 = vmatpush1.msra.mxu0 %v1230
    %1282 = vmatprep.subr.mxu0 %v1227
    %1283 = vmatpush1.msra.mxu0 %v1226
    %1284 = vmatprep.subr.mxu0 %v1223
    %1285 = vmatpush1.msra.mxu0 %v1222
    %1286 = vmatprep.subr.mxu0 %v1219
    %1287 = vmatpush1.msra.mxu0 %v1218
    %1288 = vmatprep.subr.mxu0 %v1215
    %1289 = vmatpush1.msra.mxu0 %v1214
    %1290 = vmatprep.subr.mxu0 0.0
    %1291 = vmatpush2.msra.mxu0 0.0
    %1292 = vmatprep.subr.mxu0 0.0
    %1293 = vmatpush2.msra.mxu0 0.0
    %1294 = vmatprep.subr.mxu0 0.0
    %1295 = vmatpush2.msra.mxu0 0.0
    %1296 = vmatprep.subr.mxu0 0.0
    %1297 = vmatpush2.msra.mxu0 0.0
    %1298 = vmatprep.subr.mxu0 0.0
    %1299 = vmatpush2.msra.mxu0 0.0
    %1300 = vmatprep.subr.mxu0 0.0
    %1301 = vmatpush2.msra.mxu0 0.0
    %1302 = vmatprep.subr.mxu0 0.0
    %1303 = vmatpush2.msra.mxu0 0.0
    %1304 = vmatprep.subr.mxu0 0.0
    %1305 = vmatpush2.msra.mxu0 0.0
    %1306 = vmatprep.subr.mxu0 0.0
    %1307 = vmatpush2.msra.mxu0 0.0
    %1308 = vmatprep.subr.mxu0 0.0
    %1309 = vmatpush2.msra.mxu0 0.0
    %1310 = vmatprep.subr.mxu0 0.0
    %1311 = vmatpush2.msra.mxu0 0.0
    %1312 = vmatprep.subr.mxu0 0.0
    %1313 = vmatpush2.msra.mxu0 0.0
    %1314 = vmatprep.subr.mxu0 0.0
    %1315 = vmatpush2.msra.mxu0 0.0
    %1316 = vmatprep.subr.mxu0 0.0
    %1317 = vmatpush2.msra.mxu0 0.0
    %1318 = vmatprep.subr.mxu0 0.0
    %1319 = vmatpush2.msra.mxu0 0.0
    %1320 = vmatprep.subr.mxu0 0.0
    %1321 = vmatpush2.msra.mxu0 0.0
    %1322 = vmatprep.mubr.f32.mxu0 0.0
    %1323 = vmatmul.mubr.f32.gmra.mxu0 %v1247
    %v1324 = vpop.f32.mrf.mxu0
    %v1325 = vadd.f32 0.0, %v1324
    %v1326 = vpop.f32.mrf.mxu0
    %v1327 = vadd.f32 0.0, %v1326
    %1328 = vmatprep.mubr.f32.mxu0 0.0
    %1329 = vmatmul.mubr.f32.gmra.mxu0 %v1250
    %v1330 = vpop.f32.mrf.mxu0
    %v1331 = vadd.f32 0.0, %v1330
    %v1332 = vpop.f32.mrf.mxu0
    %v1333 = vadd.f32 0.0, %v1332
    %1334 = vmatprep.mubr.f32.mxu0 0.0
    %1335 = vmatmul.mubr.f32.gmra.mxu0 %v1253
    %v1336 = vpop.f32.mrf.mxu0
    %v1337 = vadd.f32 0.0, %v1336
    %v1338 = vpop.f32.mrf.mxu0
    %v1339 = vadd.f32 0.0, %v1338
    %1340 = vmatprep.mubr.f32.mxu0 0.0
    %1341 = vmatmul.mubr.f32.gmra.mxu0 %v1256
    %v1342 = vpop.f32.mrf.mxu0
    %v1343 = vadd.f32 0.0, %v1342
    %v1344 = vpop.f32.mrf.mxu0
    %v1345 = vadd.f32 0.0, %v1344
    %1346 = vdwg.mxu0
    %1347 = vmatprep.subr.mxu0 0.0
    %1348 = vmatpush1.msra.mxu0 0.0
    %1349 = vmatprep.subr.mxu0 0.0
    %1350 = vmatpush1.msra.mxu0 0.0
    %1351 = vmatprep.subr.mxu0 0.0
    %1352 = vmatpush1.msra.mxu0 0.0
    %1353 = vmatprep.subr.mxu0 0.0
    %1354 = vmatpush1.msra.mxu0 0.0
    %1355 = vmatprep.subr.mxu0 0.0
    %1356 = vmatpush1.msra.mxu0 0.0
    %1357 = vmatprep.subr.mxu0 0.0
    %1358 = vmatpush1.msra.mxu0 0.0
    %1359 = vmatprep.subr.mxu0 0.0
    %1360 = vmatpush1.msra.mxu0 0.0
    %1361 = vmatprep.subr.mxu0 0.0
    %1362 = vmatpush1.msra.mxu0 0.0
    %1363 = vmatprep.subr.mxu0 %v1245
    %1364 = vmatpush1.msra.mxu0 %v1244
    %1365 = vmatprep.subr.mxu0 %v1241
    %1366 = vmatpush1.msra.mxu0 %v1240
    %1367 = vmatprep.subr.mxu0 %v1237
    %1368 = vmatpush1.msra.mxu0 %v1236
    %1369 = vmatprep.subr.mxu0 %v1233
    %1370 = vmatpush1.msra.mxu0 %v1232
    %1371 = vmatprep.subr.mxu0 %v1229
    %1372 = vmatpush1.msra.mxu0 %v1228
    %1373 = vmatprep.subr.mxu0 %v1225
    %1374 = vmatpush1.msra.mxu0 %v1224
    %1375 = vmatprep.subr.mxu0 %v1221
    %1376 = vmatpush1.msra.mxu0 %v1220
    %1377 = vmatprep.subr.mxu0 %v1217
    %1378 = vmatpush1.msra.mxu0 %v1216
    %1379 = vmatprep.subr.mxu0 0.0
    %1380 = vmatpush2.msra.mxu0 0.0
    %1381 = vmatprep.subr.mxu0 0.0
    %1382 = vmatpush2.msra.mxu0 0.0
    %1383 = vmatprep.subr.mxu0 0.0
    %1384 = vmatpush2.msra.mxu0 0.0
    %1385 = vmatprep.subr.mxu0 0.0
    %1386 = vmatpush2.msra.mxu0 0.0
    %1387 = vmatprep.subr.mxu0 0.0
    %1388 = vmatpush2.msra.mxu0 0.0
    %1389 = vmatprep.subr.mxu0 0.0
    %1390 = vmatpush2.msra.mxu0 0.0
    %1391 = vmatprep.subr.mxu0 0.0
    %1392 = vmatpush2.msra.mxu0 0.0
    %1393 = vmatprep.subr.mxu0 0.0
    %1394 = vmatpush2.msra.mxu0 0.0
    %1395 = vmatprep.subr.mxu0 0.0
    %1396 = vmatpush2.msra.mxu0 0.0
    %1397 = vmatprep.subr.mxu0 0.0
    %1398 = vmatpush2.msra.mxu0 0.0
    %1399 = vmatprep.subr.mxu0 0.0
    %1400 = vmatpush2.msra.mxu0 0.0
    %1401 = vmatprep.subr.mxu0 0.0
    %1402 = vmatpush2.msra.mxu0 0.0
    %1403 = vmatprep.subr.mxu0 0.0
    %1404 = vmatpush2.msra.mxu0 0.0
    %1405 = vmatprep.subr.mxu0 0.0
    %1406 = vmatpush2.msra.mxu0 0.0
    %1407 = vmatprep.subr.mxu0 0.0
    %1408 = vmatpush2.msra.mxu0 0.0
    %1409 = vmatprep.subr.mxu0 0.0
    %1410 = vmatpush2.msra.mxu0 0.0
    %1411 = vmatprep.mubr.f32.mxu0 0.0
    %1412 = vmatmul.mubr.f32.gmra.mxu0 %v1247
    %v1413 = vpop.f32.mrf.mxu0
    %v1414 = vadd.f32 0.0, %v1413
    %v1415 = vpop.f32.mrf.mxu0
    %v1416 = vadd.f32 0.0, %v1415
    %1417 = vmatprep.mubr.f32.mxu0 0.0
    %1418 = vmatmul.mubr.f32.gmra.mxu0 %v1250
    %v1419 = vpop.f32.mrf.mxu0
    %v1420 = vadd.f32 0.0, %v1419
    %v1421 = vpop.f32.mrf.mxu0
    %v1422 = vadd.f32 0.0, %v1421
    %1423 = vmatprep.mubr.f32.mxu0 0.0
    %1424 = vmatmul.mubr.f32.gmra.mxu0 %v1253
    %v1425 = vpop.f32.mrf.mxu0
    %v1426 = vadd.f32 0.0, %v1425
    %v1427 = vpop.f32.mrf.mxu0
    %v1428 = vadd.f32 0.0, %v1427
    %1429 = vmatprep.mubr.f32.mxu0 0.0
    %1430 = vmatmul.mubr.f32.gmra.mxu0 %v1256
    %v1431 = vpop.f32.mrf.mxu0
    %v1432 = vadd.f32 0.0, %v1431
    %v1433 = vpop.f32.mrf.mxu0
    %v1434 = vadd.f32 0.0, %v1433
    %1435 = vdwg.mxu0
    %v1436 = vadd.f32 %v1173, %v1325
    %v1437 = vadd.f32 %v1174, %v1327
    %v1438 = vadd.f32 %v1175, %v1414
    %v1439 = vadd.f32 %v1176, %v1416
    %v1440 = vadd.f32 %v1177, %v1331
    %v1441 = vadd.f32 %v1178, %v1333
    %v1442 = vadd.f32 %v1179, %v1420
    %v1443 = vadd.f32 %v1180, %v1422
    %v1444 = vadd.f32 %v1181, %v1337
    %v1445 = vadd.f32 %v1182, %v1339
    %v1446 = vadd.f32 %v1183, %v1426
    %v1447 = vadd.f32 %v1184, %v1428
    %v1448 = vadd.f32 %v1185, %v1343
    %v1449 = vadd.f32 %v1186, %v1345
    %v1450 = vadd.f32 %v1187, %v1432
    %v1451 = vadd.f32 %v1188, %v1434
    %1452 = vset.pattern.permute.xlu0 5
    %1453 = vperm.xlu0 %1452, %v163
    %v1454 = vpop.permute.xlu0 %1453
    %1455 = vset.pattern.permute.xlu0 5
    %1456 = vperm.xlu0 %1455, %v164
    %v1457 = vpop.permute.xlu0 %1456
    %1458 = vset.pattern.permute.xlu0 5
    %1459 = vperm.xlu0 %1458, %v165
    %v1460 = vpop.permute.xlu0 %1459
    %1461 = vset.pattern.permute.xlu0 5
    %1462 = vperm.xlu0 %1461, %v166
    %v1463 = vpop.permute.xlu0 %1462
    %vm1464 = vcmp.eq.s32.totalorder %v1454, %v168
    %vm1465 = vcmp.eq.s32.totalorder %v1457, %v168
    %vm1466 = vcmp.eq.s32.totalorder %v1460, %v168
    %vm1467 = vcmp.eq.s32.totalorder %v1463, %v168
    %v1468 = vsel %vm1464, 1, 0
    %v1469 = vsel %vm1465, 1, 0
    %v1470 = vsel %vm1466, 1, 0
    %v1471 = vsel %vm1467, 1, 0
    %v1472 = vcvt.s32.f32 %v1468
    %v1473 = vcvt.s32.f32 %v1469
    %v1474 = vcvt.s32.f32 %v1470
    %v1475 = vcvt.s32.f32 %v1471
    %s1476 = scalar_lea.vmem [#allocation2], 1280
    %v1477 = vld [vmem:[%s1476] sm:$0xff]
    %v1478 = vld [vmem:[%s1476 + $0x8] sm:$0xff]
    %v1479 = vld [vmem:[%s1476 + $0x10] sm:$0xff]
    %v1480 = vld [vmem:[%s1476 + $0x18] sm:$0xff]
    %v1481 = vld [vmem:[%s1476 + $0x20] sm:$0xff]
    %v1482 = vld [vmem:[%s1476 + $0x28] sm:$0xff]
    %v1483 = vld [vmem:[%s1476 + $0x30] sm:$0xff]
    %v1484 = vld [vmem:[%s1476 + $0x38] sm:$0xff]
    %v1485 = vld [vmem:[%s1476 + $0x40] sm:$0xff]
    %v1486 = vld [vmem:[%s1476 + $0x48] sm:$0xff]
    %v1487 = vld [vmem:[%s1476 + $0x50] sm:$0xff]
    %v1488 = vld [vmem:[%s1476 + $0x58] sm:$0xff]
    %v1489 = vld [vmem:[%s1476 + $0x60] sm:$0xff]
    %v1490 = vld [vmem:[%s1476 + $0x68] sm:$0xff]
    %v1491 = vld [vmem:[%s1476 + $0x70] sm:$0xff]
    %v1492 = vld [vmem:[%s1476 + $0x78] sm:$0xff]
    %v1493 = vld [vmem:[%s1476 + $0x80] sm:$0xff]
    %v1494 = vld [vmem:[%s1476 + $0x88] sm:$0xff]
    %v1495 = vld [vmem:[%s1476 + $0x90] sm:$0xff]
    %v1496 = vld [vmem:[%s1476 + $0x98] sm:$0xff]
    %v1497 = vld [vmem:[%s1476 + $0xa0] sm:$0xff]
    %v1498 = vld [vmem:[%s1476 + $0xa8] sm:$0xff]
    %v1499 = vld [vmem:[%s1476 + $0xb0] sm:$0xff]
    %v1500 = vld [vmem:[%s1476 + $0xb8] sm:$0xff]
    %v1501 = vld [vmem:[%s1476 + $0xc0] sm:$0xff]
    %v1502 = vld [vmem:[%s1476 + $0xc8] sm:$0xff]
    %v1503 = vld [vmem:[%s1476 + $0xd0] sm:$0xff]
    %v1504 = vld [vmem:[%s1476 + $0xd8] sm:$0xff]
    %v1505 = vld [vmem:[%s1476 + $0xe0] sm:$0xff]
    %v1506 = vld [vmem:[%s1476 + $0xe8] sm:$0xff]
    %v1507 = vld [vmem:[%s1476 + $0xf0] sm:$0xff]
    %v1508 = vld [vmem:[%s1476 + $0xf8] sm:$0xff]
    %v1510 = vsel %vm282, %v1472, 0
    %v1513 = vsel %vm282, %v1473, 0
    %v1516 = vsel %vm282, %v1474, 0
    %v1519 = vsel %vm282, %v1475, 0
    %1521 = vmatprep.subr.mxu0 0.0
    %1522 = vmatpush1.msra.mxu0 0.0
    %1523 = vmatprep.subr.mxu0 0.0
    %1524 = vmatpush1.msra.mxu0 0.0
    %1525 = vmatprep.subr.mxu0 0.0
    %1526 = vmatpush1.msra.mxu0 0.0
    %1527 = vmatprep.subr.mxu0 0.0
    %1528 = vmatpush1.msra.mxu0 0.0
    %1529 = vmatprep.subr.mxu0 0.0
    %1530 = vmatpush1.msra.mxu0 0.0
    %1531 = vmatprep.subr.mxu0 0.0
    %1532 = vmatpush1.msra.mxu0 0.0
    %1533 = vmatprep.subr.mxu0 0.0
    %1534 = vmatpush1.msra.mxu0 0.0
    %1535 = vmatprep.subr.mxu0 0.0
    %1536 = vmatpush1.msra.mxu0 0.0
    %1537 = vmatprep.subr.mxu0 %v1506
    %1538 = vmatpush1.msra.mxu0 %v1505
    %1539 = vmatprep.subr.mxu0 %v1502
    %1540 = vmatpush1.msra.mxu0 %v1501
    %1541 = vmatprep.subr.mxu0 %v1498
    %1542 = vmatpush1.msra.mxu0 %v1497
    %1543 = vmatprep.subr.mxu0 %v1494
    %1544 = vmatpush1.msra.mxu0 %v1493
    %1545 = vmatprep.subr.mxu0 %v1490
    %1546 = vmatpush1.msra.mxu0 %v1489
    %1547 = vmatprep.subr.mxu0 %v1486
    %1548 = vmatpush1.msra.mxu0 %v1485
    %1549 = vmatprep.subr.mxu0 %v1482
    %1550 = vmatpush1.msra.mxu0 %v1481
    %1551 = vmatprep.subr.mxu0 %v1478
    %1552 = vmatpush1.msra.mxu0 %v1477
    %1553 = vmatprep.subr.mxu0 0.0
    %1554 = vmatpush2.msra.mxu0 0.0
    %1555 = vmatprep.subr.mxu0 0.0
    %1556 = vmatpush2.msra.mxu0 0.0
    %1557 = vmatprep.subr.mxu0 0.0
    %1558 = vmatpush2.msra.mxu0 0.0
    %1559 = vmatprep.subr.mxu0 0.0
    %1560 = vmatpush2.msra.mxu0 0.0
    %1561 = vmatprep.subr.mxu0 0.0
    %1562 = vmatpush2.msra.mxu0 0.0
    %1563 = vmatprep.subr.mxu0 0.0
    %1564 = vmatpush2.msra.mxu0 0.0
    %1565 = vmatprep.subr.mxu0 0.0
    %1566 = vmatpush2.msra.mxu0 0.0
    %1567 = vmatprep.subr.mxu0 0.0
    %1568 = vmatpush2.msra.mxu0 0.0
    %1569 = vmatprep.subr.mxu0 0.0
    %1570 = vmatpush2.msra.mxu0 0.0
    %1571 = vmatprep.subr.mxu0 0.0
    %1572 = vmatpush2.msra.mxu0 0.0
    %1573 = vmatprep.subr.mxu0 0.0
    %1574 = vmatpush2.msra.mxu0 0.0
    %1575 = vmatprep.subr.mxu0 0.0
    %1576 = vmatpush2.msra.mxu0 0.0
    %1577 = vmatprep.subr.mxu0 0.0
    %1578 = vmatpush2.msra.mxu0 0.0
    %1579 = vmatprep.subr.mxu0 0.0
    %1580 = vmatpush2.msra.mxu0 0.0
    %1581 = vmatprep.subr.mxu0 0.0
    %1582 = vmatpush2.msra.mxu0 0.0
    %1583 = vmatprep.subr.mxu0 0.0
    %1584 = vmatpush2.msra.mxu0 0.0
    %1585 = vmatprep.mubr.f32.mxu0 0.0
    %1586 = vmatmul.mubr.f32.gmra.mxu0 %v1510
    %v1587 = vpop.f32.mrf.mxu0
    %v1588 = vadd.f32 0.0, %v1587
    %v1589 = vpop.f32.mrf.mxu0
    %v1590 = vadd.f32 0.0, %v1589
    %1591 = vmatprep.mubr.f32.mxu0 0.0
    %1592 = vmatmul.mubr.f32.gmra.mxu0 %v1513
    %v1593 = vpop.f32.mrf.mxu0
    %v1594 = vadd.f32 0.0, %v1593
    %v1595 = vpop.f32.mrf.mxu0
    %v1596 = vadd.f32 0.0, %v1595
    %1597 = vmatprep.mubr.f32.mxu0 0.0
    %1598 = vmatmul.mubr.f32.gmra.mxu0 %v1516
    %v1599 = vpop.f32.mrf.mxu0
    %v1600 = vadd.f32 0.0, %v1599
    %v1601 = vpop.f32.mrf.mxu0
    %v1602 = vadd.f32 0.0, %v1601
    %1603 = vmatprep.mubr.f32.mxu0 0.0
    %1604 = vmatmul.mubr.f32.gmra.mxu0 %v1519
    %v1605 = vpop.f32.mrf.mxu0
    %v1606 = vadd.f32 0.0, %v1605
    %v1607 = vpop.f32.mrf.mxu0
    %v1608 = vadd.f32 0.0, %v1607
    %1609 = vdwg.mxu0
    %1610 = vmatprep.subr.mxu0 0.0
    %1611 = vmatpush1.msra.mxu0 0.0
    %1612 = vmatprep.subr.mxu0 0.0
    %1613 = vmatpush1.msra.mxu0 0.0
    %1614 = vmatprep.subr.mxu0 0.0
    %1615 = vmatpush1.msra.mxu0 0.0
    %1616 = vmatprep.subr.mxu0 0.0
    %1617 = vmatpush1.msra.mxu0 0.0
    %1618 = vmatprep.subr.mxu0 0.0
    %1619 = vmatpush1.msra.mxu0 0.0
    %1620 = vmatprep.subr.mxu0 0.0
    %1621 = vmatpush1.msra.mxu0 0.0
    %1622 = vmatprep.subr.mxu0 0.0
    %1623 = vmatpush1.msra.mxu0 0.0
    %1624 = vmatprep.subr.mxu0 0.0
    %1625 = vmatpush1.msra.mxu0 0.0
    %1626 = vmatprep.subr.mxu0 %v1508
    %1627 = vmatpush1.msra.mxu0 %v1507
    %1628 = vmatprep.subr.mxu0 %v1504
    %1629 = vmatpush1.msra.mxu0 %v1503
    %1630 = vmatprep.subr.mxu0 %v1500
    %1631 = vmatpush1.msra.mxu0 %v1499
    %1632 = vmatprep.subr.mxu0 %v1496
    %1633 = vmatpush1.msra.mxu0 %v1495
    %1634 = vmatprep.subr.mxu0 %v1492
    %1635 = vmatpush1.msra.mxu0 %v1491
    %1636 = vmatprep.subr.mxu0 %v1488
    %1637 = vmatpush1.msra.mxu0 %v1487
    %1638 = vmatprep.subr.mxu0 %v1484
    %1639 = vmatpush1.msra.mxu0 %v1483
    %1640 = vmatprep.subr.mxu0 %v1480
    %1641 = vmatpush1.msra.mxu0 %v1479
    %1642 = vmatprep.subr.mxu0 0.0
    %1643 = vmatpush2.msra.mxu0 0.0
    %1644 = vmatprep.subr.mxu0 0.0
    %1645 = vmatpush2.msra.mxu0 0.0
    %1646 = vmatprep.subr.mxu0 0.0
    %1647 = vmatpush2.msra.mxu0 0.0
    %1648 = vmatprep.subr.mxu0 0.0
    %1649 = vmatpush2.msra.mxu0 0.0
    %1650 = vmatprep.subr.mxu0 0.0
    %1651 = vmatpush2.msra.mxu0 0.0
    %1652 = vmatprep.subr.mxu0 0.0
    %1653 = vmatpush2.msra.mxu0 0.0
    %1654 = vmatprep.subr.mxu0 0.0
    %1655 = vmatpush2.msra.mxu0 0.0
    %1656 = vmatprep.subr.mxu0 0.0
    %1657 = vmatpush2.msra.mxu0 0.0
    %1658 = vmatprep.subr.mxu0 0.0
    %1659 = vmatpush2.msra.mxu0 0.0
    %1660 = vmatprep.subr.mxu0 0.0
    %1661 = vmatpush2.msra.mxu0 0.0
    %1662 = vmatprep.subr.mxu0 0.0
    %1663 = vmatpush2.msra.mxu0 0.0
    %1664 = vmatprep.subr.mxu0 0.0
    %1665 = vmatpush2.msra.mxu0 0.0
    %1666 = vmatprep.subr.mxu0 0.0
    %1667 = vmatpush2.msra.mxu0 0.0
    %1668 = vmatprep.subr.mxu0 0.0
    %1669 = vmatpush2.msra.mxu0 0.0
    %1670 = vmatprep.subr.mxu0 0.0
    %1671 = vmatpush2.msra.mxu0 0.0
    %1672 = vmatprep.subr.mxu0 0.0
    %1673 = vmatpush2.msra.mxu0 0.0
    %1674 = vmatprep.mubr.f32.mxu0 0.0
    %1675 = vmatmul.mubr.f32.gmra.mxu0 %v1510
    %v1676 = vpop.f32.mrf.mxu0
    %v1677 = vadd.f32 0.0, %v1676
    %v1678 = vpop.f32.mrf.mxu0
    %v1679 = vadd.f32 0.0, %v1678
    %1680 = vmatprep.mubr.f32.mxu0 0.0
    %1681 = vmatmul.mubr.f32.gmra.mxu0 %v1513
    %v1682 = vpop.f32.mrf.mxu0
    %v1683 = vadd.f32 0.0, %v1682
    %v1684 = vpop.f32.mrf.mxu0
    %v1685 = vadd.f32 0.0, %v1684
    %1686 = vmatprep.mubr.f32.mxu0 0.0
    %1687 = vmatmul.mubr.f32.gmra.mxu0 %v1516
    %v1688 = vpop.f32.mrf.mxu0
    %v1689 = vadd.f32 0.0, %v1688
    %v1690 = vpop.f32.mrf.mxu0
    %v1691 = vadd.f32 0.0, %v1690
    %1692 = vmatprep.mubr.f32.mxu0 0.0
    %1693 = vmatmul.mubr.f32.gmra.mxu0 %v1519
    %v1694 = vpop.f32.mrf.mxu0
    %v1695 = vadd.f32 0.0, %v1694
    %v1696 = vpop.f32.mrf.mxu0
    %v1697 = vadd.f32 0.0, %v1696
    %1698 = vdwg.mxu0
    %v1699 = vadd.f32 %v1436, %v1588
    %v1700 = vadd.f32 %v1437, %v1590
    %v1701 = vadd.f32 %v1438, %v1677
    %v1702 = vadd.f32 %v1439, %v1679
    %v1703 = vadd.f32 %v1440, %v1594
    %v1704 = vadd.f32 %v1441, %v1596
    %v1705 = vadd.f32 %v1442, %v1683
    %v1706 = vadd.f32 %v1443, %v1685
    %v1707 = vadd.f32 %v1444, %v1600
    %v1708 = vadd.f32 %v1445, %v1602
    %v1709 = vadd.f32 %v1446, %v1689
    %v1710 = vadd.f32 %v1447, %v1691
    %v1711 = vadd.f32 %v1448, %v1606
    %v1712 = vadd.f32 %v1449, %v1608
    %v1713 = vadd.f32 %v1450, %v1695
    %v1714 = vadd.f32 %v1451, %v1697
    %1715 = vset.pattern.permute.xlu0 6
    %1716 = vperm.xlu0 %1715, %v163
    %v1717 = vpop.permute.xlu0 %1716
    %1718 = vset.pattern.permute.xlu0 6
    %1719 = vperm.xlu0 %1718, %v164
    %v1720 = vpop.permute.xlu0 %1719
    %1721 = vset.pattern.permute.xlu0 6
    %1722 = vperm.xlu0 %1721, %v165
    %v1723 = vpop.permute.xlu0 %1722
    %1724 = vset.pattern.permute.xlu0 6
    %1725 = vperm.xlu0 %1724, %v166
    %v1726 = vpop.permute.xlu0 %1725
    %vm1727 = vcmp.eq.s32.totalorder %v1717, %v168
    %vm1728 = vcmp.eq.s32.totalorder %v1720, %v168
    %vm1729 = vcmp.eq.s32.totalorder %v1723, %v168
    %vm1730 = vcmp.eq.s32.totalorder %v1726, %v168
    %v1731 = vsel %vm1727, 1, 0
    %v1732 = vsel %vm1728, 1, 0
    %v1733 = vsel %vm1729, 1, 0
    %v1734 = vsel %vm1730, 1, 0
    %v1735 = vcvt.s32.f32 %v1731
    %v1736 = vcvt.s32.f32 %v1732
    %v1737 = vcvt.s32.f32 %v1733
    %v1738 = vcvt.s32.f32 %v1734
    %s1739 = scalar_lea.vmem [#allocation2], 1536
    %v1740 = vld [vmem:[%s1739] sm:$0xff]
    %v1741 = vld [vmem:[%s1739 + $0x8] sm:$0xff]
    %v1742 = vld [vmem:[%s1739 + $0x10] sm:$0xff]
    %v1743 = vld [vmem:[%s1739 + $0x18] sm:$0xff]
    %v1744 = vld [vmem:[%s1739 + $0x20] sm:$0xff]
    %v1745 = vld [vmem:[%s1739 + $0x28] sm:$0xff]
    %v1746 = vld [vmem:[%s1739 + $0x30] sm:$0xff]
    %v1747 = vld [vmem:[%s1739 + $0x38] sm:$0xff]
    %v1748 = vld [vmem:[%s1739 + $0x40] sm:$0xff]
    %v1749 = vld [vmem:[%s1739 + $0x48] sm:$0xff]
    %v1750 = vld [vmem:[%s1739 + $0x50] sm:$0xff]
    %v1751 = vld [vmem:[%s1739 + $0x58] sm:$0xff]
    %v1752 = vld [vmem:[%s1739 + $0x60] sm:$0xff]
    %v1753 = vld [vmem:[%s1739 + $0x68] sm:$0xff]
    %v1754 = vld [vmem:[%s1739 + $0x70] sm:$0xff]
    %v1755 = vld [vmem:[%s1739 + $0x78] sm:$0xff]
    %v1756 = vld [vmem:[%s1739 + $0x80] sm:$0xff]
    %v1757 = vld [vmem:[%s1739 + $0x88] sm:$0xff]
    %v1758 = vld [vmem:[%s1739 + $0x90] sm:$0xff]
    %v1759 = vld [vmem:[%s1739 + $0x98] sm:$0xff]
    %v1760 = vld [vmem:[%s1739 + $0xa0] sm:$0xff]
    %v1761 = vld [vmem:[%s1739 + $0xa8] sm:$0xff]
    %v1762 = vld [vmem:[%s1739 + $0xb0] sm:$0xff]
    %v1763 = vld [vmem:[%s1739 + $0xb8] sm:$0xff]
    %v1764 = vld [vmem:[%s1739 + $0xc0] sm:$0xff]
    %v1765 = vld [vmem:[%s1739 + $0xc8] sm:$0xff]
    %v1766 = vld [vmem:[%s1739 + $0xd0] sm:$0xff]
    %v1767 = vld [vmem:[%s1739 + $0xd8] sm:$0xff]
    %v1768 = vld [vmem:[%s1739 + $0xe0] sm:$0xff]
    %v1769 = vld [vmem:[%s1739 + $0xe8] sm:$0xff]
    %v1770 = vld [vmem:[%s1739 + $0xf0] sm:$0xff]
    %v1771 = vld [vmem:[%s1739 + $0xf8] sm:$0xff]
    %v1773 = vsel %vm282, %v1735, 0
    %v1776 = vsel %vm282, %v1736, 0
    %v1779 = vsel %vm282, %v1737, 0
    %v1782 = vsel %vm282, %v1738, 0
    %1784 = vmatprep.subr.mxu0 0.0
    %1785 = vmatpush1.msra.mxu0 0.0
    %1786 = vmatprep.subr.mxu0 0.0
    %1787 = vmatpush1.msra.mxu0 0.0
    %1788 = vmatprep.subr.mxu0 0.0
    %1789 = vmatpush1.msra.mxu0 0.0
    %1790 = vmatprep.subr.mxu0 0.0
    %1791 = vmatpush1.msra.mxu0 0.0
    %1792 = vmatprep.subr.mxu0 0.0
    %1793 = vmatpush1.msra.mxu0 0.0
    %1794 = vmatprep.subr.mxu0 0.0
    %1795 = vmatpush1.msra.mxu0 0.0
    %1796 = vmatprep.subr.mxu0 0.0
    %1797 = vmatpush1.msra.mxu0 0.0
    %1798 = vmatprep.subr.mxu0 0.0
    %1799 = vmatpush1.msra.mxu0 0.0
    %1800 = vmatprep.subr.mxu0 %v1769
    %1801 = vmatpush1.msra.mxu0 %v1768
    %1802 = vmatprep.subr.mxu0 %v1765
    %1803 = vmatpush1.msra.mxu0 %v1764
    %1804 = vmatprep.subr.mxu0 %v1761
    %1805 = vmatpush1.msra.mxu0 %v1760
    %1806 = vmatprep.subr.mxu0 %v1757
    %1807 = vmatpush1.msra.mxu0 %v1756
    %1808 = vmatprep.subr.mxu0 %v1753
    %1809 = vmatpush1.msra.mxu0 %v1752
    %1810 = vmatprep.subr.mxu0 %v1749
    %1811 = vmatpush1.msra.mxu0 %v1748
    %1812 = vmatprep.subr.mxu0 %v1745
    %1813 = vmatpush1.msra.mxu0 %v1744
    %1814 = vmatprep.subr.mxu0 %v1741
    %1815 = vmatpush1.msra.mxu0 %v1740
    %1816 = vmatprep.subr.mxu0 0.0
    %1817 = vmatpush2.msra.mxu0 0.0
    %1818 = vmatprep.subr.mxu0 0.0
    %1819 = vmatpush2.msra.mxu0 0.0
    %1820 = vmatprep.subr.mxu0 0.0
    %1821 = vmatpush2.msra.mxu0 0.0
    %1822 = vmatprep.subr.mxu0 0.0
    %1823 = vmatpush2.msra.mxu0 0.0
    %1824 = vmatprep.subr.mxu0 0.0
    %1825 = vmatpush2.msra.mxu0 0.0
    %1826 = vmatprep.subr.mxu0 0.0
    %1827 = vmatpush2.msra.mxu0 0.0
    %1828 = vmatprep.subr.mxu0 0.0
    %1829 = vmatpush2.msra.mxu0 0.0
    %1830 = vmatprep.subr.mxu0 0.0
    %1831 = vmatpush2.msra.mxu0 0.0
    %1832 = vmatprep.subr.mxu0 0.0
    %1833 = vmatpush2.msra.mxu0 0.0
    %1834 = vmatprep.subr.mxu0 0.0
    %1835 = vmatpush2.msra.mxu0 0.0
    %1836 = vmatprep.subr.mxu0 0.0
    %1837 = vmatpush2.msra.mxu0 0.0
    %1838 = vmatprep.subr.mxu0 0.0
    %1839 = vmatpush2.msra.mxu0 0.0
    %1840 = vmatprep.subr.mxu0 0.0
    %1841 = vmatpush2.msra.mxu0 0.0
    %1842 = vmatprep.subr.mxu0 0.0
    %1843 = vmatpush2.msra.mxu0 0.0
    %1844 = vmatprep.subr.mxu0 0.0
    %1845 = vmatpush2.msra.mxu0 0.0
    %1846 = vmatprep.subr.mxu0 0.0
    %1847 = vmatpush2.msra.mxu0 0.0
    %1848 = vmatprep.mubr.f32.mxu0 0.0
    %1849 = vmatmul.mubr.f32.gmra.mxu0 %v1773
    %v1850 = vpop.f32.mrf.mxu0
    %v1851 = vadd.f32 0.0, %v1850
    %v1852 = vpop.f32.mrf.mxu0
    %v1853 = vadd.f32 0.0, %v1852
    %1854 = vmatprep.mubr.f32.mxu0 0.0
    %1855 = vmatmul.mubr.f32.gmra.mxu0 %v1776
    %v1856 = vpop.f32.mrf.mxu0
    %v1857 = vadd.f32 0.0, %v1856
    %v1858 = vpop.f32.mrf.mxu0
    %v1859 = vadd.f32 0.0, %v1858
    %1860 = vmatprep.mubr.f32.mxu0 0.0
    %1861 = vmatmul.mubr.f32.gmra.mxu0 %v1779
    %v1862 = vpop.f32.mrf.mxu0
    %v1863 = vadd.f32 0.0, %v1862
    %v1864 = vpop.f32.mrf.mxu0
    %v1865 = vadd.f32 0.0, %v1864
    %1866 = vmatprep.mubr.f32.mxu0 0.0
    %1867 = vmatmul.mubr.f32.gmra.mxu0 %v1782
    %v1868 = vpop.f32.mrf.mxu0
    %v1869 = vadd.f32 0.0, %v1868
    %v1870 = vpop.f32.mrf.mxu0
    %v1871 = vadd.f32 0.0, %v1870
    %1872 = vdwg.mxu0
    %1873 = vmatprep.subr.mxu0 0.0
    %1874 = vmatpush1.msra.mxu0 0.0
    %1875 = vmatprep.subr.mxu0 0.0
    %1876 = vmatpush1.msra.mxu0 0.0
    %1877 = vmatprep.subr.mxu0 0.0
    %1878 = vmatpush1.msra.mxu0 0.0
    %1879 = vmatprep.subr.mxu0 0.0
    %1880 = vmatpush1.msra.mxu0 0.0
    %1881 = vmatprep.subr.mxu0 0.0
    %1882 = vmatpush1.msra.mxu0 0.0
    %1883 = vmatprep.subr.mxu0 0.0
    %1884 = vmatpush1.msra.mxu0 0.0
    %1885 = vmatprep.subr.mxu0 0.0
    %1886 = vmatpush1.msra.mxu0 0.0
    %1887 = vmatprep.subr.mxu0 0.0
    %1888 = vmatpush1.msra.mxu0 0.0
    %1889 = vmatprep.subr.mxu0 %v1771
    %1890 = vmatpush1.msra.mxu0 %v1770
    %1891 = vmatprep.subr.mxu0 %v1767
    %1892 = vmatpush1.msra.mxu0 %v1766
    %1893 = vmatprep.subr.mxu0 %v1763
    %1894 = vmatpush1.msra.mxu0 %v1762
    %1895 = vmatprep.subr.mxu0 %v1759
    %1896 = vmatpush1.msra.mxu0 %v1758
    %1897 = vmatprep.subr.mxu0 %v1755
    %1898 = vmatpush1.msra.mxu0 %v1754
    %1899 = vmatprep.subr.mxu0 %v1751
    %1900 = vmatpush1.msra.mxu0 %v1750
    %1901 = vmatprep.subr.mxu0 %v1747
    %1902 = vmatpush1.msra.mxu0 %v1746
    %1903 = vmatprep.subr.mxu0 %v1743
    %1904 = vmatpush1.msra.mxu0 %v1742
    %1905 = vmatprep.subr.mxu0 0.0
    %1906 = vmatpush2.msra.mxu0 0.0
    %1907 = vmatprep.subr.mxu0 0.0
    %1908 = vmatpush2.msra.mxu0 0.0
    %1909 = vmatprep.subr.mxu0 0.0
    %1910 = vmatpush2.msra.mxu0 0.0
    %1911 = vmatprep.subr.mxu0 0.0
    %1912 = vmatpush2.msra.mxu0 0.0
    %1913 = vmatprep.subr.mxu0 0.0
    %1914 = vmatpush2.msra.mxu0 0.0
    %1915 = vmatprep.subr.mxu0 0.0
    %1916 = vmatpush2.msra.mxu0 0.0
    %1917 = vmatprep.subr.mxu0 0.0
    %1918 = vmatpush2.msra.mxu0 0.0
    %1919 = vmatprep.subr.mxu0 0.0
    %1920 = vmatpush2.msra.mxu0 0.0
    %1921 = vmatprep.subr.mxu0 0.0
    %1922 = vmatpush2.msra.mxu0 0.0
    %1923 = vmatprep.subr.mxu0 0.0
    %1924 = vmatpush2.msra.mxu0 0.0
    %1925 = vmatprep.subr.mxu0 0.0
    %1926 = vmatpush2.msra.mxu0 0.0
    %1927 = vmatprep.subr.mxu0 0.0
    %1928 = vmatpush2.msra.mxu0 0.0
    %1929 = vmatprep.subr.mxu0 0.0
    %1930 = vmatpush2.msra.mxu0 0.0
    %1931 = vmatprep.subr.mxu0 0.0
    %1932 = vmatpush2.msra.mxu0 0.0
    %1933 = vmatprep.subr.mxu0 0.0
    %1934 = vmatpush2.msra.mxu0 0.0
    %1935 = vmatprep.subr.mxu0 0.0
    %1936 = vmatpush2.msra.mxu0 0.0
    %1937 = vmatprep.mubr.f32.mxu0 0.0
    %1938 = vmatmul.mubr.f32.gmra.mxu0 %v1773
    %v1939 = vpop.f32.mrf.mxu0
    %v1940 = vadd.f32 0.0, %v1939
    %v1941 = vpop.f32.mrf.mxu0
    %v1942 = vadd.f32 0.0, %v1941
    %1943 = vmatprep.mubr.f32.mxu0 0.0
    %1944 = vmatmul.mubr.f32.gmra.mxu0 %v1776
    %v1945 = vpop.f32.mrf.mxu0
    %v1946 = vadd.f32 0.0, %v1945
    %v1947 = vpop.f32.mrf.mxu0
    %v1948 = vadd.f32 0.0, %v1947
    %1949 = vmatprep.mubr.f32.mxu0 0.0
    %1950 = vmatmul.mubr.f32.gmra.mxu0 %v1779
    %v1951 = vpop.f32.mrf.mxu0
    %v1952 = vadd.f32 0.0, %v1951
    %v1953 = vpop.f32.mrf.mxu0
    %v1954 = vadd.f32 0.0, %v1953
    %1955 = vmatprep.mubr.f32.mxu0 0.0
    %1956 = vmatmul.mubr.f32.gmra.mxu0 %v1782
    %v1957 = vpop.f32.mrf.mxu0
    %v1958 = vadd.f32 0.0, %v1957
    %v1959 = vpop.f32.mrf.mxu0
    %v1960 = vadd.f32 0.0, %v1959
    %1961 = vdwg.mxu0
    %v1962 = vadd.f32 %v1699, %v1851
    %v1963 = vadd.f32 %v1700, %v1853
    %v1964 = vadd.f32 %v1701, %v1940
    %v1965 = vadd.f32 %v1702, %v1942
    %v1966 = vadd.f32 %v1703, %v1857
    %v1967 = vadd.f32 %v1704, %v1859
    %v1968 = vadd.f32 %v1705, %v1946
    %v1969 = vadd.f32 %v1706, %v1948
    %v1970 = vadd.f32 %v1707, %v1863
    %v1971 = vadd.f32 %v1708, %v1865
    %v1972 = vadd.f32 %v1709, %v1952
    %v1973 = vadd.f32 %v1710, %v1954
    %v1974 = vadd.f32 %v1711, %v1869
    %v1975 = vadd.f32 %v1712, %v1871
    %v1976 = vadd.f32 %v1713, %v1958
    %v1977 = vadd.f32 %v1714, %v1960
    %1978 = vset.pattern.permute.xlu0 7
    %1979 = vperm.xlu0 %1978, %v163
    %v1980 = vpop.permute.xlu0 %1979
    %1981 = vset.pattern.permute.xlu0 7
    %1982 = vperm.xlu0 %1981, %v164
    %v1983 = vpop.permute.xlu0 %1982
    %1984 = vset.pattern.permute.xlu0 7
    %1985 = vperm.xlu0 %1984, %v165
    %v1986 = vpop.permute.xlu0 %1985
    %1987 = vset.pattern.permute.xlu0 7
    %1988 = vperm.xlu0 %1987, %v166
    %v1989 = vpop.permute.xlu0 %1988
    %vm1990 = vcmp.eq.s32.totalorder %v1980, %v168
    %vm1991 = vcmp.eq.s32.totalorder %v1983, %v168
    %vm1992 = vcmp.eq.s32.totalorder %v1986, %v168
    %vm1993 = vcmp.eq.s32.totalorder %v1989, %v168
    %v1994 = vsel %vm1990, 1, 0
    %v1995 = vsel %vm1991, 1, 0
    %v1996 = vsel %vm1992, 1, 0
    %v1997 = vsel %vm1993, 1, 0
    %v1998 = vcvt.s32.f32 %v1994
    %v1999 = vcvt.s32.f32 %v1995
    %v2000 = vcvt.s32.f32 %v1996
    %v2001 = vcvt.s32.f32 %v1997
    %s2002 = scalar_lea.vmem [#allocation2], 1792
    %v2003 = vld [vmem:[%s2002] sm:$0xff]
    %v2004 = vld [vmem:[%s2002 + $0x8] sm:$0xff]
    %v2005 = vld [vmem:[%s2002 + $0x10] sm:$0xff]
    %v2006 = vld [vmem:[%s2002 + $0x18] sm:$0xff]
    %v2007 = vld [vmem:[%s2002 + $0x20] sm:$0xff]
    %v2008 = vld [vmem:[%s2002 + $0x28] sm:$0xff]
    %v2009 = vld [vmem:[%s2002 + $0x30] sm:$0xff]
    %v2010 = vld [vmem:[%s2002 + $0x38] sm:$0xff]
    %v2011 = vld [vmem:[%s2002 + $0x40] sm:$0xff]
    %v2012 = vld [vmem:[%s2002 + $0x48] sm:$0xff]
    %v2013 = vld [vmem:[%s2002 + $0x50] sm:$0xff]
    %v2014 = vld [vmem:[%s2002 + $0x58] sm:$0xff]
    %v2015 = vld [vmem:[%s2002 + $0x60] sm:$0xff]
    %v2016 = vld [vmem:[%s2002 + $0x68] sm:$0xff]
    %v2017 = vld [vmem:[%s2002 + $0x70] sm:$0xff]
    %v2018 = vld [vmem:[%s2002 + $0x78] sm:$0xff]
    %v2019 = vld [vmem:[%s2002 + $0x80] sm:$0xff]
    %v2020 = vld [vmem:[%s2002 + $0x88] sm:$0xff]
    %v2021 = vld [vmem:[%s2002 + $0x90] sm:$0xff]
    %v2022 = vld [vmem:[%s2002 + $0x98] sm:$0xff]
    %v2023 = vld [vmem:[%s2002 + $0xa0] sm:$0xff]
    %v2024 = vld [vmem:[%s2002 + $0xa8] sm:$0xff]
    %v2025 = vld [vmem:[%s2002 + $0xb0] sm:$0xff]
    %v2026 = vld [vmem:[%s2002 + $0xb8] sm:$0xff]
    %v2027 = vld [vmem:[%s2002 + $0xc0] sm:$0xff]
    %v2028 = vld [vmem:[%s2002 + $0xc8] sm:$0xff]
    %v2029 = vld [vmem:[%s2002 + $0xd0] sm:$0xff]
    %v2030 = vld [vmem:[%s2002 + $0xd8] sm:$0xff]
    %v2031 = vld [vmem:[%s2002 + $0xe0] sm:$0xff]
    %v2032 = vld [vmem:[%s2002 + $0xe8] sm:$0xff]
    %v2033 = vld [vmem:[%s2002 + $0xf0] sm:$0xff]
    %v2034 = vld [vmem:[%s2002 + $0xf8] sm:$0xff]
    %v2036 = vsel %vm282, %v1998, 0
    %v2039 = vsel %vm282, %v1999, 0
    %v2042 = vsel %vm282, %v2000, 0
    %v2045 = vsel %vm282, %v2001, 0
    %2047 = vmatprep.subr.mxu0 0.0
    %2048 = vmatpush1.msra.mxu0 0.0
    %2049 = vmatprep.subr.mxu0 0.0
    %2050 = vmatpush1.msra.mxu0 0.0
    %2051 = vmatprep.subr.mxu0 0.0
    %2052 = vmatpush1.msra.mxu0 0.0
    %2053 = vmatprep.subr.mxu0 0.0
    %2054 = vmatpush1.msra.mxu0 0.0
    %2055 = vmatprep.subr.mxu0 0.0
    %2056 = vmatpush1.msra.mxu0 0.0
    %2057 = vmatprep.subr.mxu0 0.0
    %2058 = vmatpush1.msra.mxu0 0.0
    %2059 = vmatprep.subr.mxu0 0.0
    %2060 = vmatpush1.msra.mxu0 0.0
    %2061 = vmatprep.subr.mxu0 0.0
    %2062 = vmatpush1.msra.mxu0 0.0
    %2063 = vmatprep.subr.mxu0 %v2032
    %2064 = vmatpush1.msra.mxu0 %v2031
    %2065 = vmatprep.subr.mxu0 %v2028
    %2066 = vmatpush1.msra.mxu0 %v2027
    %2067 = vmatprep.subr.mxu0 %v2024
    %2068 = vmatpush1.msra.mxu0 %v2023
    %2069 = vmatprep.subr.mxu0 %v2020
    %2070 = vmatpush1.msra.mxu0 %v2019
    %2071 = vmatprep.subr.mxu0 %v2016
    %2072 = vmatpush1.msra.mxu0 %v2015
    %2073 = vmatprep.subr.mxu0 %v2012
    %2074 = vmatpush1.msra.mxu0 %v2011
    %2075 = vmatprep.subr.mxu0 %v2008
    %2076 = vmatpush1.msra.mxu0 %v2007
    %2077 = vmatprep.subr.mxu0 %v2004
    %2078 = vmatpush1.msra.mxu0 %v2003
    %2079 = vmatprep.subr.mxu0 0.0
    %2080 = vmatpush2.msra.mxu0 0.0
    %2081 = vmatprep.subr.mxu0 0.0
    %2082 = vmatpush2.msra.mxu0 0.0
    %2083 = vmatprep.subr.mxu0 0.0
    %2084 = vmatpush2.msra.mxu0 0.0
    %2085 = vmatprep.subr.mxu0 0.0
    %2086 = vmatpush2.msra.mxu0 0.0
    %2087 = vmatprep.subr.mxu0 0.0
    %2088 = vmatpush2.msra.mxu0 0.0
    %2089 = vmatprep.subr.mxu0 0.0
    %2090 = vmatpush2.msra.mxu0 0.0
    %2091 = vmatprep.subr.mxu0 0.0
    %2092 = vmatpush2.msra.mxu0 0.0
    %2093 = vmatprep.subr.mxu0 0.0
    %2094 = vmatpush2.msra.mxu0 0.0
    %2095 = vmatprep.subr.mxu0 0.0
    %2096 = vmatpush2.msra.mxu0 0.0
    %2097 = vmatprep.subr.mxu0 0.0
    %2098 = vmatpush2.msra.mxu0 0.0
    %2099 = vmatprep.subr.mxu0 0.0
    %2100 = vmatpush2.msra.mxu0 0.0
    %2101 = vmatprep.subr.mxu0 0.0
    %2102 = vmatpush2.msra.mxu0 0.0
    %2103 = vmatprep.subr.mxu0 0.0
    %2104 = vmatpush2.msra.mxu0 0.0
    %2105 = vmatprep.subr.mxu0 0.0
    %2106 = vmatpush2.msra.mxu0 0.0
    %2107 = vmatprep.subr.mxu0 0.0
    %2108 = vmatpush2.msra.mxu0 0.0
    %2109 = vmatprep.subr.mxu0 0.0
    %2110 = vmatpush2.msra.mxu0 0.0
    %2111 = vmatprep.mubr.f32.mxu0 0.0
    %2112 = vmatmul.mubr.f32.gmra.mxu0 %v2036
    %v2113 = vpop.f32.mrf.mxu0
    %v2114 = vadd.f32 0.0, %v2113
    %v2115 = vpop.f32.mrf.mxu0
    %v2116 = vadd.f32 0.0, %v2115
    %2117 = vmatprep.mubr.f32.mxu0 0.0
    %2118 = vmatmul.mubr.f32.gmra.mxu0 %v2039
    %v2119 = vpop.f32.mrf.mxu0
    %v2120 = vadd.f32 0.0, %v2119
    %v2121 = vpop.f32.mrf.mxu0
    %v2122 = vadd.f32 0.0, %v2121
    %2123 = vmatprep.mubr.f32.mxu0 0.0
    %2124 = vmatmul.mubr.f32.gmra.mxu0 %v2042
    %v2125 = vpop.f32.mrf.mxu0
    %v2126 = vadd.f32 0.0, %v2125
    %v2127 = vpop.f32.mrf.mxu0
    %v2128 = vadd.f32 0.0, %v2127
    %2129 = vmatprep.mubr.f32.mxu0 0.0
    %2130 = vmatmul.mubr.f32.gmra.mxu0 %v2045
    %v2131 = vpop.f32.mrf.mxu0
    %v2132 = vadd.f32 0.0, %v2131
    %v2133 = vpop.f32.mrf.mxu0
    %v2134 = vadd.f32 0.0, %v2133
    %2135 = vdwg.mxu0
    %2136 = vmatprep.subr.mxu0 0.0
    %2137 = vmatpush1.msra.mxu0 0.0
    %2138 = vmatprep.subr.mxu0 0.0
    %2139 = vmatpush1.msra.mxu0 0.0
    %2140 = vmatprep.subr.mxu0 0.0
    %2141 = vmatpush1.msra.mxu0 0.0
    %2142 = vmatprep.subr.mxu0 0.0
    %2143 = vmatpush1.msra.mxu0 0.0
    %2144 = vmatprep.subr.mxu0 0.0
    %2145 = vmatpush1.msra.mxu0 0.0
    %2146 = vmatprep.subr.mxu0 0.0
    %2147 = vmatpush1.msra.mxu0 0.0
    %2148 = vmatprep.subr.mxu0 0.0
    %2149 = vmatpush1.msra.mxu0 0.0
    %2150 = vmatprep.subr.mxu0 0.0
    %2151 = vmatpush1.msra.mxu0 0.0
    %2152 = vmatprep.subr.mxu0 %v2034
    %2153 = vmatpush1.msra.mxu0 %v2033
    %2154 = vmatprep.subr.mxu0 %v2030
    %2155 = vmatpush1.msra.mxu0 %v2029
    %2156 = vmatprep.subr.mxu0 %v2026
    %2157 = vmatpush1.msra.mxu0 %v2025
    %2158 = vmatprep.subr.mxu0 %v2022
    %2159 = vmatpush1.msra.mxu0 %v2021
    %2160 = vmatprep.subr.mxu0 %v2018
    %2161 = vmatpush1.msra.mxu0 %v2017
    %2162 = vmatprep.subr.mxu0 %v2014
    %2163 = vmatpush1.msra.mxu0 %v2013
    %2164 = vmatprep.subr.mxu0 %v2010
    %2165 = vmatpush1.msra.mxu0 %v2009
    %2166 = vmatprep.subr.mxu0 %v2006
    %2167 = vmatpush1.msra.mxu0 %v2005
    %2168 = vmatprep.subr.mxu0 0.0
    %2169 = vmatpush2.msra.mxu0 0.0
    %2170 = vmatprep.subr.mxu0 0.0
    %2171 = vmatpush2.msra.mxu0 0.0
    %2172 = vmatprep.subr.mxu0 0.0
    %2173 = vmatpush2.msra.mxu0 0.0
    %2174 = vmatprep.subr.mxu0 0.0
    %2175 = vmatpush2.msra.mxu0 0.0
    %2176 = vmatprep.subr.mxu0 0.0
    %2177 = vmatpush2.msra.mxu0 0.0
    %2178 = vmatprep.subr.mxu0 0.0
    %2179 = vmatpush2.msra.mxu0 0.0
    %2180 = vmatprep.subr.mxu0 0.0
    %2181 = vmatpush2.msra.mxu0 0.0
    %2182 = vmatprep.subr.mxu0 0.0
    %2183 = vmatpush2.msra.mxu0 0.0
    %2184 = vmatprep.subr.mxu0 0.0
    %2185 = vmatpush2.msra.mxu0 0.0
    %2186 = vmatprep.subr.mxu0 0.0
    %2187 = vmatpush2.msra.mxu0 0.0
    %2188 = vmatprep.subr.mxu0 0.0
    %2189 = vmatpush2.msra.mxu0 0.0
    %2190 = vmatprep.subr.mxu0 0.0
    %2191 = vmatpush2.msra.mxu0 0.0
    %2192 = vmatprep.subr.mxu0 0.0
    %2193 = vmatpush2.msra.mxu0 0.0
    %2194 = vmatprep.subr.mxu0 0.0
    %2195 = vmatpush2.msra.mxu0 0.0
    %2196 = vmatprep.subr.mxu0 0.0
    %2197 = vmatpush2.msra.mxu0 0.0
    %2198 = vmatprep.subr.mxu0 0.0
    %2199 = vmatpush2.msra.mxu0 0.0
    %2200 = vmatprep.mubr.f32.mxu0 0.0
    %2201 = vmatmul.mubr.f32.gmra.mxu0 %v2036
    %v2202 = vpop.f32.mrf.mxu0
    %v2203 = vadd.f32 0.0, %v2202
    %v2204 = vpop.f32.mrf.mxu0
    %v2205 = vadd.f32 0.0, %v2204
    %2206 = vmatprep.mubr.f32.mxu0 0.0
    %2207 = vmatmul.mubr.f32.gmra.mxu0 %v2039
    %v2208 = vpop.f32.mrf.mxu0
    %v2209 = vadd.f32 0.0, %v2208
    %v2210 = vpop.f32.mrf.mxu0
    %v2211 = vadd.f32 0.0, %v2210
    %2212 = vmatprep.mubr.f32.mxu0 0.0
    %2213 = vmatmul.mubr.f32.gmra.mxu0 %v2042
    %v2214 = vpop.f32.mrf.mxu0
    %v2215 = vadd.f32 0.0, %v2214
    %v2216 = vpop.f32.mrf.mxu0
    %v2217 = vadd.f32 0.0, %v2216
    %2218 = vmatprep.mubr.f32.mxu0 0.0
    %2219 = vmatmul.mubr.f32.gmra.mxu0 %v2045
    %v2220 = vpop.f32.mrf.mxu0
    %v2221 = vadd.f32 0.0, %v2220
    %v2222 = vpop.f32.mrf.mxu0
    %v2223 = vadd.f32 0.0, %v2222
    %2224 = vdwg.mxu0
    %v2225 = vadd.f32 %v1962, %v2114
    %v2226 = vadd.f32 %v1963, %v2116
    %v2227 = vadd.f32 %v1964, %v2203
    %v2228 = vadd.f32 %v1965, %v2205
    %v2229 = vadd.f32 %v1966, %v2120
    %v2230 = vadd.f32 %v1967, %v2122
    %v2231 = vadd.f32 %v1968, %v2209
    %v2232 = vadd.f32 %v1969, %v2211
    %v2233 = vadd.f32 %v1970, %v2126
    %v2234 = vadd.f32 %v1971, %v2128
    %v2235 = vadd.f32 %v1972, %v2215
    %v2236 = vadd.f32 %v1973, %v2217
    %v2237 = vadd.f32 %v1974, %v2132
    %v2238 = vadd.f32 %v1975, %v2134
    %v2239 = vadd.f32 %v1976, %v2221
    %v2240 = vadd.f32 %v1977, %v2223
    %2241 = vset.pattern.permute.xlu0 8
    %2242 = vperm.xlu0 %2241, %v163
    %v2243 = vpop.permute.xlu0 %2242
    %2244 = vset.pattern.permute.xlu0 8
    %2245 = vperm.xlu0 %2244, %v164
    %v2246 = vpop.permute.xlu0 %2245
    %2247 = vset.pattern.permute.xlu0 8
    %2248 = vperm.xlu0 %2247, %v165
    %v2249 = vpop.permute.xlu0 %2248
    %2250 = vset.pattern.permute.xlu0 8
    %2251 = vperm.xlu0 %2250, %v166
    %v2252 = vpop.permute.xlu0 %2251
    %vm2253 = vcmp.eq.s32.totalorder %v2243, %v168
    %vm2254 = vcmp.eq.s32.totalorder %v2246, %v168
    %vm2255 = vcmp.eq.s32.totalorder %v2249, %v168
    %vm2256 = vcmp.eq.s32.totalorder %v2252, %v168
    %v2257 = vsel %vm2253, 1, 0
    %v2258 = vsel %vm2254, 1, 0
    %v2259 = vsel %vm2255, 1, 0
    %v2260 = vsel %vm2256, 1, 0
    %v2261 = vcvt.s32.f32 %v2257
    %v2262 = vcvt.s32.f32 %v2258
    %v2263 = vcvt.s32.f32 %v2259
    %v2264 = vcvt.s32.f32 %v2260
    %s2265 = scalar_lea.vmem [#allocation2], 2048
    %v2266 = vld [vmem:[%s2265] sm:$0xff]
    %v2267 = vld [vmem:[%s2265 + $0x8] sm:$0xff]
    %v2268 = vld [vmem:[%s2265 + $0x10] sm:$0xff]
    %v2269 = vld [vmem:[%s2265 + $0x18] sm:$0xff]
    %v2270 = vld [vmem:[%s2265 + $0x20] sm:$0xff]
    %v2271 = vld [vmem:[%s2265 + $0x28] sm:$0xff]
    %v2272 = vld [vmem:[%s2265 + $0x30] sm:$0xff]
    %v2273 = vld [vmem:[%s2265 + $0x38] sm:$0xff]
    %v2274 = vld [vmem:[%s2265 + $0x40] sm:$0xff]
    %v2275 = vld [vmem:[%s2265 + $0x48] sm:$0xff]
    %v2276 = vld [vmem:[%s2265 + $0x50] sm:$0xff]
    %v2277 = vld [vmem:[%s2265 + $0x58] sm:$0xff]
    %v2278 = vld [vmem:[%s2265 + $0x60] sm:$0xff]
    %v2279 = vld [vmem:[%s2265 + $0x68] sm:$0xff]
    %v2280 = vld [vmem:[%s2265 + $0x70] sm:$0xff]
    %v2281 = vld [vmem:[%s2265 + $0x78] sm:$0xff]
    %v2282 = vld [vmem:[%s2265 + $0x80] sm:$0xff]
    %v2283 = vld [vmem:[%s2265 + $0x88] sm:$0xff]
    %v2284 = vld [vmem:[%s2265 + $0x90] sm:$0xff]
    %v2285 = vld [vmem:[%s2265 + $0x98] sm:$0xff]
    %v2286 = vld [vmem:[%s2265 + $0xa0] sm:$0xff]
    %v2287 = vld [vmem:[%s2265 + $0xa8] sm:$0xff]
    %v2288 = vld [vmem:[%s2265 + $0xb0] sm:$0xff]
    %v2289 = vld [vmem:[%s2265 + $0xb8] sm:$0xff]
    %v2290 = vld [vmem:[%s2265 + $0xc0] sm:$0xff]
    %v2291 = vld [vmem:[%s2265 + $0xc8] sm:$0xff]
    %v2292 = vld [vmem:[%s2265 + $0xd0] sm:$0xff]
    %v2293 = vld [vmem:[%s2265 + $0xd8] sm:$0xff]
    %v2294 = vld [vmem:[%s2265 + $0xe0] sm:$0xff]
    %v2295 = vld [vmem:[%s2265 + $0xe8] sm:$0xff]
    %v2296 = vld [vmem:[%s2265 + $0xf0] sm:$0xff]
    %v2297 = vld [vmem:[%s2265 + $0xf8] sm:$0xff]
    %v2299 = vsel %vm282, %v2261, 0
    %v2302 = vsel %vm282, %v2262, 0
    %v2305 = vsel %vm282, %v2263, 0
    %v2308 = vsel %vm282, %v2264, 0
    %2310 = vmatprep.subr.mxu0 0.0
    %2311 = vmatpush1.msra.mxu0 0.0
    %2312 = vmatprep.subr.mxu0 0.0
    %2313 = vmatpush1.msra.mxu0 0.0
    %2314 = vmatprep.subr.mxu0 0.0
    %2315 = vmatpush1.msra.mxu0 0.0
    %2316 = vmatprep.subr.mxu0 0.0
    %2317 = vmatpush1.msra.mxu0 0.0
    %2318 = vmatprep.subr.mxu0 0.0
    %2319 = vmatpush1.msra.mxu0 0.0
    %2320 = vmatprep.subr.mxu0 0.0
    %2321 = vmatpush1.msra.mxu0 0.0
    %2322 = vmatprep.subr.mxu0 0.0
    %2323 = vmatpush1.msra.mxu0 0.0
    %2324 = vmatprep.subr.mxu0 0.0
    %2325 = vmatpush1.msra.mxu0 0.0
    %2326 = vmatprep.subr.mxu0 %v2295
    %2327 = vmatpush1.msra.mxu0 %v2294
    %2328 = vmatprep.subr.mxu0 %v2291
    %2329 = vmatpush1.msra.mxu0 %v2290
    %2330 = vmatprep.subr.mxu0 %v2287
    %2331 = vmatpush1.msra.mxu0 %v2286
    %2332 = vmatprep.subr.mxu0 %v2283
    %2333 = vmatpush1.msra.mxu0 %v2282
    %2334 = vmatprep.subr.mxu0 %v2279
    %2335 = vmatpush1.msra.mxu0 %v2278
    %2336 = vmatprep.subr.mxu0 %v2275
    %2337 = vmatpush1.msra.mxu0 %v2274
    %2338 = vmatprep.subr.mxu0 %v2271
    %2339 = vmatpush1.msra.mxu0 %v2270
    %2340 = vmatprep.subr.mxu0 %v2267
    %2341 = vmatpush1.msra.mxu0 %v2266
    %2342 = vmatprep.subr.mxu0 0.0
    %2343 = vmatpush2.msra.mxu0 0.0
    %2344 = vmatprep.subr.mxu0 0.0
    %2345 = vmatpush2.msra.mxu0 0.0
    %2346 = vmatprep.subr.mxu0 0.0
    %2347 = vmatpush2.msra.mxu0 0.0
    %2348 = vmatprep.subr.mxu0 0.0
    %2349 = vmatpush2.msra.mxu0 0.0
    %2350 = vmatprep.subr.mxu0 0.0
    %2351 = vmatpush2.msra.mxu0 0.0
    %2352 = vmatprep.subr.mxu0 0.0
    %2353 = vmatpush2.msra.mxu0 0.0
    %2354 = vmatprep.subr.mxu0 0.0
    %2355 = vmatpush2.msra.mxu0 0.0
    %2356 = vmatprep.subr.mxu0 0.0
    %2357 = vmatpush2.msra.mxu0 0.0
    %2358 = vmatprep.subr.mxu0 0.0
    %2359 = vmatpush2.msra.mxu0 0.0
    %2360 = vmatprep.subr.mxu0 0.0
    %2361 = vmatpush2.msra.mxu0 0.0
    %2362 = vmatprep.subr.mxu0 0.0
    %2363 = vmatpush2.msra.mxu0 0.0
    %2364 = vmatprep.subr.mxu0 0.0
    %2365 = vmatpush2.msra.mxu0 0.0
    %2366 = vmatprep.subr.mxu0 0.0
    %2367 = vmatpush2.msra.mxu0 0.0
    %2368 = vmatprep.subr.mxu0 0.0
    %2369 = vmatpush2.msra.mxu0 0.0
    %2370 = vmatprep.subr.mxu0 0.0
    %2371 = vmatpush2.msra.mxu0 0.0
    %2372 = vmatprep.subr.mxu0 0.0
    %2373 = vmatpush2.msra.mxu0 0.0
    %2374 = vmatprep.mubr.f32.mxu0 0.0
    %2375 = vmatmul.mubr.f32.gmra.mxu0 %v2299
    %v2376 = vpop.f32.mrf.mxu0
    %v2377 = vadd.f32 0.0, %v2376
    %v2378 = vpop.f32.mrf.mxu0
    %v2379 = vadd.f32 0.0, %v2378
    %2380 = vmatprep.mubr.f32.mxu0 0.0
    %2381 = vmatmul.mubr.f32.gmra.mxu0 %v2302
    %v2382 = vpop.f32.mrf.mxu0
    %v2383 = vadd.f32 0.0, %v2382
    %v2384 = vpop.f32.mrf.mxu0
    %v2385 = vadd.f32 0.0, %v2384
    %2386 = vmatprep.mubr.f32.mxu0 0.0
    %2387 = vmatmul.mubr.f32.gmra.mxu0 %v2305
    %v2388 = vpop.f32.mrf.mxu0
    %v2389 = vadd.f32 0.0, %v2388
    %v2390 = vpop.f32.mrf.mxu0
    %v2391 = vadd.f32 0.0, %v2390
    %2392 = vmatprep.mubr.f32.mxu0 0.0
    %2393 = vmatmul.mubr.f32.gmra.mxu0 %v2308
    %v2394 = vpop.f32.mrf.mxu0
    %v2395 = vadd.f32 0.0, %v2394
    %v2396 = vpop.f32.mrf.mxu0
    %v2397 = vadd.f32 0.0, %v2396
    %2398 = vdwg.mxu0
    %2399 = vmatprep.subr.mxu0 0.0
    %2400 = vmatpush1.msra.mxu0 0.0
    %2401 = vmatprep.subr.mxu0 0.0
    %2402 = vmatpush1.msra.mxu0 0.0
    %2403 = vmatprep.subr.mxu0 0.0
    %2404 = vmatpush1.msra.mxu0 0.0
    %2405 = vmatprep.subr.mxu0 0.0
    %2406 = vmatpush1.msra.mxu0 0.0
    %2407 = vmatprep.subr.mxu0 0.0
    %2408 = vmatpush1.msra.mxu0 0.0
    %2409 = vmatprep.subr.mxu0 0.0
    %2410 = vmatpush1.msra.mxu0 0.0
    %2411 = vmatprep.subr.mxu0 0.0
    %2412 = vmatpush1.msra.mxu0 0.0
    %2413 = vmatprep.subr.mxu0 0.0
    %2414 = vmatpush1.msra.mxu0 0.0
    %2415 = vmatprep.subr.mxu0 %v2297
    %2416 = vmatpush1.msra.mxu0 %v2296
    %2417 = vmatprep.subr.mxu0 %v2293
    %2418 = vmatpush1.msra.mxu0 %v2292
    %2419 = vmatprep.subr.mxu0 %v2289
    %2420 = vmatpush1.msra.mxu0 %v2288
    %2421 = vmatprep.subr.mxu0 %v2285
    %2422 = vmatpush1.msra.mxu0 %v2284
    %2423 = vmatprep.subr.mxu0 %v2281
    %2424 = vmatpush1.msra.mxu0 %v2280
    %2425 = vmatprep.subr.mxu0 %v2277
    %2426 = vmatpush1.msra.mxu0 %v2276
    %2427 = vmatprep.subr.mxu0 %v2273
    %2428 = vmatpush1.msra.mxu0 %v2272
    %2429 = vmatprep.subr.mxu0 %v2269
    %2430 = vmatpush1.msra.mxu0 %v2268
    %2431 = vmatprep.subr.mxu0 0.0
    %2432 = vmatpush2.msra.mxu0 0.0
    %2433 = vmatprep.subr.mxu0 0.0
    %2434 = vmatpush2.msra.mxu0 0.0
    %2435 = vmatprep.subr.mxu0 0.0
    %2436 = vmatpush2.msra.mxu0 0.0
    %2437 = vmatprep.subr.mxu0 0.0
    %2438 = vmatpush2.msra.mxu0 0.0
    %2439 = vmatprep.subr.mxu0 0.0
    %2440 = vmatpush2.msra.mxu0 0.0
    %2441 = vmatprep.subr.mxu0 0.0
    %2442 = vmatpush2.msra.mxu0 0.0
    %2443 = vmatprep.subr.mxu0 0.0
    %2444 = vmatpush2.msra.mxu0 0.0
    %2445 = vmatprep.subr.mxu0 0.0
    %2446 = vmatpush2.msra.mxu0 0.0
    %2447 = vmatprep.subr.mxu0 0.0
    %2448 = vmatpush2.msra.mxu0 0.0
    %2449 = vmatprep.subr.mxu0 0.0
    %2450 = vmatpush2.msra.mxu0 0.0
    %2451 = vmatprep.subr.mxu0 0.0
    %2452 = vmatpush2.msra.mxu0 0.0
    %2453 = vmatprep.subr.mxu0 0.0
    %2454 = vmatpush2.msra.mxu0 0.0
    %2455 = vmatprep.subr.mxu0 0.0
    %2456 = vmatpush2.msra.mxu0 0.0
    %2457 = vmatprep.subr.mxu0 0.0
    %2458 = vmatpush2.msra.mxu0 0.0
    %2459 = vmatprep.subr.mxu0 0.0
    %2460 = vmatpush2.msra.mxu0 0.0
    %2461 = vmatprep.subr.mxu0 0.0
    %2462 = vmatpush2.msra.mxu0 0.0
    %2463 = vmatprep.mubr.f32.mxu0 0.0
    %2464 = vmatmul.mubr.f32.gmra.mxu0 %v2299
    %v2465 = vpop.f32.mrf.mxu0
    %v2466 = vadd.f32 0.0, %v2465
    %v2467 = vpop.f32.mrf.mxu0
    %v2468 = vadd.f32 0.0, %v2467
    %2469 = vmatprep.mubr.f32.mxu0 0.0
    %2470 = vmatmul.mubr.f32.gmra.mxu0 %v2302
    %v2471 = vpop.f32.mrf.mxu0
    %v2472 = vadd.f32 0.0, %v2471
    %v2473 = vpop.f32.mrf.mxu0
    %v2474 = vadd.f32 0.0, %v2473
    %2475 = vmatprep.mubr.f32.mxu0 0.0
    %2476 = vmatmul.mubr.f32.gmra.mxu0 %v2305
    %v2477 = vpop.f32.mrf.mxu0
    %v2478 = vadd.f32 0.0, %v2477
    %v2479 = vpop.f32.mrf.mxu0
    %v2480 = vadd.f32 0.0, %v2479
    %2481 = vmatprep.mubr.f32.mxu0 0.0
    %2482 = vmatmul.mubr.f32.gmra.mxu0 %v2308
    %v2483 = vpop.f32.mrf.mxu0
    %v2484 = vadd.f32 0.0, %v2483
    %v2485 = vpop.f32.mrf.mxu0
    %v2486 = vadd.f32 0.0, %v2485
    %2487 = vdwg.mxu0
    %v2488 = vadd.f32 %v2225, %v2377
    %v2489 = vadd.f32 %v2226, %v2379
    %v2490 = vadd.f32 %v2227, %v2466
    %v2491 = vadd.f32 %v2228, %v2468
    %v2492 = vadd.f32 %v2229, %v2383
    %v2493 = vadd.f32 %v2230, %v2385
    %v2494 = vadd.f32 %v2231, %v2472
    %v2495 = vadd.f32 %v2232, %v2474
    %v2496 = vadd.f32 %v2233, %v2389
    %v2497 = vadd.f32 %v2234, %v2391
    %v2498 = vadd.f32 %v2235, %v2478
    %v2499 = vadd.f32 %v2236, %v2480
    %v2500 = vadd.f32 %v2237, %v2395
    %v2501 = vadd.f32 %v2238, %v2397
    %v2502 = vadd.f32 %v2239, %v2484
    %v2503 = vadd.f32 %v2240, %v2486
    %2504 = vset.pattern.permute.xlu0 9
    %2505 = vperm.xlu0 %2504, %v163
    %v2506 = vpop.permute.xlu0 %2505
    %2507 = vset.pattern.permute.xlu0 9
    %2508 = vperm.xlu0 %2507, %v164
    %v2509 = vpop.permute.xlu0 %2508
    %2510 = vset.pattern.permute.xlu0 9
    %2511 = vperm.xlu0 %2510, %v165
    %v2512 = vpop.permute.xlu0 %2511
    %2513 = vset.pattern.permute.xlu0 9
    %2514 = vperm.xlu0 %2513, %v166
    %v2515 = vpop.permute.xlu0 %2514
    %vm2516 = vcmp.eq.s32.totalorder %v2506, %v168
    %vm2517 = vcmp.eq.s32.totalorder %v2509, %v168
    %vm2518 = vcmp.eq.s32.totalorder %v2512, %v168
    %vm2519 = vcmp.eq.s32.totalorder %v2515, %v168
    %v2520 = vsel %vm2516, 1, 0
    %v2521 = vsel %vm2517, 1, 0
    %v2522 = vsel %vm2518, 1, 0
    %v2523 = vsel %vm2519, 1, 0
    %v2524 = vcvt.s32.f32 %v2520
    %v2525 = vcvt.s32.f32 %v2521
    %v2526 = vcvt.s32.f32 %v2522
    %v2527 = vcvt.s32.f32 %v2523
    %s2528 = scalar_lea.vmem [#allocation2], 2304
    %v2529 = vld [vmem:[%s2528] sm:$0xff]
    %v2530 = vld [vmem:[%s2528 + $0x8] sm:$0xff]
    %v2531 = vld [vmem:[%s2528 + $0x10] sm:$0xff]
    %v2532 = vld [vmem:[%s2528 + $0x18] sm:$0xff]
    %v2533 = vld [vmem:[%s2528 + $0x20] sm:$0xff]
    %v2534 = vld [vmem:[%s2528 + $0x28] sm:$0xff]
    %v2535 = vld [vmem:[%s2528 + $0x30] sm:$0xff]
    %v2536 = vld [vmem:[%s2528 + $0x38] sm:$0xff]
    %v2537 = vld [vmem:[%s2528 + $0x40] sm:$0xff]
    %v2538 = vld [vmem:[%s2528 + $0x48] sm:$0xff]
    %v2539 = vld [vmem:[%s2528 + $0x50] sm:$0xff]
    %v2540 = vld [vmem:[%s2528 + $0x58] sm:$0xff]
    %v2541 = vld [vmem:[%s2528 + $0x60] sm:$0xff]
    %v2542 = vld [vmem:[%s2528 + $0x68] sm:$0xff]
    %v2543 = vld [vmem:[%s2528 + $0x70] sm:$0xff]
    %v2544 = vld [vmem:[%s2528 + $0x78] sm:$0xff]
    %v2545 = vld [vmem:[%s2528 + $0x80] sm:$0xff]
    %v2546 = vld [vmem:[%s2528 + $0x88] sm:$0xff]
    %v2547 = vld [vmem:[%s2528 + $0x90] sm:$0xff]
    %v2548 = vld [vmem:[%s2528 + $0x98] sm:$0xff]
    %v2549 = vld [vmem:[%s2528 + $0xa0] sm:$0xff]
    %v2550 = vld [vmem:[%s2528 + $0xa8] sm:$0xff]
    %v2551 = vld [vmem:[%s2528 + $0xb0] sm:$0xff]
    %v2552 = vld [vmem:[%s2528 + $0xb8] sm:$0xff]
    %v2553 = vld [vmem:[%s2528 + $0xc0] sm:$0xff]
    %v2554 = vld [vmem:[%s2528 + $0xc8] sm:$0xff]
    %v2555 = vld [vmem:[%s2528 + $0xd0] sm:$0xff]
    %v2556 = vld [vmem:[%s2528 + $0xd8] sm:$0xff]
    %v2557 = vld [vmem:[%s2528 + $0xe0] sm:$0xff]
    %v2558 = vld [vmem:[%s2528 + $0xe8] sm:$0xff]
    %v2559 = vld [vmem:[%s2528 + $0xf0] sm:$0xff]
    %v2560 = vld [vmem:[%s2528 + $0xf8] sm:$0xff]
    %v2562 = vsel %vm282, %v2524, 0
    %v2565 = vsel %vm282, %v2525, 0
    %v2568 = vsel %vm282, %v2526, 0
    %v2571 = vsel %vm282, %v2527, 0
    %2573 = vmatprep.subr.mxu0 0.0
    %2574 = vmatpush1.msra.mxu0 0.0
    %2575 = vmatprep.subr.mxu0 0.0
    %2576 = vmatpush1.msra.mxu0 0.0
    %2577 = vmatprep.subr.mxu0 0.0
    %2578 = vmatpush1.msra.mxu0 0.0
    %2579 = vmatprep.subr.mxu0 0.0
    %2580 = vmatpush1.msra.mxu0 0.0
    %2581 = vmatprep.subr.mxu0 0.0
    %2582 = vmatpush1.msra.mxu0 0.0
    %2583 = vmatprep.subr.mxu0 0.0
    %2584 = vmatpush1.msra.mxu0 0.0
    %2585 = vmatprep.subr.mxu0 0.0
    %2586 = vmatpush1.msra.mxu0 0.0
    %2587 = vmatprep.subr.mxu0 0.0
    %2588 = vmatpush1.msra.mxu0 0.0
    %2589 = vmatprep.subr.mxu0 %v2558
    %2590 = vmatpush1.msra.mxu0 %v2557
    %2591 = vmatprep.subr.mxu0 %v2554
    %2592 = vmatpush1.msra.mxu0 %v2553
    %2593 = vmatprep.subr.mxu0 %v2550
    %2594 = vmatpush1.msra.mxu0 %v2549
    %2595 = vmatprep.subr.mxu0 %v2546
    %2596 = vmatpush1.msra.mxu0 %v2545
    %2597 = vmatprep.subr.mxu0 %v2542
    %2598 = vmatpush1.msra.mxu0 %v2541
    %2599 = vmatprep.subr.mxu0 %v2538
    %2600 = vmatpush1.msra.mxu0 %v2537
    %2601 = vmatprep.subr.mxu0 %v2534
    %2602 = vmatpush1.msra.mxu0 %v2533
    %2603 = vmatprep.subr.mxu0 %v2530
    %2604 = vmatpush1.msra.mxu0 %v2529
    %2605 = vmatprep.subr.mxu0 0.0
    %2606 = vmatpush2.msra.mxu0 0.0
    %2607 = vmatprep.subr.mxu0 0.0
    %2608 = vmatpush2.msra.mxu0 0.0
    %2609 = vmatprep.subr.mxu0 0.0
    %2610 = vmatpush2.msra.mxu0 0.0
    %2611 = vmatprep.subr.mxu0 0.0
    %2612 = vmatpush2.msra.mxu0 0.0
    %2613 = vmatprep.subr.mxu0 0.0
    %2614 = vmatpush2.msra.mxu0 0.0
    %2615 = vmatprep.subr.mxu0 0.0
    %2616 = vmatpush2.msra.mxu0 0.0
    %2617 = vmatprep.subr.mxu0 0.0
    %2618 = vmatpush2.msra.mxu0 0.0
    %2619 = vmatprep.subr.mxu0 0.0
    %2620 = vmatpush2.msra.mxu0 0.0
    %2621 = vmatprep.subr.mxu0 0.0
    %2622 = vmatpush2.msra.mxu0 0.0
    %2623 = vmatprep.subr.mxu0 0.0
    %2624 = vmatpush2.msra.mxu0 0.0
    %2625 = vmatprep.subr.mxu0 0.0
    %2626 = vmatpush2.msra.mxu0 0.0
    %2627 = vmatprep.subr.mxu0 0.0
    %2628 = vmatpush2.msra.mxu0 0.0
    %2629 = vmatprep.subr.mxu0 0.0
    %2630 = vmatpush2.msra.mxu0 0.0
    %2631 = vmatprep.subr.mxu0 0.0
    %2632 = vmatpush2.msra.mxu0 0.0
    %2633 = vmatprep.subr.mxu0 0.0
    %2634 = vmatpush2.msra.mxu0 0.0
    %2635 = vmatprep.subr.mxu0 0.0
    %2636 = vmatpush2.msra.mxu0 0.0
    %2637 = vmatprep.mubr.f32.mxu0 0.0
    %2638 = vmatmul.mubr.f32.gmra.mxu0 %v2562
    %v2639 = vpop.f32.mrf.mxu0
    %v2640 = vadd.f32 0.0, %v2639
    %v2641 = vpop.f32.mrf.mxu0
    %v2642 = vadd.f32 0.0, %v2641
    %2643 = vmatprep.mubr.f32.mxu0 0.0
    %2644 = vmatmul.mubr.f32.gmra.mxu0 %v2565
    %v2645 = vpop.f32.mrf.mxu0
    %v2646 = vadd.f32 0.0, %v2645
    %v2647 = vpop.f32.mrf.mxu0
    %v2648 = vadd.f32 0.0, %v2647
    %2649 = vmatprep.mubr.f32.mxu0 0.0
    %2650 = vmatmul.mubr.f32.gmra.mxu0 %v2568
    %v2651 = vpop.f32.mrf.mxu0
    %v2652 = vadd.f32 0.0, %v2651
    %v2653 = vpop.f32.mrf.mxu0
    %v2654 = vadd.f32 0.0, %v2653
    %2655 = vmatprep.mubr.f32.mxu0 0.0
    %2656 = vmatmul.mubr.f32.gmra.mxu0 %v2571
    %v2657 = vpop.f32.mrf.mxu0
    %v2658 = vadd.f32 0.0, %v2657
    %v2659 = vpop.f32.mrf.mxu0
    %v2660 = vadd.f32 0.0, %v2659
    %2661 = vdwg.mxu0
    %2662 = vmatprep.subr.mxu0 0.0
    %2663 = vmatpush1.msra.mxu0 0.0
    %2664 = vmatprep.subr.mxu0 0.0
    %2665 = vmatpush1.msra.mxu0 0.0
    %2666 = vmatprep.subr.mxu0 0.0
    %2667 = vmatpush1.msra.mxu0 0.0
    %2668 = vmatprep.subr.mxu0 0.0
    %2669 = vmatpush1.msra.mxu0 0.0
    %2670 = vmatprep.subr.mxu0 0.0
    %2671 = vmatpush1.msra.mxu0 0.0
    %2672 = vmatprep.subr.mxu0 0.0
    %2673 = vmatpush1.msra.mxu0 0.0
    %2674 = vmatprep.subr.mxu0 0.0
    %2675 = vmatpush1.msra.mxu0 0.0
    %2676 = vmatprep.subr.mxu0 0.0
    %2677 = vmatpush1.msra.mxu0 0.0
    %2678 = vmatprep.subr.mxu0 %v2560
    %2679 = vmatpush1.msra.mxu0 %v2559
    %2680 = vmatprep.subr.mxu0 %v2556
    %2681 = vmatpush1.msra.mxu0 %v2555
    %2682 = vmatprep.subr.mxu0 %v2552
    %2683 = vmatpush1.msra.mxu0 %v2551
    %2684 = vmatprep.subr.mxu0 %v2548
    %2685 = vmatpush1.msra.mxu0 %v2547
    %2686 = vmatprep.subr.mxu0 %v2544
    %2687 = vmatpush1.msra.mxu0 %v2543
    %2688 = vmatprep.subr.mxu0 %v2540
    %2689 = vmatpush1.msra.mxu0 %v2539
    %2690 = vmatprep.subr.mxu0 %v2536
    %2691 = vmatpush1.msra.mxu0 %v2535
    %2692 = vmatprep.subr.mxu0 %v2532
    %2693 = vmatpush1.msra.mxu0 %v2531
    %2694 = vmatprep.subr.mxu0 0.0
    %2695 = vmatpush2.msra.mxu0 0.0
    %2696 = vmatprep.subr.mxu0 0.0
    %2697 = vmatpush2.msra.mxu0 0.0
    %2698 = vmatprep.subr.mxu0 0.0
    %2699 = vmatpush2.msra.mxu0 0.0
    %2700 = vmatprep.subr.mxu0 0.0
    %2701 = vmatpush2.msra.mxu0 0.0
    %2702 = vmatprep.subr.mxu0 0.0
    %2703 = vmatpush2.msra.mxu0 0.0
    %2704 = vmatprep.subr.mxu0 0.0
    %2705 = vmatpush2.msra.mxu0 0.0
    %2706 = vmatprep.subr.mxu0 0.0
    %2707 = vmatpush2.msra.mxu0 0.0
    %2708 = vmatprep.subr.mxu0 0.0
    %2709 = vmatpush2.msra.mxu0 0.0
    %2710 = vmatprep.subr.mxu0 0.0
    %2711 = vmatpush2.msra.mxu0 0.0
    %2712 = vmatprep.subr.mxu0 0.0
    %2713 = vmatpush2.msra.mxu0 0.0
    %2714 = vmatprep.subr.mxu0 0.0
    %2715 = vmatpush2.msra.mxu0 0.0
    %2716 = vmatprep.subr.mxu0 0.0
    %2717 = vmatpush2.msra.mxu0 0.0
    %2718 = vmatprep.subr.mxu0 0.0
    %2719 = vmatpush2.msra.mxu0 0.0
    %2720 = vmatprep.subr.mxu0 0.0
    %2721 = vmatpush2.msra.mxu0 0.0
    %2722 = vmatprep.subr.mxu0 0.0
    %2723 = vmatpush2.msra.mxu0 0.0
    %2724 = vmatprep.subr.mxu0 0.0
    %2725 = vmatpush2.msra.mxu0 0.0
    %2726 = vmatprep.mubr.f32.mxu0 0.0
    %2727 = vmatmul.mubr.f32.gmra.mxu0 %v2562
    %v2728 = vpop.f32.mrf.mxu0
    %v2729 = vadd.f32 0.0, %v2728
    %v2730 = vpop.f32.mrf.mxu0
    %v2731 = vadd.f32 0.0, %v2730
    %2732 = vmatprep.mubr.f32.mxu0 0.0
    %2733 = vmatmul.mubr.f32.gmra.mxu0 %v2565
    %v2734 = vpop.f32.mrf.mxu0
    %v2735 = vadd.f32 0.0, %v2734
    %v2736 = vpop.f32.mrf.mxu0
    %v2737 = vadd.f32 0.0, %v2736
    %2738 = vmatprep.mubr.f32.mxu0 0.0
    %2739 = vmatmul.mubr.f32.gmra.mxu0 %v2568
    %v2740 = vpop.f32.mrf.mxu0
    %v2741 = vadd.f32 0.0, %v2740
    %v2742 = vpop.f32.mrf.mxu0
    %v2743 = vadd.f32 0.0, %v2742
    %2744 = vmatprep.mubr.f32.mxu0 0.0
    %2745 = vmatmul.mubr.f32.gmra.mxu0 %v2571
    %v2746 = vpop.f32.mrf.mxu0
    %v2747 = vadd.f32 0.0, %v2746
    %v2748 = vpop.f32.mrf.mxu0
    %v2749 = vadd.f32 0.0, %v2748
    %2750 = vdwg.mxu0
    %v2751 = vadd.f32 %v2488, %v2640
    %v2752 = vadd.f32 %v2489, %v2642
    %v2753 = vadd.f32 %v2490, %v2729
    %v2754 = vadd.f32 %v2491, %v2731
    %v2755 = vadd.f32 %v2492, %v2646
    %v2756 = vadd.f32 %v2493, %v2648
    %v2757 = vadd.f32 %v2494, %v2735
    %v2758 = vadd.f32 %v2495, %v2737
    %v2759 = vadd.f32 %v2496, %v2652
    %v2760 = vadd.f32 %v2497, %v2654
    %v2761 = vadd.f32 %v2498, %v2741
    %v2762 = vadd.f32 %v2499, %v2743
    %v2763 = vadd.f32 %v2500, %v2658
    %v2764 = vadd.f32 %v2501, %v2660
    %v2765 = vadd.f32 %v2502, %v2747
    %v2766 = vadd.f32 %v2503, %v2749
    %2767 = vset.pattern.permute.xlu0 10
    %2768 = vperm.xlu0 %2767, %v163
    %v2769 = vpop.permute.xlu0 %2768
    %2770 = vset.pattern.permute.xlu0 10
    %2771 = vperm.xlu0 %2770, %v164
    %v2772 = vpop.permute.xlu0 %2771
    %2773 = vset.pattern.permute.xlu0 10
    %2774 = vperm.xlu0 %2773, %v165
    %v2775 = vpop.permute.xlu0 %2774
    %2776 = vset.pattern.permute.xlu0 10
    %2777 = vperm.xlu0 %2776, %v166
    %v2778 = vpop.permute.xlu0 %2777
    %vm2779 = vcmp.eq.s32.totalorder %v2769, %v168
    %vm2780 = vcmp.eq.s32.totalorder %v2772, %v168
    %vm2781 = vcmp.eq.s32.totalorder %v2775, %v168
    %vm2782 = vcmp.eq.s32.totalorder %v2778, %v168
    %v2783 = vsel %vm2779, 1, 0
    %v2784 = vsel %vm2780, 1, 0
    %v2785 = vsel %vm2781, 1, 0
    %v2786 = vsel %vm2782, 1, 0
    %v2787 = vcvt.s32.f32 %v2783
    %v2788 = vcvt.s32.f32 %v2784
    %v2789 = vcvt.s32.f32 %v2785
    %v2790 = vcvt.s32.f32 %v2786
    %s2791 = scalar_lea.vmem [#allocation2], 2560
    %v2792 = vld [vmem:[%s2791] sm:$0xff]
    %v2793 = vld [vmem:[%s2791 + $0x8] sm:$0xff]
    %v2794 = vld [vmem:[%s2791 + $0x10] sm:$0xff]
    %v2795 = vld [vmem:[%s2791 + $0x18] sm:$0xff]
    %v2796 = vld [vmem:[%s2791 + $0x20] sm:$0xff]
    %v2797 = vld [vmem:[%s2791 + $0x28] sm:$0xff]
    %v2798 = vld [vmem:[%s2791 + $0x30] sm:$0xff]
    %v2799 = vld [vmem:[%s2791 + $0x38] sm:$0xff]
    %v2800 = vld [vmem:[%s2791 + $0x40] sm:$0xff]
    %v2801 = vld [vmem:[%s2791 + $0x48] sm:$0xff]
    %v2802 = vld [vmem:[%s2791 + $0x50] sm:$0xff]
    %v2803 = vld [vmem:[%s2791 + $0x58] sm:$0xff]
    %v2804 = vld [vmem:[%s2791 + $0x60] sm:$0xff]
    %v2805 = vld [vmem:[%s2791 + $0x68] sm:$0xff]
    %v2806 = vld [vmem:[%s2791 + $0x70] sm:$0xff]
    %v2807 = vld [vmem:[%s2791 + $0x78] sm:$0xff]
    %v2808 = vld [vmem:[%s2791 + $0x80] sm:$0xff]
    %v2809 = vld [vmem:[%s2791 + $0x88] sm:$0xff]
    %v2810 = vld [vmem:[%s2791 + $0x90] sm:$0xff]
    %v2811 = vld [vmem:[%s2791 + $0x98] sm:$0xff]
    %v2812 = vld [vmem:[%s2791 + $0xa0] sm:$0xff]
    %v2813 = vld [vmem:[%s2791 + $0xa8] sm:$0xff]
    %v2814 = vld [vmem:[%s2791 + $0xb0] sm:$0xff]
    %v2815 = vld [vmem:[%s2791 + $0xb8] sm:$0xff]
    %v2816 = vld [vmem:[%s2791 + $0xc0] sm:$0xff]
    %v2817 = vld [vmem:[%s2791 + $0xc8] sm:$0xff]
    %v2818 = vld [vmem:[%s2791 + $0xd0] sm:$0xff]
    %v2819 = vld [vmem:[%s2791 + $0xd8] sm:$0xff]
    %v2820 = vld [vmem:[%s2791 + $0xe0] sm:$0xff]
    %v2821 = vld [vmem:[%s2791 + $0xe8] sm:$0xff]
    %v2822 = vld [vmem:[%s2791 + $0xf0] sm:$0xff]
    %v2823 = vld [vmem:[%s2791 + $0xf8] sm:$0xff]
    %v2825 = vsel %vm282, %v2787, 0
    %v2828 = vsel %vm282, %v2788, 0
    %v2831 = vsel %vm282, %v2789, 0
    %v2834 = vsel %vm282, %v2790, 0
    %2836 = vmatprep.subr.mxu0 0.0
    %2837 = vmatpush1.msra.mxu0 0.0
    %2838 = vmatprep.subr.mxu0 0.0
    %2839 = vmatpush1.msra.mxu0 0.0
    %2840 = vmatprep.subr.mxu0 0.0
    %2841 = vmatpush1.msra.mxu0 0.0
    %2842 = vmatprep.subr.mxu0 0.0
    %2843 = vmatpush1.msra.mxu0 0.0
    %2844 = vmatprep.subr.mxu0 0.0
    %2845 = vmatpush1.msra.mxu0 0.0
    %2846 = vmatprep.subr.mxu0 0.0
    %2847 = vmatpush1.msra.mxu0 0.0
    %2848 = vmatprep.subr.mxu0 0.0
    %2849 = vmatpush1.msra.mxu0 0.0
    %2850 = vmatprep.subr.mxu0 0.0
    %2851 = vmatpush1.msra.mxu0 0.0
    %2852 = vmatprep.subr.mxu0 %v2821
    %2853 = vmatpush1.msra.mxu0 %v2820
    %2854 = vmatprep.subr.mxu0 %v2817
    %2855 = vmatpush1.msra.mxu0 %v2816
    %2856 = vmatprep.subr.mxu0 %v2813
    %2857 = vmatpush1.msra.mxu0 %v2812
    %2858 = vmatprep.subr.mxu0 %v2809
    %2859 = vmatpush1.msra.mxu0 %v2808
    %2860 = vmatprep.subr.mxu0 %v2805
    %2861 = vmatpush1.msra.mxu0 %v2804
    %2862 = vmatprep.subr.mxu0 %v2801
    %2863 = vmatpush1.msra.mxu0 %v2800
    %2864 = vmatprep.subr.mxu0 %v2797
    %2865 = vmatpush1.msra.mxu0 %v2796
    %2866 = vmatprep.subr.mxu0 %v2793
    %2867 = vmatpush1.msra.mxu0 %v2792
    %2868 = vmatprep.subr.mxu0 0.0
    %2869 = vmatpush2.msra.mxu0 0.0
    %2870 = vmatprep.subr.mxu0 0.0
    %2871 = vmatpush2.msra.mxu0 0.0
    %2872 = vmatprep.subr.mxu0 0.0
    %2873 = vmatpush2.msra.mxu0 0.0
    %2874 = vmatprep.subr.mxu0 0.0
    %2875 = vmatpush2.msra.mxu0 0.0
    %2876 = vmatprep.subr.mxu0 0.0
    %2877 = vmatpush2.msra.mxu0 0.0
    %2878 = vmatprep.subr.mxu0 0.0
    %2879 = vmatpush2.msra.mxu0 0.0
    %2880 = vmatprep.subr.mxu0 0.0
    %2881 = vmatpush2.msra.mxu0 0.0
    %2882 = vmatprep.subr.mxu0 0.0
    %2883 = vmatpush2.msra.mxu0 0.0
    %2884 = vmatprep.subr.mxu0 0.0
    %2885 = vmatpush2.msra.mxu0 0.0
    %2886 = vmatprep.subr.mxu0 0.0
    %2887 = vmatpush2.msra.mxu0 0.0
    %2888 = vmatprep.subr.mxu0 0.0
    %2889 = vmatpush2.msra.mxu0 0.0
    %2890 = vmatprep.subr.mxu0 0.0
    %2891 = vmatpush2.msra.mxu0 0.0
    %2892 = vmatprep.subr.mxu0 0.0
    %2893 = vmatpush2.msra.mxu0 0.0
    %2894 = vmatprep.subr.mxu0 0.0
    %2895 = vmatpush2.msra.mxu0 0.0
    %2896 = vmatprep.subr.mxu0 0.0
    %2897 = vmatpush2.msra.mxu0 0.0
    %2898 = vmatprep.subr.mxu0 0.0
    %2899 = vmatpush2.msra.mxu0 0.0
    %2900 = vmatprep.mubr.f32.mxu0 0.0
    %2901 = vmatmul.mubr.f32.gmra.mxu0 %v2825
    %v2902 = vpop.f32.mrf.mxu0
    %v2903 = vadd.f32 0.0, %v2902
    %v2904 = vpop.f32.mrf.mxu0
    %v2905 = vadd.f32 0.0, %v2904
    %2906 = vmatprep.mubr.f32.mxu0 0.0
    %2907 = vmatmul.mubr.f32.gmra.mxu0 %v2828
    %v2908 = vpop.f32.mrf.mxu0
    %v2909 = vadd.f32 0.0, %v2908
    %v2910 = vpop.f32.mrf.mxu0
    %v2911 = vadd.f32 0.0, %v2910
    %2912 = vmatprep.mubr.f32.mxu0 0.0
    %2913 = vmatmul.mubr.f32.gmra.mxu0 %v2831
    %v2914 = vpop.f32.mrf.mxu0
    %v2915 = vadd.f32 0.0, %v2914
    %v2916 = vpop.f32.mrf.mxu0
    %v2917 = vadd.f32 0.0, %v2916
    %2918 = vmatprep.mubr.f32.mxu0 0.0
    %2919 = vmatmul.mubr.f32.gmra.mxu0 %v2834
    %v2920 = vpop.f32.mrf.mxu0
    %v2921 = vadd.f32 0.0, %v2920
    %v2922 = vpop.f32.mrf.mxu0
    %v2923 = vadd.f32 0.0, %v2922
    %2924 = vdwg.mxu0
    %2925 = vmatprep.subr.mxu0 0.0
    %2926 = vmatpush1.msra.mxu0 0.0
    %2927 = vmatprep.subr.mxu0 0.0
    %2928 = vmatpush1.msra.mxu0 0.0
    %2929 = vmatprep.subr.mxu0 0.0
    %2930 = vmatpush1.msra.mxu0 0.0
    %2931 = vmatprep.subr.mxu0 0.0
    %2932 = vmatpush1.msra.mxu0 0.0
    %2933 = vmatprep.subr.mxu0 0.0
    %2934 = vmatpush1.msra.mxu0 0.0
    %2935 = vmatprep.subr.mxu0 0.0
    %2936 = vmatpush1.msra.mxu0 0.0
    %2937 = vmatprep.subr.mxu0 0.0
    %2938 = vmatpush1.msra.mxu0 0.0
    %2939 = vmatprep.subr.mxu0 0.0
    %2940 = vmatpush1.msra.mxu0 0.0
    %2941 = vmatprep.subr.mxu0 %v2823
    %2942 = vmatpush1.msra.mxu0 %v2822
    %2943 = vmatprep.subr.mxu0 %v2819
    %2944 = vmatpush1.msra.mxu0 %v2818
    %2945 = vmatprep.subr.mxu0 %v2815
    %2946 = vmatpush1.msra.mxu0 %v2814
    %2947 = vmatprep.subr.mxu0 %v2811
    %2948 = vmatpush1.msra.mxu0 %v2810
    %2949 = vmatprep.subr.mxu0 %v2807
    %2950 = vmatpush1.msra.mxu0 %v2806
    %2951 = vmatprep.subr.mxu0 %v2803
    %2952 = vmatpush1.msra.mxu0 %v2802
    %2953 = vmatprep.subr.mxu0 %v2799
    %2954 = vmatpush1.msra.mxu0 %v2798
    %2955 = vmatprep.subr.mxu0 %v2795
    %2956 = vmatpush1.msra.mxu0 %v2794
    %2957 = vmatprep.subr.mxu0 0.0
    %2958 = vmatpush2.msra.mxu0 0.0
    %2959 = vmatprep.subr.mxu0 0.0
    %2960 = vmatpush2.msra.mxu0 0.0
    %2961 = vmatprep.subr.mxu0 0.0
    %2962 = vmatpush2.msra.mxu0 0.0
    %2963 = vmatprep.subr.mxu0 0.0
    %2964 = vmatpush2.msra.mxu0 0.0
    %2965 = vmatprep.subr.mxu0 0.0
    %2966 = vmatpush2.msra.mxu0 0.0
    %2967 = vmatprep.subr.mxu0 0.0
    %2968 = vmatpush2.msra.mxu0 0.0
    %2969 = vmatprep.subr.mxu0 0.0
    %2970 = vmatpush2.msra.mxu0 0.0
    %2971 = vmatprep.subr.mxu0 0.0
    %2972 = vmatpush2.msra.mxu0 0.0
    %2973 = vmatprep.subr.mxu0 0.0
    %2974 = vmatpush2.msra.mxu0 0.0
    %2975 = vmatprep.subr.mxu0 0.0
    %2976 = vmatpush2.msra.mxu0 0.0
    %2977 = vmatprep.subr.mxu0 0.0
    %2978 = vmatpush2.msra.mxu0 0.0
    %2979 = vmatprep.subr.mxu0 0.0
    %2980 = vmatpush2.msra.mxu0 0.0
    %2981 = vmatprep.subr.mxu0 0.0
    %2982 = vmatpush2.msra.mxu0 0.0
    %2983 = vmatprep.subr.mxu0 0.0
    %2984 = vmatpush2.msra.mxu0 0.0
    %2985 = vmatprep.subr.mxu0 0.0
    %2986 = vmatpush2.msra.mxu0 0.0
    %2987 = vmatprep.subr.mxu0 0.0
    %2988 = vmatpush2.msra.mxu0 0.0
    %2989 = vmatprep.mubr.f32.mxu0 0.0
    %2990 = vmatmul.mubr.f32.gmra.mxu0 %v2825
    %v2991 = vpop.f32.mrf.mxu0
    %v2992 = vadd.f32 0.0, %v2991
    %v2993 = vpop.f32.mrf.mxu0
    %v2994 = vadd.f32 0.0, %v2993
    %2995 = vmatprep.mubr.f32.mxu0 0.0
    %2996 = vmatmul.mubr.f32.gmra.mxu0 %v2828
    %v2997 = vpop.f32.mrf.mxu0
    %v2998 = vadd.f32 0.0, %v2997
    %v2999 = vpop.f32.mrf.mxu0
    %v3000 = vadd.f32 0.0, %v2999
    %3001 = vmatprep.mubr.f32.mxu0 0.0
    %3002 = vmatmul.mubr.f32.gmra.mxu0 %v2831
    %v3003 = vpop.f32.mrf.mxu0
    %v3004 = vadd.f32 0.0, %v3003
    %v3005 = vpop.f32.mrf.mxu0
    %v3006 = vadd.f32 0.0, %v3005
    %3007 = vmatprep.mubr.f32.mxu0 0.0
    %3008 = vmatmul.mubr.f32.gmra.mxu0 %v2834
    %v3009 = vpop.f32.mrf.mxu0
    %v3010 = vadd.f32 0.0, %v3009
    %v3011 = vpop.f32.mrf.mxu0
    %v3012 = vadd.f32 0.0, %v3011
    %3013 = vdwg.mxu0
    %v3014 = vadd.f32 %v2751, %v2903
    %v3015 = vadd.f32 %v2752, %v2905
    %v3016 = vadd.f32 %v2753, %v2992
    %v3017 = vadd.f32 %v2754, %v2994
    %v3018 = vadd.f32 %v2755, %v2909
    %v3019 = vadd.f32 %v2756, %v2911
    %v3020 = vadd.f32 %v2757, %v2998
    %v3021 = vadd.f32 %v2758, %v3000
    %v3022 = vadd.f32 %v2759, %v2915
    %v3023 = vadd.f32 %v2760, %v2917
    %v3024 = vadd.f32 %v2761, %v3004
    %v3025 = vadd.f32 %v2762, %v3006
    %v3026 = vadd.f32 %v2763, %v2921
    %v3027 = vadd.f32 %v2764, %v2923
    %v3028 = vadd.f32 %v2765, %v3010
    %v3029 = vadd.f32 %v2766, %v3012
    %3030 = vset.pattern.permute.xlu0 11
    %3031 = vperm.xlu0 %3030, %v163
    %v3032 = vpop.permute.xlu0 %3031
    %3033 = vset.pattern.permute.xlu0 11
    %3034 = vperm.xlu0 %3033, %v164
    %v3035 = vpop.permute.xlu0 %3034
    %3036 = vset.pattern.permute.xlu0 11
    %3037 = vperm.xlu0 %3036, %v165
    %v3038 = vpop.permute.xlu0 %3037
    %3039 = vset.pattern.permute.xlu0 11
    %3040 = vperm.xlu0 %3039, %v166
    %v3041 = vpop.permute.xlu0 %3040
    %vm3042 = vcmp.eq.s32.totalorder %v3032, %v168
    %vm3043 = vcmp.eq.s32.totalorder %v3035, %v168
    %vm3044 = vcmp.eq.s32.totalorder %v3038, %v168
    %vm3045 = vcmp.eq.s32.totalorder %v3041, %v168
    %v3046 = vsel %vm3042, 1, 0
    %v3047 = vsel %vm3043, 1, 0
    %v3048 = vsel %vm3044, 1, 0
    %v3049 = vsel %vm3045, 1, 0
    %v3050 = vcvt.s32.f32 %v3046
    %v3051 = vcvt.s32.f32 %v3047
    %v3052 = vcvt.s32.f32 %v3048
    %v3053 = vcvt.s32.f32 %v3049
    %s3054 = scalar_lea.vmem [#allocation2], 2816
    %v3055 = vld [vmem:[%s3054] sm:$0xff]
    %v3056 = vld [vmem:[%s3054 + $0x8] sm:$0xff]
    %v3057 = vld [vmem:[%s3054 + $0x10] sm:$0xff]
    %v3058 = vld [vmem:[%s3054 + $0x18] sm:$0xff]
    %v3059 = vld [vmem:[%s3054 + $0x20] sm:$0xff]
    %v3060 = vld [vmem:[%s3054 + $0x28] sm:$0xff]
    %v3061 = vld [vmem:[%s3054 + $0x30] sm:$0xff]
    %v3062 = vld [vmem:[%s3054 + $0x38] sm:$0xff]
    %v3063 = vld [vmem:[%s3054 + $0x40] sm:$0xff]
    %v3064 = vld [vmem:[%s3054 + $0x48] sm:$0xff]
    %v3065 = vld [vmem:[%s3054 + $0x50] sm:$0xff]
    %v3066 = vld [vmem:[%s3054 + $0x58] sm:$0xff]
    %v3067 = vld [vmem:[%s3054 + $0x60] sm:$0xff]
    %v3068 = vld [vmem:[%s3054 + $0x68] sm:$0xff]
    %v3069 = vld [vmem:[%s3054 + $0x70] sm:$0xff]
    %v3070 = vld [vmem:[%s3054 + $0x78] sm:$0xff]
    %v3071 = vld [vmem:[%s3054 + $0x80] sm:$0xff]
    %v3072 = vld [vmem:[%s3054 + $0x88] sm:$0xff]
    %v3073 = vld [vmem:[%s3054 + $0x90] sm:$0xff]
    %v3074 = vld [vmem:[%s3054 + $0x98] sm:$0xff]
    %v3075 = vld [vmem:[%s3054 + $0xa0] sm:$0xff]
    %v3076 = vld [vmem:[%s3054 + $0xa8] sm:$0xff]
    %v3077 = vld [vmem:[%s3054 + $0xb0] sm:$0xff]
    %v3078 = vld [vmem:[%s3054 + $0xb8] sm:$0xff]
    %v3079 = vld [vmem:[%s3054 + $0xc0] sm:$0xff]
    %v3080 = vld [vmem:[%s3054 + $0xc8] sm:$0xff]
    %v3081 = vld [vmem:[%s3054 + $0xd0] sm:$0xff]
    %v3082 = vld [vmem:[%s3054 + $0xd8] sm:$0xff]
    %v3083 = vld [vmem:[%s3054 + $0xe0] sm:$0xff]
    %v3084 = vld [vmem:[%s3054 + $0xe8] sm:$0xff]
    %v3085 = vld [vmem:[%s3054 + $0xf0] sm:$0xff]
    %v3086 = vld [vmem:[%s3054 + $0xf8] sm:$0xff]
    %v3088 = vsel %vm282, %v3050, 0
    %v3091 = vsel %vm282, %v3051, 0
    %v3094 = vsel %vm282, %v3052, 0
    %v3097 = vsel %vm282, %v3053, 0
    %3099 = vmatprep.subr.mxu0 0.0
    %3100 = vmatpush1.msra.mxu0 0.0
    %3101 = vmatprep.subr.mxu0 0.0
    %3102 = vmatpush1.msra.mxu0 0.0
    %3103 = vmatprep.subr.mxu0 0.0
    %3104 = vmatpush1.msra.mxu0 0.0
    %3105 = vmatprep.subr.mxu0 0.0
    %3106 = vmatpush1.msra.mxu0 0.0
    %3107 = vmatprep.subr.mxu0 0.0
    %3108 = vmatpush1.msra.mxu0 0.0
    %3109 = vmatprep.subr.mxu0 0.0
    %3110 = vmatpush1.msra.mxu0 0.0
    %3111 = vmatprep.subr.mxu0 0.0
    %3112 = vmatpush1.msra.mxu0 0.0
    %3113 = vmatprep.subr.mxu0 0.0
    %3114 = vmatpush1.msra.mxu0 0.0
    %3115 = vmatprep.subr.mxu0 %v3084
    %3116 = vmatpush1.msra.mxu0 %v3083
    %3117 = vmatprep.subr.mxu0 %v3080
    %3118 = vmatpush1.msra.mxu0 %v3079
    %3119 = vmatprep.subr.mxu0 %v3076
    %3120 = vmatpush1.msra.mxu0 %v3075
    %3121 = vmatprep.subr.mxu0 %v3072
    %3122 = vmatpush1.msra.mxu0 %v3071
    %3123 = vmatprep.subr.mxu0 %v3068
    %3124 = vmatpush1.msra.mxu0 %v3067
    %3125 = vmatprep.subr.mxu0 %v3064
    %3126 = vmatpush1.msra.mxu0 %v3063
    %3127 = vmatprep.subr.mxu0 %v3060
    %3128 = vmatpush1.msra.mxu0 %v3059
    %3129 = vmatprep.subr.mxu0 %v3056
    %3130 = vmatpush1.msra.mxu0 %v3055
    %3131 = vmatprep.subr.mxu0 0.0
    %3132 = vmatpush2.msra.mxu0 0.0
    %3133 = vmatprep.subr.mxu0 0.0
    %3134 = vmatpush2.msra.mxu0 0.0
    %3135 = vmatprep.subr.mxu0 0.0
    %3136 = vmatpush2.msra.mxu0 0.0
    %3137 = vmatprep.subr.mxu0 0.0
    %3138 = vmatpush2.msra.mxu0 0.0
    %3139 = vmatprep.subr.mxu0 0.0
    %3140 = vmatpush2.msra.mxu0 0.0
    %3141 = vmatprep.subr.mxu0 0.0
    %3142 = vmatpush2.msra.mxu0 0.0
    %3143 = vmatprep.subr.mxu0 0.0
    %3144 = vmatpush2.msra.mxu0 0.0
    %3145 = vmatprep.subr.mxu0 0.0
    %3146 = vmatpush2.msra.mxu0 0.0
    %3147 = vmatprep.subr.mxu0 0.0
    %3148 = vmatpush2.msra.mxu0 0.0
    %3149 = vmatprep.subr.mxu0 0.0
    %3150 = vmatpush2.msra.mxu0 0.0
    %3151 = vmatprep.subr.mxu0 0.0
    %3152 = vmatpush2.msra.mxu0 0.0
    %3153 = vmatprep.subr.mxu0 0.0
    %3154 = vmatpush2.msra.mxu0 0.0
    %3155 = vmatprep.subr.mxu0 0.0
    %3156 = vmatpush2.msra.mxu0 0.0
    %3157 = vmatprep.subr.mxu0 0.0
    %3158 = vmatpush2.msra.mxu0 0.0
    %3159 = vmatprep.subr.mxu0 0.0
    %3160 = vmatpush2.msra.mxu0 0.0
    %3161 = vmatprep.subr.mxu0 0.0
    %3162 = vmatpush2.msra.mxu0 0.0
    %3163 = vmatprep.mubr.f32.mxu0 0.0
    %3164 = vmatmul.mubr.f32.gmra.mxu0 %v3088
    %v3165 = vpop.f32.mrf.mxu0
    %v3166 = vadd.f32 0.0, %v3165
    %v3167 = vpop.f32.mrf.mxu0
    %v3168 = vadd.f32 0.0, %v3167
    %3169 = vmatprep.mubr.f32.mxu0 0.0
    %3170 = vmatmul.mubr.f32.gmra.mxu0 %v3091
    %v3171 = vpop.f32.mrf.mxu0
    %v3172 = vadd.f32 0.0, %v3171
    %v3173 = vpop.f32.mrf.mxu0
    %v3174 = vadd.f32 0.0, %v3173
    %3175 = vmatprep.mubr.f32.mxu0 0.0
    %3176 = vmatmul.mubr.f32.gmra.mxu0 %v3094
    %v3177 = vpop.f32.mrf.mxu0
    %v3178 = vadd.f32 0.0, %v3177
    %v3179 = vpop.f32.mrf.mxu0
    %v3180 = vadd.f32 0.0, %v3179
    %3181 = vmatprep.mubr.f32.mxu0 0.0
    %3182 = vmatmul.mubr.f32.gmra.mxu0 %v3097
    %v3183 = vpop.f32.mrf.mxu0
    %v3184 = vadd.f32 0.0, %v3183
    %v3185 = vpop.f32.mrf.mxu0
    %v3186 = vadd.f32 0.0, %v3185
    %3187 = vdwg.mxu0
    %3188 = vmatprep.subr.mxu0 0.0
    %3189 = vmatpush1.msra.mxu0 0.0
    %3190 = vmatprep.subr.mxu0 0.0
    %3191 = vmatpush1.msra.mxu0 0.0
    %3192 = vmatprep.subr.mxu0 0.0
    %3193 = vmatpush1.msra.mxu0 0.0
    %3194 = vmatprep.subr.mxu0 0.0
    %3195 = vmatpush1.msra.mxu0 0.0
    %3196 = vmatprep.subr.mxu0 0.0
    %3197 = vmatpush1.msra.mxu0 0.0
    %3198 = vmatprep.subr.mxu0 0.0
    %3199 = vmatpush1.msra.mxu0 0.0
    %3200 = vmatprep.subr.mxu0 0.0
    %3201 = vmatpush1.msra.mxu0 0.0
    %3202 = vmatprep.subr.mxu0 0.0
    %3203 = vmatpush1.msra.mxu0 0.0
    %3204 = vmatprep.subr.mxu0 %v3086
    %3205 = vmatpush1.msra.mxu0 %v3085
    %3206 = vmatprep.subr.mxu0 %v3082
    %3207 = vmatpush1.msra.mxu0 %v3081
    %3208 = vmatprep.subr.mxu0 %v3078
    %3209 = vmatpush1.msra.mxu0 %v3077
    %3210 = vmatprep.subr.mxu0 %v3074
    %3211 = vmatpush1.msra.mxu0 %v3073
    %3212 = vmatprep.subr.mxu0 %v3070
    %3213 = vmatpush1.msra.mxu0 %v3069
    %3214 = vmatprep.subr.mxu0 %v3066
    %3215 = vmatpush1.msra.mxu0 %v3065
    %3216 = vmatprep.subr.mxu0 %v3062
    %3217 = vmatpush1.msra.mxu0 %v3061
    %3218 = vmatprep.subr.mxu0 %v3058
    %3219 = vmatpush1.msra.mxu0 %v3057
    %3220 = vmatprep.subr.mxu0 0.0
    %3221 = vmatpush2.msra.mxu0 0.0
    %3222 = vmatprep.subr.mxu0 0.0
    %3223 = vmatpush2.msra.mxu0 0.0
    %3224 = vmatprep.subr.mxu0 0.0
    %3225 = vmatpush2.msra.mxu0 0.0
    %3226 = vmatprep.subr.mxu0 0.0
    %3227 = vmatpush2.msra.mxu0 0.0
    %3228 = vmatprep.subr.mxu0 0.0
    %3229 = vmatpush2.msra.mxu0 0.0
    %3230 = vmatprep.subr.mxu0 0.0
    %3231 = vmatpush2.msra.mxu0 0.0
    %3232 = vmatprep.subr.mxu0 0.0
    %3233 = vmatpush2.msra.mxu0 0.0
    %3234 = vmatprep.subr.mxu0 0.0
    %3235 = vmatpush2.msra.mxu0 0.0
    %3236 = vmatprep.subr.mxu0 0.0
    %3237 = vmatpush2.msra.mxu0 0.0
    %3238 = vmatprep.subr.mxu0 0.0
    %3239 = vmatpush2.msra.mxu0 0.0
    %3240 = vmatprep.subr.mxu0 0.0
    %3241 = vmatpush2.msra.mxu0 0.0
    %3242 = vmatprep.subr.mxu0 0.0
    %3243 = vmatpush2.msra.mxu0 0.0
    %3244 = vmatprep.subr.mxu0 0.0
    %3245 = vmatpush2.msra.mxu0 0.0
    %3246 = vmatprep.subr.mxu0 0.0
    %3247 = vmatpush2.msra.mxu0 0.0
    %3248 = vmatprep.subr.mxu0 0.0
    %3249 = vmatpush2.msra.mxu0 0.0
    %3250 = vmatprep.subr.mxu0 0.0
    %3251 = vmatpush2.msra.mxu0 0.0
    %3252 = vmatprep.mubr.f32.mxu0 0.0
    %3253 = vmatmul.mubr.f32.gmra.mxu0 %v3088
    %v3254 = vpop.f32.mrf.mxu0
    %v3255 = vadd.f32 0.0, %v3254
    %v3256 = vpop.f32.mrf.mxu0
    %v3257 = vadd.f32 0.0, %v3256
    %3258 = vmatprep.mubr.f32.mxu0 0.0
    %3259 = vmatmul.mubr.f32.gmra.mxu0 %v3091
    %v3260 = vpop.f32.mrf.mxu0
    %v3261 = vadd.f32 0.0, %v3260
    %v3262 = vpop.f32.mrf.mxu0
    %v3263 = vadd.f32 0.0, %v3262
    %3264 = vmatprep.mubr.f32.mxu0 0.0
    %3265 = vmatmul.mubr.f32.gmra.mxu0 %v3094
    %v3266 = vpop.f32.mrf.mxu0
    %v3267 = vadd.f32 0.0, %v3266
    %v3268 = vpop.f32.mrf.mxu0
    %v3269 = vadd.f32 0.0, %v3268
    %3270 = vmatprep.mubr.f32.mxu0 0.0
    %3271 = vmatmul.mubr.f32.gmra.mxu0 %v3097
    %v3272 = vpop.f32.mrf.mxu0
    %v3273 = vadd.f32 0.0, %v3272
    %v3274 = vpop.f32.mrf.mxu0
    %v3275 = vadd.f32 0.0, %v3274
    %3276 = vdwg.mxu0
    %v3277 = vadd.f32 %v3014, %v3166
    %v3278 = vadd.f32 %v3015, %v3168
    %v3279 = vadd.f32 %v3016, %v3255
    %v3280 = vadd.f32 %v3017, %v3257
    %v3281 = vadd.f32 %v3018, %v3172
    %v3282 = vadd.f32 %v3019, %v3174
    %v3283 = vadd.f32 %v3020, %v3261
    %v3284 = vadd.f32 %v3021, %v3263
    %v3285 = vadd.f32 %v3022, %v3178
    %v3286 = vadd.f32 %v3023, %v3180
    %v3287 = vadd.f32 %v3024, %v3267
    %v3288 = vadd.f32 %v3025, %v3269
    %v3289 = vadd.f32 %v3026, %v3184
    %v3290 = vadd.f32 %v3027, %v3186
    %v3291 = vadd.f32 %v3028, %v3273
    %v3292 = vadd.f32 %v3029, %v3275
    %3293 = vset.pattern.permute.xlu0 12
    %3294 = vperm.xlu0 %3293, %v163
    %v3295 = vpop.permute.xlu0 %3294
    %3296 = vset.pattern.permute.xlu0 12
    %3297 = vperm.xlu0 %3296, %v164
    %v3298 = vpop.permute.xlu0 %3297
    %3299 = vset.pattern.permute.xlu0 12
    %3300 = vperm.xlu0 %3299, %v165
    %v3301 = vpop.permute.xlu0 %3300
    %3302 = vset.pattern.permute.xlu0 12
    %3303 = vperm.xlu0 %3302, %v166
    %v3304 = vpop.permute.xlu0 %3303
    %vm3305 = vcmp.eq.s32.totalorder %v3295, %v168
    %vm3306 = vcmp.eq.s32.totalorder %v3298, %v168
    %vm3307 = vcmp.eq.s32.totalorder %v3301, %v168
    %vm3308 = vcmp.eq.s32.totalorder %v3304, %v168
    %v3309 = vsel %vm3305, 1, 0
    %v3310 = vsel %vm3306, 1, 0
    %v3311 = vsel %vm3307, 1, 0
    %v3312 = vsel %vm3308, 1, 0
    %v3313 = vcvt.s32.f32 %v3309
    %v3314 = vcvt.s32.f32 %v3310
    %v3315 = vcvt.s32.f32 %v3311
    %v3316 = vcvt.s32.f32 %v3312
    %s3317 = scalar_lea.vmem [#allocation2], 3072
    %v3318 = vld [vmem:[%s3317] sm:$0xff]
    %v3319 = vld [vmem:[%s3317 + $0x8] sm:$0xff]
    %v3320 = vld [vmem:[%s3317 + $0x10] sm:$0xff]
    %v3321 = vld [vmem:[%s3317 + $0x18] sm:$0xff]
    %v3322 = vld [vmem:[%s3317 + $0x20] sm:$0xff]
    %v3323 = vld [vmem:[%s3317 + $0x28] sm:$0xff]
    %v3324 = vld [vmem:[%s3317 + $0x30] sm:$0xff]
    %v3325 = vld [vmem:[%s3317 + $0x38] sm:$0xff]
    %v3326 = vld [vmem:[%s3317 + $0x40] sm:$0xff]
    %v3327 = vld [vmem:[%s3317 + $0x48] sm:$0xff]
    %v3328 = vld [vmem:[%s3317 + $0x50] sm:$0xff]
    %v3329 = vld [vmem:[%s3317 + $0x58] sm:$0xff]
    %v3330 = vld [vmem:[%s3317 + $0x60] sm:$0xff]
    %v3331 = vld [vmem:[%s3317 + $0x68] sm:$0xff]
    %v3332 = vld [vmem:[%s3317 + $0x70] sm:$0xff]
    %v3333 = vld [vmem:[%s3317 + $0x78] sm:$0xff]
    %v3334 = vld [vmem:[%s3317 + $0x80] sm:$0xff]
    %v3335 = vld [vmem:[%s3317 + $0x88] sm:$0xff]
    %v3336 = vld [vmem:[%s3317 + $0x90] sm:$0xff]
    %v3337 = vld [vmem:[%s3317 + $0x98] sm:$0xff]
    %v3338 = vld [vmem:[%s3317 + $0xa0] sm:$0xff]
    %v3339 = vld [vmem:[%s3317 + $0xa8] sm:$0xff]
    %v3340 = vld [vmem:[%s3317 + $0xb0] sm:$0xff]
    %v3341 = vld [vmem:[%s3317 + $0xb8] sm:$0xff]
    %v3342 = vld [vmem:[%s3317 + $0xc0] sm:$0xff]
    %v3343 = vld [vmem:[%s3317 + $0xc8] sm:$0xff]
    %v3344 = vld [vmem:[%s3317 + $0xd0] sm:$0xff]
    %v3345 = vld [vmem:[%s3317 + $0xd8] sm:$0xff]
    %v3346 = vld [vmem:[%s3317 + $0xe0] sm:$0xff]
    %v3347 = vld [vmem:[%s3317 + $0xe8] sm:$0xff]
    %v3348 = vld [vmem:[%s3317 + $0xf0] sm:$0xff]
    %v3349 = vld [vmem:[%s3317 + $0xf8] sm:$0xff]
    %v3351 = vsel %vm282, %v3313, 0
    %v3354 = vsel %vm282, %v3314, 0
    %v3357 = vsel %vm282, %v3315, 0
    %v3360 = vsel %vm282, %v3316, 0
    %3362 = vmatprep.subr.mxu0 0.0
    %3363 = vmatpush1.msra.mxu0 0.0
    %3364 = vmatprep.subr.mxu0 0.0
    %3365 = vmatpush1.msra.mxu0 0.0
    %3366 = vmatprep.subr.mxu0 0.0
    %3367 = vmatpush1.msra.mxu0 0.0
    %3368 = vmatprep.subr.mxu0 0.0
    %3369 = vmatpush1.msra.mxu0 0.0
    %3370 = vmatprep.subr.mxu0 0.0
    %3371 = vmatpush1.msra.mxu0 0.0
    %3372 = vmatprep.subr.mxu0 0.0
    %3373 = vmatpush1.msra.mxu0 0.0
    %3374 = vmatprep.subr.mxu0 0.0
    %3375 = vmatpush1.msra.mxu0 0.0
    %3376 = vmatprep.subr.mxu0 0.0
    %3377 = vmatpush1.msra.mxu0 0.0
    %3378 = vmatprep.subr.mxu0 %v3347
    %3379 = vmatpush1.msra.mxu0 %v3346
    %3380 = vmatprep.subr.mxu0 %v3343
    %3381 = vmatpush1.msra.mxu0 %v3342
    %3382 = vmatprep.subr.mxu0 %v3339
    %3383 = vmatpush1.msra.mxu0 %v3338
    %3384 = vmatprep.subr.mxu0 %v3335
    %3385 = vmatpush1.msra.mxu0 %v3334
    %3386 = vmatprep.subr.mxu0 %v3331
    %3387 = vmatpush1.msra.mxu0 %v3330
    %3388 = vmatprep.subr.mxu0 %v3327
    %3389 = vmatpush1.msra.mxu0 %v3326
    %3390 = vmatprep.subr.mxu0 %v3323
    %3391 = vmatpush1.msra.mxu0 %v3322
    %3392 = vmatprep.subr.mxu0 %v3319
    %3393 = vmatpush1.msra.mxu0 %v3318
    %3394 = vmatprep.subr.mxu0 0.0
    %3395 = vmatpush2.msra.mxu0 0.0
    %3396 = vmatprep.subr.mxu0 0.0
    %3397 = vmatpush2.msra.mxu0 0.0
    %3398 = vmatprep.subr.mxu0 0.0
    %3399 = vmatpush2.msra.mxu0 0.0
    %3400 = vmatprep.subr.mxu0 0.0
    %3401 = vmatpush2.msra.mxu0 0.0
    %3402 = vmatprep.subr.mxu0 0.0
    %3403 = vmatpush2.msra.mxu0 0.0
    %3404 = vmatprep.subr.mxu0 0.0
    %3405 = vmatpush2.msra.mxu0 0.0
    %3406 = vmatprep.subr.mxu0 0.0
    %3407 = vmatpush2.msra.mxu0 0.0
    %3408 = vmatprep.subr.mxu0 0.0
    %3409 = vmatpush2.msra.mxu0 0.0
    %3410 = vmatprep.subr.mxu0 0.0
    %3411 = vmatpush2.msra.mxu0 0.0
    %3412 = vmatprep.subr.mxu0 0.0
    %3413 = vmatpush2.msra.mxu0 0.0
    %3414 = vmatprep.subr.mxu0 0.0
    %3415 = vmatpush2.msra.mxu0 0.0
    %3416 = vmatprep.subr.mxu0 0.0
    %3417 = vmatpush2.msra.mxu0 0.0
    %3418 = vmatprep.subr.mxu0 0.0
    %3419 = vmatpush2.msra.mxu0 0.0
    %3420 = vmatprep.subr.mxu0 0.0
    %3421 = vmatpush2.msra.mxu0 0.0
    %3422 = vmatprep.subr.mxu0 0.0
    %3423 = vmatpush2.msra.mxu0 0.0
    %3424 = vmatprep.subr.mxu0 0.0
    %3425 = vmatpush2.msra.mxu0 0.0
    %3426 = vmatprep.mubr.f32.mxu0 0.0
    %3427 = vmatmul.mubr.f32.gmra.mxu0 %v3351
    %v3428 = vpop.f32.mrf.mxu0
    %v3429 = vadd.f32 0.0, %v3428
    %v3430 = vpop.f32.mrf.mxu0
    %v3431 = vadd.f32 0.0, %v3430
    %3432 = vmatprep.mubr.f32.mxu0 0.0
    %3433 = vmatmul.mubr.f32.gmra.mxu0 %v3354
    %v3434 = vpop.f32.mrf.mxu0
    %v3435 = vadd.f32 0.0, %v3434
    %v3436 = vpop.f32.mrf.mxu0
    %v3437 = vadd.f32 0.0, %v3436
    %3438 = vmatprep.mubr.f32.mxu0 0.0
    %3439 = vmatmul.mubr.f32.gmra.mxu0 %v3357
    %v3440 = vpop.f32.mrf.mxu0
    %v3441 = vadd.f32 0.0, %v3440
    %v3442 = vpop.f32.mrf.mxu0
    %v3443 = vadd.f32 0.0, %v3442
    %3444 = vmatprep.mubr.f32.mxu0 0.0
    %3445 = vmatmul.mubr.f32.gmra.mxu0 %v3360
    %v3446 = vpop.f32.mrf.mxu0
    %v3447 = vadd.f32 0.0, %v3446
    %v3448 = vpop.f32.mrf.mxu0
    %v3449 = vadd.f32 0.0, %v3448
    %3450 = vdwg.mxu0
    %3451 = vmatprep.subr.mxu0 0.0
    %3452 = vmatpush1.msra.mxu0 0.0
    %3453 = vmatprep.subr.mxu0 0.0
    %3454 = vmatpush1.msra.mxu0 0.0
    %3455 = vmatprep.subr.mxu0 0.0
    %3456 = vmatpush1.msra.mxu0 0.0
    %3457 = vmatprep.subr.mxu0 0.0
    %3458 = vmatpush1.msra.mxu0 0.0
    %3459 = vmatprep.subr.mxu0 0.0
    %3460 = vmatpush1.msra.mxu0 0.0
    %3461 = vmatprep.subr.mxu0 0.0
    %3462 = vmatpush1.msra.mxu0 0.0
    %3463 = vmatprep.subr.mxu0 0.0
    %3464 = vmatpush1.msra.mxu0 0.0
    %3465 = vmatprep.subr.mxu0 0.0
    %3466 = vmatpush1.msra.mxu0 0.0
    %3467 = vmatprep.subr.mxu0 %v3349
    %3468 = vmatpush1.msra.mxu0 %v3348
    %3469 = vmatprep.subr.mxu0 %v3345
    %3470 = vmatpush1.msra.mxu0 %v3344
    %3471 = vmatprep.subr.mxu0 %v3341
    %3472 = vmatpush1.msra.mxu0 %v3340
    %3473 = vmatprep.subr.mxu0 %v3337
    %3474 = vmatpush1.msra.mxu0 %v3336
    %3475 = vmatprep.subr.mxu0 %v3333
    %3476 = vmatpush1.msra.mxu0 %v3332
    %3477 = vmatprep.subr.mxu0 %v3329
    %3478 = vmatpush1.msra.mxu0 %v3328
    %3479 = vmatprep.subr.mxu0 %v3325
    %3480 = vmatpush1.msra.mxu0 %v3324
    %3481 = vmatprep.subr.mxu0 %v3321
    %3482 = vmatpush1.msra.mxu0 %v3320
    %3483 = vmatprep.subr.mxu0 0.0
    %3484 = vmatpush2.msra.mxu0 0.0
    %3485 = vmatprep.subr.mxu0 0.0
    %3486 = vmatpush2.msra.mxu0 0.0
    %3487 = vmatprep.subr.mxu0 0.0
    %3488 = vmatpush2.msra.mxu0 0.0
    %3489 = vmatprep.subr.mxu0 0.0
    %3490 = vmatpush2.msra.mxu0 0.0
    %3491 = vmatprep.subr.mxu0 0.0
    %3492 = vmatpush2.msra.mxu0 0.0
    %3493 = vmatprep.subr.mxu0 0.0
    %3494 = vmatpush2.msra.mxu0 0.0
    %3495 = vmatprep.subr.mxu0 0.0
    %3496 = vmatpush2.msra.mxu0 0.0
    %3497 = vmatprep.subr.mxu0 0.0
    %3498 = vmatpush2.msra.mxu0 0.0
    %3499 = vmatprep.subr.mxu0 0.0
    %3500 = vmatpush2.msra.mxu0 0.0
    %3501 = vmatprep.subr.mxu0 0.0
    %3502 = vmatpush2.msra.mxu0 0.0
    %3503 = vmatprep.subr.mxu0 0.0
    %3504 = vmatpush2.msra.mxu0 0.0
    %3505 = vmatprep.subr.mxu0 0.0
    %3506 = vmatpush2.msra.mxu0 0.0
    %3507 = vmatprep.subr.mxu0 0.0
    %3508 = vmatpush2.msra.mxu0 0.0
    %3509 = vmatprep.subr.mxu0 0.0
    %3510 = vmatpush2.msra.mxu0 0.0
    %3511 = vmatprep.subr.mxu0 0.0
    %3512 = vmatpush2.msra.mxu0 0.0
    %3513 = vmatprep.subr.mxu0 0.0
    %3514 = vmatpush2.msra.mxu0 0.0
    %3515 = vmatprep.mubr.f32.mxu0 0.0
    %3516 = vmatmul.mubr.f32.gmra.mxu0 %v3351
    %v3517 = vpop.f32.mrf.mxu0
    %v3518 = vadd.f32 0.0, %v3517
    %v3519 = vpop.f32.mrf.mxu0
    %v3520 = vadd.f32 0.0, %v3519
    %3521 = vmatprep.mubr.f32.mxu0 0.0
    %3522 = vmatmul.mubr.f32.gmra.mxu0 %v3354
    %v3523 = vpop.f32.mrf.mxu0
    %v3524 = vadd.f32 0.0, %v3523
    %v3525 = vpop.f32.mrf.mxu0
    %v3526 = vadd.f32 0.0, %v3525
    %3527 = vmatprep.mubr.f32.mxu0 0.0
    %3528 = vmatmul.mubr.f32.gmra.mxu0 %v3357
    %v3529 = vpop.f32.mrf.mxu0
    %v3530 = vadd.f32 0.0, %v3529
    %v3531 = vpop.f32.mrf.mxu0
    %v3532 = vadd.f32 0.0, %v3531
    %3533 = vmatprep.mubr.f32.mxu0 0.0
    %3534 = vmatmul.mubr.f32.gmra.mxu0 %v3360
    %v3535 = vpop.f32.mrf.mxu0
    %v3536 = vadd.f32 0.0, %v3535
    %v3537 = vpop.f32.mrf.mxu0
    %v3538 = vadd.f32 0.0, %v3537
    %3539 = vdwg.mxu0
    %v3540 = vadd.f32 %v3277, %v3429
    %v3541 = vadd.f32 %v3278, %v3431
    %v3542 = vadd.f32 %v3279, %v3518
    %v3543 = vadd.f32 %v3280, %v3520
    %v3544 = vadd.f32 %v3281, %v3435
    %v3545 = vadd.f32 %v3282, %v3437
    %v3546 = vadd.f32 %v3283, %v3524
    %v3547 = vadd.f32 %v3284, %v3526
    %v3548 = vadd.f32 %v3285, %v3441
    %v3549 = vadd.f32 %v3286, %v3443
    %v3550 = vadd.f32 %v3287, %v3530
    %v3551 = vadd.f32 %v3288, %v3532
    %v3552 = vadd.f32 %v3289, %v3447
    %v3553 = vadd.f32 %v3290, %v3449
    %v3554 = vadd.f32 %v3291, %v3536
    %v3555 = vadd.f32 %v3292, %v3538
    %3556 = vset.pattern.permute.xlu0 13
    %3557 = vperm.xlu0 %3556, %v163
    %v3558 = vpop.permute.xlu0 %3557
    %3559 = vset.pattern.permute.xlu0 13
    %3560 = vperm.xlu0 %3559, %v164
    %v3561 = vpop.permute.xlu0 %3560
    %3562 = vset.pattern.permute.xlu0 13
    %3563 = vperm.xlu0 %3562, %v165
    %v3564 = vpop.permute.xlu0 %3563
    %3565 = vset.pattern.permute.xlu0 13
    %3566 = vperm.xlu0 %3565, %v166
    %v3567 = vpop.permute.xlu0 %3566
    %vm3568 = vcmp.eq.s32.totalorder %v3558, %v168
    %vm3569 = vcmp.eq.s32.totalorder %v3561, %v168
    %vm3570 = vcmp.eq.s32.totalorder %v3564, %v168
    %vm3571 = vcmp.eq.s32.totalorder %v3567, %v168
    %v3572 = vsel %vm3568, 1, 0
    %v3573 = vsel %vm3569, 1, 0
    %v3574 = vsel %vm3570, 1, 0
    %v3575 = vsel %vm3571, 1, 0
    %v3576 = vcvt.s32.f32 %v3572
    %v3577 = vcvt.s32.f32 %v3573
    %v3578 = vcvt.s32.f32 %v3574
    %v3579 = vcvt.s32.f32 %v3575
    %s3580 = scalar_lea.vmem [#allocation2], 3328
    %v3581 = vld [vmem:[%s3580] sm:$0xff]
    %v3582 = vld [vmem:[%s3580 + $0x8] sm:$0xff]
    %v3583 = vld [vmem:[%s3580 + $0x10] sm:$0xff]
    %v3584 = vld [vmem:[%s3580 + $0x18] sm:$0xff]
    %v3585 = vld [vmem:[%s3580 + $0x20] sm:$0xff]
    %v3586 = vld [vmem:[%s3580 + $0x28] sm:$0xff]
    %v3587 = vld [vmem:[%s3580 + $0x30] sm:$0xff]
    %v3588 = vld [vmem:[%s3580 + $0x38] sm:$0xff]
    %v3589 = vld [vmem:[%s3580 + $0x40] sm:$0xff]
    %v3590 = vld [vmem:[%s3580 + $0x48] sm:$0xff]
    %v3591 = vld [vmem:[%s3580 + $0x50] sm:$0xff]
    %v3592 = vld [vmem:[%s3580 + $0x58] sm:$0xff]
    %v3593 = vld [vmem:[%s3580 + $0x60] sm:$0xff]
    %v3594 = vld [vmem:[%s3580 + $0x68] sm:$0xff]
    %v3595 = vld [vmem:[%s3580 + $0x70] sm:$0xff]
    %v3596 = vld [vmem:[%s3580 + $0x78] sm:$0xff]
    %v3597 = vld [vmem:[%s3580 + $0x80] sm:$0xff]
    %v3598 = vld [vmem:[%s3580 + $0x88] sm:$0xff]
    %v3599 = vld [vmem:[%s3580 + $0x90] sm:$0xff]
    %v3600 = vld [vmem:[%s3580 + $0x98] sm:$0xff]
    %v3601 = vld [vmem:[%s3580 + $0xa0] sm:$0xff]
    %v3602 = vld [vmem:[%s3580 + $0xa8] sm:$0xff]
    %v3603 = vld [vmem:[%s3580 + $0xb0] sm:$0xff]
    %v3604 = vld [vmem:[%s3580 + $0xb8] sm:$0xff]
    %v3605 = vld [vmem:[%s3580 + $0xc0] sm:$0xff]
    %v3606 = vld [vmem:[%s3580 + $0xc8] sm:$0xff]
    %v3607 = vld [vmem:[%s3580 + $0xd0] sm:$0xff]
    %v3608 = vld [vmem:[%s3580 + $0xd8] sm:$0xff]
    %v3609 = vld [vmem:[%s3580 + $0xe0] sm:$0xff]
    %v3610 = vld [vmem:[%s3580 + $0xe8] sm:$0xff]
    %v3611 = vld [vmem:[%s3580 + $0xf0] sm:$0xff]
    %v3612 = vld [vmem:[%s3580 + $0xf8] sm:$0xff]
    %v3614 = vsel %vm282, %v3576, 0
    %v3617 = vsel %vm282, %v3577, 0
    %v3620 = vsel %vm282, %v3578, 0
    %v3623 = vsel %vm282, %v3579, 0
    %3625 = vmatprep.subr.mxu0 0.0
    %3626 = vmatpush1.msra.mxu0 0.0
    %3627 = vmatprep.subr.mxu0 0.0
    %3628 = vmatpush1.msra.mxu0 0.0
    %3629 = vmatprep.subr.mxu0 0.0
    %3630 = vmatpush1.msra.mxu0 0.0
    %3631 = vmatprep.subr.mxu0 0.0
    %3632 = vmatpush1.msra.mxu0 0.0
    %3633 = vmatprep.subr.mxu0 0.0
    %3634 = vmatpush1.msra.mxu0 0.0
    %3635 = vmatprep.subr.mxu0 0.0
    %3636 = vmatpush1.msra.mxu0 0.0
    %3637 = vmatprep.subr.mxu0 0.0
    %3638 = vmatpush1.msra.mxu0 0.0
    %3639 = vmatprep.subr.mxu0 0.0
    %3640 = vmatpush1.msra.mxu0 0.0
    %3641 = vmatprep.subr.mxu0 %v3610
    %3642 = vmatpush1.msra.mxu0 %v3609
    %3643 = vmatprep.subr.mxu0 %v3606
    %3644 = vmatpush1.msra.mxu0 %v3605
    %3645 = vmatprep.subr.mxu0 %v3602
    %3646 = vmatpush1.msra.mxu0 %v3601
    %3647 = vmatprep.subr.mxu0 %v3598
    %3648 = vmatpush1.msra.mxu0 %v3597
    %3649 = vmatprep.subr.mxu0 %v3594
    %3650 = vmatpush1.msra.mxu0 %v3593
    %3651 = vmatprep.subr.mxu0 %v3590
    %3652 = vmatpush1.msra.mxu0 %v3589
    %3653 = vmatprep.subr.mxu0 %v3586
    %3654 = vmatpush1.msra.mxu0 %v3585
    %3655 = vmatprep.subr.mxu0 %v3582
    %3656 = vmatpush1.msra.mxu0 %v3581
    %3657 = vmatprep.subr.mxu0 0.0
    %3658 = vmatpush2.msra.mxu0 0.0
    %3659 = vmatprep.subr.mxu0 0.0
    %3660 = vmatpush2.msra.mxu0 0.0
    %3661 = vmatprep.subr.mxu0 0.0
    %3662 = vmatpush2.msra.mxu0 0.0
    %3663 = vmatprep.subr.mxu0 0.0
    %3664 = vmatpush2.msra.mxu0 0.0
    %3665 = vmatprep.subr.mxu0 0.0
    %3666 = vmatpush2.msra.mxu0 0.0
    %3667 = vmatprep.subr.mxu0 0.0
    %3668 = vmatpush2.msra.mxu0 0.0
    %3669 = vmatprep.subr.mxu0 0.0
    %3670 = vmatpush2.msra.mxu0 0.0
    %3671 = vmatprep.subr.mxu0 0.0
    %3672 = vmatpush2.msra.mxu0 0.0
    %3673 = vmatprep.subr.mxu0 0.0
    %3674 = vmatpush2.msra.mxu0 0.0
    %3675 = vmatprep.subr.mxu0 0.0
    %3676 = vmatpush2.msra.mxu0 0.0
    %3677 = vmatprep.subr.mxu0 0.0
    %3678 = vmatpush2.msra.mxu0 0.0
    %3679 = vmatprep.subr.mxu0 0.0
    %3680 = vmatpush2.msra.mxu0 0.0
    %3681 = vmatprep.subr.mxu0 0.0
    %3682 = vmatpush2.msra.mxu0 0.0
    %3683 = vmatprep.subr.mxu0 0.0
    %3684 = vmatpush2.msra.mxu0 0.0
    %3685 = vmatprep.subr.mxu0 0.0
    %3686 = vmatpush2.msra.mxu0 0.0
    %3687 = vmatprep.subr.mxu0 0.0
    %3688 = vmatpush2.msra.mxu0 0.0
    %3689 = vmatprep.mubr.f32.mxu0 0.0
    %3690 = vmatmul.mubr.f32.gmra.mxu0 %v3614
    %v3691 = vpop.f32.mrf.mxu0
    %v3692 = vadd.f32 0.0, %v3691
    %v3693 = vpop.f32.mrf.mxu0
    %v3694 = vadd.f32 0.0, %v3693
    %3695 = vmatprep.mubr.f32.mxu0 0.0
    %3696 = vmatmul.mubr.f32.gmra.mxu0 %v3617
    %v3697 = vpop.f32.mrf.mxu0
    %v3698 = vadd.f32 0.0, %v3697
    %v3699 = vpop.f32.mrf.mxu0
    %v3700 = vadd.f32 0.0, %v3699
    %3701 = vmatprep.mubr.f32.mxu0 0.0
    %3702 = vmatmul.mubr.f32.gmra.mxu0 %v3620
    %v3703 = vpop.f32.mrf.mxu0
    %v3704 = vadd.f32 0.0, %v3703
    %v3705 = vpop.f32.mrf.mxu0
    %v3706 = vadd.f32 0.0, %v3705
    %3707 = vmatprep.mubr.f32.mxu0 0.0
    %3708 = vmatmul.mubr.f32.gmra.mxu0 %v3623
    %v3709 = vpop.f32.mrf.mxu0
    %v3710 = vadd.f32 0.0, %v3709
    %v3711 = vpop.f32.mrf.mxu0
    %v3712 = vadd.f32 0.0, %v3711
    %3713 = vdwg.mxu0
    %3714 = vmatprep.subr.mxu0 0.0
    %3715 = vmatpush1.msra.mxu0 0.0
    %3716 = vmatprep.subr.mxu0 0.0
    %3717 = vmatpush1.msra.mxu0 0.0
    %3718 = vmatprep.subr.mxu0 0.0
    %3719 = vmatpush1.msra.mxu0 0.0
    %3720 = vmatprep.subr.mxu0 0.0
    %3721 = vmatpush1.msra.mxu0 0.0
    %3722 = vmatprep.subr.mxu0 0.0
    %3723 = vmatpush1.msra.mxu0 0.0
    %3724 = vmatprep.subr.mxu0 0.0
    %3725 = vmatpush1.msra.mxu0 0.0
    %3726 = vmatprep.subr.mxu0 0.0
    %3727 = vmatpush1.msra.mxu0 0.0
    %3728 = vmatprep.subr.mxu0 0.0
    %3729 = vmatpush1.msra.mxu0 0.0
    %3730 = vmatprep.subr.mxu0 %v3612
    %3731 = vmatpush1.msra.mxu0 %v3611
    %3732 = vmatprep.subr.mxu0 %v3608
    %3733 = vmatpush1.msra.mxu0 %v3607
    %3734 = vmatprep.subr.mxu0 %v3604
    %3735 = vmatpush1.msra.mxu0 %v3603
    %3736 = vmatprep.subr.mxu0 %v3600
    %3737 = vmatpush1.msra.mxu0 %v3599
    %3738 = vmatprep.subr.mxu0 %v3596
    %3739 = vmatpush1.msra.mxu0 %v3595
    %3740 = vmatprep.subr.mxu0 %v3592
    %3741 = vmatpush1.msra.mxu0 %v3591
    %3742 = vmatprep.subr.mxu0 %v3588
    %3743 = vmatpush1.msra.mxu0 %v3587
    %3744 = vmatprep.subr.mxu0 %v3584
    %3745 = vmatpush1.msra.mxu0 %v3583
    %3746 = vmatprep.subr.mxu0 0.0
    %3747 = vmatpush2.msra.mxu0 0.0
    %3748 = vmatprep.subr.mxu0 0.0
    %3749 = vmatpush2.msra.mxu0 0.0
    %3750 = vmatprep.subr.mxu0 0.0
    %3751 = vmatpush2.msra.mxu0 0.0
    %3752 = vmatprep.subr.mxu0 0.0
    %3753 = vmatpush2.msra.mxu0 0.0
    %3754 = vmatprep.subr.mxu0 0.0
    %3755 = vmatpush2.msra.mxu0 0.0
    %3756 = vmatprep.subr.mxu0 0.0
    %3757 = vmatpush2.msra.mxu0 0.0
    %3758 = vmatprep.subr.mxu0 0.0
    %3759 = vmatpush2.msra.mxu0 0.0
    %3760 = vmatprep.subr.mxu0 0.0
    %3761 = vmatpush2.msra.mxu0 0.0
    %3762 = vmatprep.subr.mxu0 0.0
    %3763 = vmatpush2.msra.mxu0 0.0
    %3764 = vmatprep.subr.mxu0 0.0
    %3765 = vmatpush2.msra.mxu0 0.0
    %3766 = vmatprep.subr.mxu0 0.0
    %3767 = vmatpush2.msra.mxu0 0.0
    %3768 = vmatprep.subr.mxu0 0.0
    %3769 = vmatpush2.msra.mxu0 0.0
    %3770 = vmatprep.subr.mxu0 0.0
    %3771 = vmatpush2.msra.mxu0 0.0
    %3772 = vmatprep.subr.mxu0 0.0
    %3773 = vmatpush2.msra.mxu0 0.0
    %3774 = vmatprep.subr.mxu0 0.0
    %3775 = vmatpush2.msra.mxu0 0.0
    %3776 = vmatprep.subr.mxu0 0.0
    %3777 = vmatpush2.msra.mxu0 0.0
    %3778 = vmatprep.mubr.f32.mxu0 0.0
    %3779 = vmatmul.mubr.f32.gmra.mxu0 %v3614
    %v3780 = vpop.f32.mrf.mxu0
    %v3781 = vadd.f32 0.0, %v3780
    %v3782 = vpop.f32.mrf.mxu0
    %v3783 = vadd.f32 0.0, %v3782
    %3784 = vmatprep.mubr.f32.mxu0 0.0
    %3785 = vmatmul.mubr.f32.gmra.mxu0 %v3617
    %v3786 = vpop.f32.mrf.mxu0
    %v3787 = vadd.f32 0.0, %v3786
    %v3788 = vpop.f32.mrf.mxu0
    %v3789 = vadd.f32 0.0, %v3788
    %3790 = vmatprep.mubr.f32.mxu0 0.0
    %3791 = vmatmul.mubr.f32.gmra.mxu0 %v3620
    %v3792 = vpop.f32.mrf.mxu0
    %v3793 = vadd.f32 0.0, %v3792
    %v3794 = vpop.f32.mrf.mxu0
    %v3795 = vadd.f32 0.0, %v3794
    %3796 = vmatprep.mubr.f32.mxu0 0.0
    %3797 = vmatmul.mubr.f32.gmra.mxu0 %v3623
    %v3798 = vpop.f32.mrf.mxu0
    %v3799 = vadd.f32 0.0, %v3798
    %v3800 = vpop.f32.mrf.mxu0
    %v3801 = vadd.f32 0.0, %v3800
    %3802 = vdwg.mxu0
    %v3803 = vadd.f32 %v3540, %v3692
    %v3804 = vadd.f32 %v3541, %v3694
    %v3805 = vadd.f32 %v3542, %v3781
    %v3806 = vadd.f32 %v3543, %v3783
    %v3807 = vadd.f32 %v3544, %v3698
    %v3808 = vadd.f32 %v3545, %v3700
    %v3809 = vadd.f32 %v3546, %v3787
    %v3810 = vadd.f32 %v3547, %v3789
    %v3811 = vadd.f32 %v3548, %v3704
    %v3812 = vadd.f32 %v3549, %v3706
    %v3813 = vadd.f32 %v3550, %v3793
    %v3814 = vadd.f32 %v3551, %v3795
    %v3815 = vadd.f32 %v3552, %v3710
    %v3816 = vadd.f32 %v3553, %v3712
    %v3817 = vadd.f32 %v3554, %v3799
    %v3818 = vadd.f32 %v3555, %v3801
    %3819 = vset.pattern.permute.xlu0 14
    %3820 = vperm.xlu0 %3819, %v163
    %v3821 = vpop.permute.xlu0 %3820
    %3822 = vset.pattern.permute.xlu0 14
    %3823 = vperm.xlu0 %3822, %v164
    %v3824 = vpop.permute.xlu0 %3823
    %3825 = vset.pattern.permute.xlu0 14
    %3826 = vperm.xlu0 %3825, %v165
    %v3827 = vpop.permute.xlu0 %3826
    %3828 = vset.pattern.permute.xlu0 14
    %3829 = vperm.xlu0 %3828, %v166
    %v3830 = vpop.permute.xlu0 %3829
    %vm3831 = vcmp.eq.s32.totalorder %v3821, %v168
    %vm3832 = vcmp.eq.s32.totalorder %v3824, %v168
    %vm3833 = vcmp.eq.s32.totalorder %v3827, %v168
    %vm3834 = vcmp.eq.s32.totalorder %v3830, %v168
    %v3835 = vsel %vm3831, 1, 0
    %v3836 = vsel %vm3832, 1, 0
    %v3837 = vsel %vm3833, 1, 0
    %v3838 = vsel %vm3834, 1, 0
    %v3839 = vcvt.s32.f32 %v3835
    %v3840 = vcvt.s32.f32 %v3836
    %v3841 = vcvt.s32.f32 %v3837
    %v3842 = vcvt.s32.f32 %v3838
    %s3843 = scalar_lea.vmem [#allocation2], 3584
    %v3844 = vld [vmem:[%s3843] sm:$0xff]
    %v3845 = vld [vmem:[%s3843 + $0x8] sm:$0xff]
    %v3846 = vld [vmem:[%s3843 + $0x10] sm:$0xff]
    %v3847 = vld [vmem:[%s3843 + $0x18] sm:$0xff]
    %v3848 = vld [vmem:[%s3843 + $0x20] sm:$0xff]
    %v3849 = vld [vmem:[%s3843 + $0x28] sm:$0xff]
    %v3850 = vld [vmem:[%s3843 + $0x30] sm:$0xff]
    %v3851 = vld [vmem:[%s3843 + $0x38] sm:$0xff]
    %v3852 = vld [vmem:[%s3843 + $0x40] sm:$0xff]
    %v3853 = vld [vmem:[%s3843 + $0x48] sm:$0xff]
    %v3854 = vld [vmem:[%s3843 + $0x50] sm:$0xff]
    %v3855 = vld [vmem:[%s3843 + $0x58] sm:$0xff]
    %v3856 = vld [vmem:[%s3843 + $0x60] sm:$0xff]
    %v3857 = vld [vmem:[%s3843 + $0x68] sm:$0xff]
    %v3858 = vld [vmem:[%s3843 + $0x70] sm:$0xff]
    %v3859 = vld [vmem:[%s3843 + $0x78] sm:$0xff]
    %v3860 = vld [vmem:[%s3843 + $0x80] sm:$0xff]
    %v3861 = vld [vmem:[%s3843 + $0x88] sm:$0xff]
    %v3862 = vld [vmem:[%s3843 + $0x90] sm:$0xff]
    %v3863 = vld [vmem:[%s3843 + $0x98] sm:$0xff]
    %v3864 = vld [vmem:[%s3843 + $0xa0] sm:$0xff]
    %v3865 = vld [vmem:[%s3843 + $0xa8] sm:$0xff]
    %v3866 = vld [vmem:[%s3843 + $0xb0] sm:$0xff]
    %v3867 = vld [vmem:[%s3843 + $0xb8] sm:$0xff]
    %v3868 = vld [vmem:[%s3843 + $0xc0] sm:$0xff]
    %v3869 = vld [vmem:[%s3843 + $0xc8] sm:$0xff]
    %v3870 = vld [vmem:[%s3843 + $0xd0] sm:$0xff]
    %v3871 = vld [vmem:[%s3843 + $0xd8] sm:$0xff]
    %v3872 = vld [vmem:[%s3843 + $0xe0] sm:$0xff]
    %v3873 = vld [vmem:[%s3843 + $0xe8] sm:$0xff]
    %v3874 = vld [vmem:[%s3843 + $0xf0] sm:$0xff]
    %v3875 = vld [vmem:[%s3843 + $0xf8] sm:$0xff]
    %v3877 = vsel %vm282, %v3839, 0
    %v3880 = vsel %vm282, %v3840, 0
    %v3883 = vsel %vm282, %v3841, 0
    %v3886 = vsel %vm282, %v3842, 0
    %3888 = vmatprep.subr.mxu0 0.0
    %3889 = vmatpush1.msra.mxu0 0.0
    %3890 = vmatprep.subr.mxu0 0.0
    %3891 = vmatpush1.msra.mxu0 0.0
    %3892 = vmatprep.subr.mxu0 0.0
    %3893 = vmatpush1.msra.mxu0 0.0
    %3894 = vmatprep.subr.mxu0 0.0
    %3895 = vmatpush1.msra.mxu0 0.0
    %3896 = vmatprep.subr.mxu0 0.0
    %3897 = vmatpush1.msra.mxu0 0.0
    %3898 = vmatprep.subr.mxu0 0.0
    %3899 = vmatpush1.msra.mxu0 0.0
    %3900 = vmatprep.subr.mxu0 0.0
    %3901 = vmatpush1.msra.mxu0 0.0
    %3902 = vmatprep.subr.mxu0 0.0
    %3903 = vmatpush1.msra.mxu0 0.0
    %3904 = vmatprep.subr.mxu0 %v3873
    %3905 = vmatpush1.msra.mxu0 %v3872
    %3906 = vmatprep.subr.mxu0 %v3869
    %3907 = vmatpush1.msra.mxu0 %v3868
    %3908 = vmatprep.subr.mxu0 %v3865
    %3909 = vmatpush1.msra.mxu0 %v3864
    %3910 = vmatprep.subr.mxu0 %v3861
    %3911 = vmatpush1.msra.mxu0 %v3860
    %3912 = vmatprep.subr.mxu0 %v3857
    %3913 = vmatpush1.msra.mxu0 %v3856
    %3914 = vmatprep.subr.mxu0 %v3853
    %3915 = vmatpush1.msra.mxu0 %v3852
    %3916 = vmatprep.subr.mxu0 %v3849
    %3917 = vmatpush1.msra.mxu0 %v3848
    %3918 = vmatprep.subr.mxu0 %v3845
    %3919 = vmatpush1.msra.mxu0 %v3844
    %3920 = vmatprep.subr.mxu0 0.0
    %3921 = vmatpush2.msra.mxu0 0.0
    %3922 = vmatprep.subr.mxu0 0.0
    %3923 = vmatpush2.msra.mxu0 0.0
    %3924 = vmatprep.subr.mxu0 0.0
    %3925 = vmatpush2.msra.mxu0 0.0
    %3926 = vmatprep.subr.mxu0 0.0
    %3927 = vmatpush2.msra.mxu0 0.0
    %3928 = vmatprep.subr.mxu0 0.0
    %3929 = vmatpush2.msra.mxu0 0.0
    %3930 = vmatprep.subr.mxu0 0.0
    %3931 = vmatpush2.msra.mxu0 0.0
    %3932 = vmatprep.subr.mxu0 0.0
    %3933 = vmatpush2.msra.mxu0 0.0
    %3934 = vmatprep.subr.mxu0 0.0
    %3935 = vmatpush2.msra.mxu0 0.0
    %3936 = vmatprep.subr.mxu0 0.0
    %3937 = vmatpush2.msra.mxu0 0.0
    %3938 = vmatprep.subr.mxu0 0.0
    %3939 = vmatpush2.msra.mxu0 0.0
    %3940 = vmatprep.subr.mxu0 0.0
    %3941 = vmatpush2.msra.mxu0 0.0
    %3942 = vmatprep.subr.mxu0 0.0
    %3943 = vmatpush2.msra.mxu0 0.0
    %3944 = vmatprep.subr.mxu0 0.0
    %3945 = vmatpush2.msra.mxu0 0.0
    %3946 = vmatprep.subr.mxu0 0.0
    %3947 = vmatpush2.msra.mxu0 0.0
    %3948 = vmatprep.subr.mxu0 0.0
    %3949 = vmatpush2.msra.mxu0 0.0
    %3950 = vmatprep.subr.mxu0 0.0
    %3951 = vmatpush2.msra.mxu0 0.0
    %3952 = vmatprep.mubr.f32.mxu0 0.0
    %3953 = vmatmul.mubr.f32.gmra.mxu0 %v3877
    %v3954 = vpop.f32.mrf.mxu0
    %v3955 = vadd.f32 0.0, %v3954
    %v3956 = vpop.f32.mrf.mxu0
    %v3957 = vadd.f32 0.0, %v3956
    %3958 = vmatprep.mubr.f32.mxu0 0.0
    %3959 = vmatmul.mubr.f32.gmra.mxu0 %v3880
    %v3960 = vpop.f32.mrf.mxu0
    %v3961 = vadd.f32 0.0, %v3960
    %v3962 = vpop.f32.mrf.mxu0
    %v3963 = vadd.f32 0.0, %v3962
    %3964 = vmatprep.mubr.f32.mxu0 0.0
    %3965 = vmatmul.mubr.f32.gmra.mxu0 %v3883
    %v3966 = vpop.f32.mrf.mxu0
    %v3967 = vadd.f32 0.0, %v3966
    %v3968 = vpop.f32.mrf.mxu0
    %v3969 = vadd.f32 0.0, %v3968
    %3970 = vmatprep.mubr.f32.mxu0 0.0
    %3971 = vmatmul.mubr.f32.gmra.mxu0 %v3886
    %v3972 = vpop.f32.mrf.mxu0
    %v3973 = vadd.f32 0.0, %v3972
    %v3974 = vpop.f32.mrf.mxu0
    %v3975 = vadd.f32 0.0, %v3974
    %3976 = vdwg.mxu0
    %3977 = vmatprep.subr.mxu0 0.0
    %3978 = vmatpush1.msra.mxu0 0.0
    %3979 = vmatprep.subr.mxu0 0.0
    %3980 = vmatpush1.msra.mxu0 0.0
    %3981 = vmatprep.subr.mxu0 0.0
    %3982 = vmatpush1.msra.mxu0 0.0
    %3983 = vmatprep.subr.mxu0 0.0
    %3984 = vmatpush1.msra.mxu0 0.0
    %3985 = vmatprep.subr.mxu0 0.0
    %3986 = vmatpush1.msra.mxu0 0.0
    %3987 = vmatprep.subr.mxu0 0.0
    %3988 = vmatpush1.msra.mxu0 0.0
    %3989 = vmatprep.subr.mxu0 0.0
    %3990 = vmatpush1.msra.mxu0 0.0
    %3991 = vmatprep.subr.mxu0 0.0
    %3992 = vmatpush1.msra.mxu0 0.0
    %3993 = vmatprep.subr.mxu0 %v3875
    %3994 = vmatpush1.msra.mxu0 %v3874
    %3995 = vmatprep.subr.mxu0 %v3871
    %3996 = vmatpush1.msra.mxu0 %v3870
    %3997 = vmatprep.subr.mxu0 %v3867
    %3998 = vmatpush1.msra.mxu0 %v3866
    %3999 = vmatprep.subr.mxu0 %v3863
    %4000 = vmatpush1.msra.mxu0 %v3862
    %4001 = vmatprep.subr.mxu0 %v3859
    %4002 = vmatpush1.msra.mxu0 %v3858
    %4003 = vmatprep.subr.mxu0 %v3855
    %4004 = vmatpush1.msra.mxu0 %v3854
    %4005 = vmatprep.subr.mxu0 %v3851
    %4006 = vmatpush1.msra.mxu0 %v3850
    %4007 = vmatprep.subr.mxu0 %v3847
    %4008 = vmatpush1.msra.mxu0 %v3846
    %4009 = vmatprep.subr.mxu0 0.0
    %4010 = vmatpush2.msra.mxu0 0.0
    %4011 = vmatprep.subr.mxu0 0.0
    %4012 = vmatpush2.msra.mxu0 0.0
    %4013 = vmatprep.subr.mxu0 0.0
    %4014 = vmatpush2.msra.mxu0 0.0
    %4015 = vmatprep.subr.mxu0 0.0
    %4016 = vmatpush2.msra.mxu0 0.0
    %4017 = vmatprep.subr.mxu0 0.0
    %4018 = vmatpush2.msra.mxu0 0.0
    %4019 = vmatprep.subr.mxu0 0.0
    %4020 = vmatpush2.msra.mxu0 0.0
    %4021 = vmatprep.subr.mxu0 0.0
    %4022 = vmatpush2.msra.mxu0 0.0
    %4023 = vmatprep.subr.mxu0 0.0
    %4024 = vmatpush2.msra.mxu0 0.0
    %4025 = vmatprep.subr.mxu0 0.0
    %4026 = vmatpush2.msra.mxu0 0.0
    %4027 = vmatprep.subr.mxu0 0.0
    %4028 = vmatpush2.msra.mxu0 0.0
    %4029 = vmatprep.subr.mxu0 0.0
    %4030 = vmatpush2.msra.mxu0 0.0
    %4031 = vmatprep.subr.mxu0 0.0
    %4032 = vmatpush2.msra.mxu0 0.0
    %4033 = vmatprep.subr.mxu0 0.0
    %4034 = vmatpush2.msra.mxu0 0.0
    %4035 = vmatprep.subr.mxu0 0.0
    %4036 = vmatpush2.msra.mxu0 0.0
    %4037 = vmatprep.subr.mxu0 0.0
    %4038 = vmatpush2.msra.mxu0 0.0
    %4039 = vmatprep.subr.mxu0 0.0
    %4040 = vmatpush2.msra.mxu0 0.0
    %4041 = vmatprep.mubr.f32.mxu0 0.0
    %4042 = vmatmul.mubr.f32.gmra.mxu0 %v3877
    %v4043 = vpop.f32.mrf.mxu0
    %v4044 = vadd.f32 0.0, %v4043
    %v4045 = vpop.f32.mrf.mxu0
    %v4046 = vadd.f32 0.0, %v4045
    %4047 = vmatprep.mubr.f32.mxu0 0.0
    %4048 = vmatmul.mubr.f32.gmra.mxu0 %v3880
    %v4049 = vpop.f32.mrf.mxu0
    %v4050 = vadd.f32 0.0, %v4049
    %v4051 = vpop.f32.mrf.mxu0
    %v4052 = vadd.f32 0.0, %v4051
    %4053 = vmatprep.mubr.f32.mxu0 0.0
    %4054 = vmatmul.mubr.f32.gmra.mxu0 %v3883
    %v4055 = vpop.f32.mrf.mxu0
    %v4056 = vadd.f32 0.0, %v4055
    %v4057 = vpop.f32.mrf.mxu0
    %v4058 = vadd.f32 0.0, %v4057
    %4059 = vmatprep.mubr.f32.mxu0 0.0
    %4060 = vmatmul.mubr.f32.gmra.mxu0 %v3886
    %v4061 = vpop.f32.mrf.mxu0
    %v4062 = vadd.f32 0.0, %v4061
    %v4063 = vpop.f32.mrf.mxu0
    %v4064 = vadd.f32 0.0, %v4063
    %4065 = vdwg.mxu0
    %v4066 = vadd.f32 %v3803, %v3955
    %v4067 = vadd.f32 %v3804, %v3957
    %v4068 = vadd.f32 %v3805, %v4044
    %v4069 = vadd.f32 %v3806, %v4046
    %v4070 = vadd.f32 %v3807, %v3961
    %v4071 = vadd.f32 %v3808, %v3963
    %v4072 = vadd.f32 %v3809, %v4050
    %v4073 = vadd.f32 %v3810, %v4052
    %v4074 = vadd.f32 %v3811, %v3967
    %v4075 = vadd.f32 %v3812, %v3969
    %v4076 = vadd.f32 %v3813, %v4056
    %v4077 = vadd.f32 %v3814, %v4058
    %v4078 = vadd.f32 %v3815, %v3973
    %v4079 = vadd.f32 %v3816, %v3975
    %v4080 = vadd.f32 %v3817, %v4062
    %v4081 = vadd.f32 %v3818, %v4064
    %4082 = vset.pattern.permute.xlu0 15
    %4083 = vperm.xlu0 %4082, %v163
    %v4084 = vpop.permute.xlu0 %4083
    %4085 = vset.pattern.permute.xlu0 15
    %4086 = vperm.xlu0 %4085, %v164
    %v4087 = vpop.permute.xlu0 %4086
    %4088 = vset.pattern.permute.xlu0 15
    %4089 = vperm.xlu0 %4088, %v165
    %v4090 = vpop.permute.xlu0 %4089
    %4091 = vset.pattern.permute.xlu0 15
    %4092 = vperm.xlu0 %4091, %v166
    %v4093 = vpop.permute.xlu0 %4092
    %vm4094 = vcmp.eq.s32.totalorder %v4084, %v168
    %vm4095 = vcmp.eq.s32.totalorder %v4087, %v168
    %vm4096 = vcmp.eq.s32.totalorder %v4090, %v168
    %vm4097 = vcmp.eq.s32.totalorder %v4093, %v168
    %v4098 = vsel %vm4094, 1, 0
    %v4099 = vsel %vm4095, 1, 0
    %v4100 = vsel %vm4096, 1, 0
    %v4101 = vsel %vm4097, 1, 0
    %v4102 = vcvt.s32.f32 %v4098
    %v4103 = vcvt.s32.f32 %v4099
    %v4104 = vcvt.s32.f32 %v4100
    %v4105 = vcvt.s32.f32 %v4101
    %s4106 = scalar_lea.vmem [#allocation2], 3840
    %v4107 = vld [vmem:[%s4106] sm:$0xff]
    %v4108 = vld [vmem:[%s4106 + $0x8] sm:$0xff]
    %v4109 = vld [vmem:[%s4106 + $0x10] sm:$0xff]
    %v4110 = vld [vmem:[%s4106 + $0x18] sm:$0xff]
    %v4111 = vld [vmem:[%s4106 + $0x20] sm:$0xff]
    %v4112 = vld [vmem:[%s4106 + $0x28] sm:$0xff]
    %v4113 = vld [vmem:[%s4106 + $0x30] sm:$0xff]
    %v4114 = vld [vmem:[%s4106 + $0x38] sm:$0xff]
    %v4115 = vld [vmem:[%s4106 + $0x40] sm:$0xff]
    %v4116 = vld [vmem:[%s4106 + $0x48] sm:$0xff]
    %v4117 = vld [vmem:[%s4106 + $0x50] sm:$0xff]
    %v4118 = vld [vmem:[%s4106 + $0x58] sm:$0xff]
    %v4119 = vld [vmem:[%s4106 + $0x60] sm:$0xff]
    %v4120 = vld [vmem:[%s4106 + $0x68] sm:$0xff]
    %v4121 = vld [vmem:[%s4106 + $0x70] sm:$0xff]
    %v4122 = vld [vmem:[%s4106 + $0x78] sm:$0xff]
    %v4123 = vld [vmem:[%s4106 + $0x80] sm:$0xff]
    %v4124 = vld [vmem:[%s4106 + $0x88] sm:$0xff]
    %v4125 = vld [vmem:[%s4106 + $0x90] sm:$0xff]
    %v4126 = vld [vmem:[%s4106 + $0x98] sm:$0xff]
    %v4127 = vld [vmem:[%s4106 + $0xa0] sm:$0xff]
    %v4128 = vld [vmem:[%s4106 + $0xa8] sm:$0xff]
    %v4129 = vld [vmem:[%s4106 + $0xb0] sm:$0xff]
    %v4130 = vld [vmem:[%s4106 + $0xb8] sm:$0xff]
    %v4131 = vld [vmem:[%s4106 + $0xc0] sm:$0xff]
    %v4132 = vld [vmem:[%s4106 + $0xc8] sm:$0xff]
    %v4133 = vld [vmem:[%s4106 + $0xd0] sm:$0xff]
    %v4134 = vld [vmem:[%s4106 + $0xd8] sm:$0xff]
    %v4135 = vld [vmem:[%s4106 + $0xe0] sm:$0xff]
    %v4136 = vld [vmem:[%s4106 + $0xe8] sm:$0xff]
    %v4137 = vld [vmem:[%s4106 + $0xf0] sm:$0xff]
    %v4138 = vld [vmem:[%s4106 + $0xf8] sm:$0xff]
    %v4140 = vsel %vm282, %v4102, 0
    %v4143 = vsel %vm282, %v4103, 0
    %v4146 = vsel %vm282, %v4104, 0
    %v4149 = vsel %vm282, %v4105, 0
    %4151 = vmatprep.subr.mxu0 0.0
    %4152 = vmatpush1.msra.mxu0 0.0
    %4153 = vmatprep.subr.mxu0 0.0
    %4154 = vmatpush1.msra.mxu0 0.0
    %4155 = vmatprep.subr.mxu0 0.0
    %4156 = vmatpush1.msra.mxu0 0.0
    %4157 = vmatprep.subr.mxu0 0.0
    %4158 = vmatpush1.msra.mxu0 0.0
    %4159 = vmatprep.subr.mxu0 0.0
    %4160 = vmatpush1.msra.mxu0 0.0
    %4161 = vmatprep.subr.mxu0 0.0
    %4162 = vmatpush1.msra.mxu0 0.0
    %4163 = vmatprep.subr.mxu0 0.0
    %4164 = vmatpush1.msra.mxu0 0.0
    %4165 = vmatprep.subr.mxu0 0.0
    %4166 = vmatpush1.msra.mxu0 0.0
    %4167 = vmatprep.subr.mxu0 %v4136
    %4168 = vmatpush1.msra.mxu0 %v4135
    %4169 = vmatprep.subr.mxu0 %v4132
    %4170 = vmatpush1.msra.mxu0 %v4131
    %4171 = vmatprep.subr.mxu0 %v4128
    %4172 = vmatpush1.msra.mxu0 %v4127
    %4173 = vmatprep.subr.mxu0 %v4124
    %4174 = vmatpush1.msra.mxu0 %v4123
    %4175 = vmatprep.subr.mxu0 %v4120
    %4176 = vmatpush1.msra.mxu0 %v4119
    %4177 = vmatprep.subr.mxu0 %v4116
    %4178 = vmatpush1.msra.mxu0 %v4115
    %4179 = vmatprep.subr.mxu0 %v4112
    %4180 = vmatpush1.msra.mxu0 %v4111
    %4181 = vmatprep.subr.mxu0 %v4108
    %4182 = vmatpush1.msra.mxu0 %v4107
    %4183 = vmatprep.subr.mxu0 0.0
    %4184 = vmatpush2.msra.mxu0 0.0
    %4185 = vmatprep.subr.mxu0 0.0
    %4186 = vmatpush2.msra.mxu0 0.0
    %4187 = vmatprep.subr.mxu0 0.0
    %4188 = vmatpush2.msra.mxu0 0.0
    %4189 = vmatprep.subr.mxu0 0.0
    %4190 = vmatpush2.msra.mxu0 0.0
    %4191 = vmatprep.subr.mxu0 0.0
    %4192 = vmatpush2.msra.mxu0 0.0
    %4193 = vmatprep.subr.mxu0 0.0
    %4194 = vmatpush2.msra.mxu0 0.0
    %4195 = vmatprep.subr.mxu0 0.0
    %4196 = vmatpush2.msra.mxu0 0.0
    %4197 = vmatprep.subr.mxu0 0.0
    %4198 = vmatpush2.msra.mxu0 0.0
    %4199 = vmatprep.subr.mxu0 0.0
    %4200 = vmatpush2.msra.mxu0 0.0
    %4201 = vmatprep.subr.mxu0 0.0
    %4202 = vmatpush2.msra.mxu0 0.0
    %4203 = vmatprep.subr.mxu0 0.0
    %4204 = vmatpush2.msra.mxu0 0.0
    %4205 = vmatprep.subr.mxu0 0.0
    %4206 = vmatpush2.msra.mxu0 0.0
    %4207 = vmatprep.subr.mxu0 0.0
    %4208 = vmatpush2.msra.mxu0 0.0
    %4209 = vmatprep.subr.mxu0 0.0
    %4210 = vmatpush2.msra.mxu0 0.0
    %4211 = vmatprep.subr.mxu0 0.0
    %4212 = vmatpush2.msra.mxu0 0.0
    %4213 = vmatprep.subr.mxu0 0.0
    %4214 = vmatpush2.msra.mxu0 0.0
    %4215 = vmatprep.mubr.f32.mxu0 0.0
    %4216 = vmatmul.mubr.f32.gmra.mxu0 %v4140
    %v4217 = vpop.f32.mrf.mxu0
    %v4218 = vadd.f32 0.0, %v4217
    %v4219 = vpop.f32.mrf.mxu0
    %v4220 = vadd.f32 0.0, %v4219
    %4221 = vmatprep.mubr.f32.mxu0 0.0
    %4222 = vmatmul.mubr.f32.gmra.mxu0 %v4143
    %v4223 = vpop.f32.mrf.mxu0
    %v4224 = vadd.f32 0.0, %v4223
    %v4225 = vpop.f32.mrf.mxu0
    %v4226 = vadd.f32 0.0, %v4225
    %4227 = vmatprep.mubr.f32.mxu0 0.0
    %4228 = vmatmul.mubr.f32.gmra.mxu0 %v4146
    %v4229 = vpop.f32.mrf.mxu0
    %v4230 = vadd.f32 0.0, %v4229
    %v4231 = vpop.f32.mrf.mxu0
    %v4232 = vadd.f32 0.0, %v4231
    %4233 = vmatprep.mubr.f32.mxu0 0.0
    %4234 = vmatmul.mubr.f32.gmra.mxu0 %v4149
    %v4235 = vpop.f32.mrf.mxu0
    %v4236 = vadd.f32 0.0, %v4235
    %v4237 = vpop.f32.mrf.mxu0
    %v4238 = vadd.f32 0.0, %v4237
    %4239 = vdwg.mxu0
    %4240 = vmatprep.subr.mxu0 0.0
    %4241 = vmatpush1.msra.mxu0 0.0
    %4242 = vmatprep.subr.mxu0 0.0
    %4243 = vmatpush1.msra.mxu0 0.0
    %4244 = vmatprep.subr.mxu0 0.0
    %4245 = vmatpush1.msra.mxu0 0.0
    %4246 = vmatprep.subr.mxu0 0.0
    %4247 = vmatpush1.msra.mxu0 0.0
    %4248 = vmatprep.subr.mxu0 0.0
    %4249 = vmatpush1.msra.mxu0 0.0
    %4250 = vmatprep.subr.mxu0 0.0
    %4251 = vmatpush1.msra.mxu0 0.0
    %4252 = vmatprep.subr.mxu0 0.0
    %4253 = vmatpush1.msra.mxu0 0.0
    %4254 = vmatprep.subr.mxu0 0.0
    %4255 = vmatpush1.msra.mxu0 0.0
    %4256 = vmatprep.subr.mxu0 %v4138
    %4257 = vmatpush1.msra.mxu0 %v4137
    %4258 = vmatprep.subr.mxu0 %v4134
    %4259 = vmatpush1.msra.mxu0 %v4133
    %4260 = vmatprep.subr.mxu0 %v4130
    %4261 = vmatpush1.msra.mxu0 %v4129
    %4262 = vmatprep.subr.mxu0 %v4126
    %4263 = vmatpush1.msra.mxu0 %v4125
    %4264 = vmatprep.subr.mxu0 %v4122
    %4265 = vmatpush1.msra.mxu0 %v4121
    %4266 = vmatprep.subr.mxu0 %v4118
    %4267 = vmatpush1.msra.mxu0 %v4117
    %4268 = vmatprep.subr.mxu0 %v4114
    %4269 = vmatpush1.msra.mxu0 %v4113
    %4270 = vmatprep.subr.mxu0 %v4110
    %4271 = vmatpush1.msra.mxu0 %v4109
    %4272 = vmatprep.subr.mxu0 0.0
    %4273 = vmatpush2.msra.mxu0 0.0
    %4274 = vmatprep.subr.mxu0 0.0
    %4275 = vmatpush2.msra.mxu0 0.0
    %4276 = vmatprep.subr.mxu0 0.0
    %4277 = vmatpush2.msra.mxu0 0.0
    %4278 = vmatprep.subr.mxu0 0.0
    %4279 = vmatpush2.msra.mxu0 0.0
    %4280 = vmatprep.subr.mxu0 0.0
    %4281 = vmatpush2.msra.mxu0 0.0
    %4282 = vmatprep.subr.mxu0 0.0
    %4283 = vmatpush2.msra.mxu0 0.0
    %4284 = vmatprep.subr.mxu0 0.0
    %4285 = vmatpush2.msra.mxu0 0.0
    %4286 = vmatprep.subr.mxu0 0.0
    %4287 = vmatpush2.msra.mxu0 0.0
    %4288 = vmatprep.subr.mxu0 0.0
    %4289 = vmatpush2.msra.mxu0 0.0
    %4290 = vmatprep.subr.mxu0 0.0
    %4291 = vmatpush2.msra.mxu0 0.0
    %4292 = vmatprep.subr.mxu0 0.0
    %4293 = vmatpush2.msra.mxu0 0.0
    %4294 = vmatprep.subr.mxu0 0.0
    %4295 = vmatpush2.msra.mxu0 0.0
    %4296 = vmatprep.subr.mxu0 0.0
    %4297 = vmatpush2.msra.mxu0 0.0
    %4298 = vmatprep.subr.mxu0 0.0
    %4299 = vmatpush2.msra.mxu0 0.0
    %4300 = vmatprep.subr.mxu0 0.0
    %4301 = vmatpush2.msra.mxu0 0.0
    %4302 = vmatprep.subr.mxu0 0.0
    %4303 = vmatpush2.msra.mxu0 0.0
    %4304 = vmatprep.mubr.f32.mxu0 0.0
    %4305 = vmatmul.mubr.f32.gmra.mxu0 %v4140
    %v4306 = vpop.f32.mrf.mxu0
    %v4307 = vadd.f32 0.0, %v4306
    %v4308 = vpop.f32.mrf.mxu0
    %v4309 = vadd.f32 0.0, %v4308
    %4310 = vmatprep.mubr.f32.mxu0 0.0
    %4311 = vmatmul.mubr.f32.gmra.mxu0 %v4143
    %v4312 = vpop.f32.mrf.mxu0
    %v4313 = vadd.f32 0.0, %v4312
    %v4314 = vpop.f32.mrf.mxu0
    %v4315 = vadd.f32 0.0, %v4314
    %4316 = vmatprep.mubr.f32.mxu0 0.0
    %4317 = vmatmul.mubr.f32.gmra.mxu0 %v4146
    %v4318 = vpop.f32.mrf.mxu0
    %v4319 = vadd.f32 0.0, %v4318
    %v4320 = vpop.f32.mrf.mxu0
    %v4321 = vadd.f32 0.0, %v4320
    %4322 = vmatprep.mubr.f32.mxu0 0.0
    %4323 = vmatmul.mubr.f32.gmra.mxu0 %v4149
    %v4324 = vpop.f32.mrf.mxu0
    %v4325 = vadd.f32 0.0, %v4324
    %v4326 = vpop.f32.mrf.mxu0
    %v4327 = vadd.f32 0.0, %v4326
    %4328 = vdwg.mxu0
    %v4329 = vadd.f32 %v4066, %v4218
    %v4330 = vadd.f32 %v4067, %v4220
    %v4331 = vadd.f32 %v4068, %v4307
    %v4332 = vadd.f32 %v4069, %v4309
    %v4333 = vadd.f32 %v4070, %v4224
    %v4334 = vadd.f32 %v4071, %v4226
    %v4335 = vadd.f32 %v4072, %v4313
    %v4336 = vadd.f32 %v4073, %v4315
    %v4337 = vadd.f32 %v4074, %v4230
    %v4338 = vadd.f32 %v4075, %v4232
    %v4339 = vadd.f32 %v4076, %v4319
    %v4340 = vadd.f32 %v4077, %v4321
    %v4341 = vadd.f32 %v4078, %v4236
    %v4342 = vadd.f32 %v4079, %v4238
    %v4343 = vadd.f32 %v4080, %v4325
    %v4344 = vadd.f32 %v4081, %v4327
    %4349 = vrot.lane.b32.xlu0 %v4329, 120
    %v4350 = vpop.permute.xlu0 %4349
    %4351 = vrot.lane.b32.xlu0 %v4333, 120
    %v4352 = vpop.permute.xlu0 %4351
    %4353 = vrot.lane.b32.xlu0 %v4337, 120
    %v4354 = vpop.permute.xlu0 %4353
    %4355 = vrot.lane.b32.xlu0 %v4341, 120
    %v4356 = vpop.permute.xlu0 %4355
    %v4361 = vmax.f32 %v4329, %v4350
    %v4362 = vmax.f32 %v4333, %v4352
    %v4363 = vmax.f32 %v4337, %v4354
    %v4364 = vmax.f32 %v4341, %v4356
    %4365 = vrot.lane.b32.xlu0 %v4329, 112
    %v4366 = vpop.permute.xlu0 %4365
    %4367 = vrot.lane.b32.xlu0 %v4333, 112
    %v4368 = vpop.permute.xlu0 %4367
    %4369 = vrot.lane.b32.xlu0 %v4337, 112
    %v4370 = vpop.permute.xlu0 %4369
    %4371 = vrot.lane.b32.xlu0 %v4341, 112
    %v4372 = vpop.permute.xlu0 %4371
    %v4377 = vmax.f32 %v4361, %v4366
    %v4378 = vmax.f32 %v4362, %v4368
    %v4379 = vmax.f32 %v4363, %v4370
    %v4380 = vmax.f32 %v4364, %v4372
    %4381 = vrot.lane.b32.xlu0 %v4329, 104
    %v4382 = vpop.permute.xlu0 %4381
    %4383 = vrot.lane.b32.xlu0 %v4333, 104
    %v4384 = vpop.permute.xlu0 %4383
    %4385 = vrot.lane.b32.xlu0 %v4337, 104
    %v4386 = vpop.permute.xlu0 %4385
    %4387 = vrot.lane.b32.xlu0 %v4341, 104
    %v4388 = vpop.permute.xlu0 %4387
    %v4393 = vmax.f32 %v4377, %v4382
    %v4394 = vmax.f32 %v4378, %v4384
    %v4395 = vmax.f32 %v4379, %v4386
    %v4396 = vmax.f32 %v4380, %v4388
    %4397 = vrot.lane.b32.xlu0 %v4329, 96
    %v4398 = vpop.permute.xlu0 %4397
    %4399 = vrot.lane.b32.xlu0 %v4333, 96
    %v4400 = vpop.permute.xlu0 %4399
    %4401 = vrot.lane.b32.xlu0 %v4337, 96
    %v4402 = vpop.permute.xlu0 %4401
    %4403 = vrot.lane.b32.xlu0 %v4341, 96
    %v4404 = vpop.permute.xlu0 %4403
    %v4409 = vmax.f32 %v4393, %v4398
    %v4410 = vmax.f32 %v4394, %v4400
    %v4411 = vmax.f32 %v4395, %v4402
    %v4412 = vmax.f32 %v4396, %v4404
    %4413 = vrot.lane.b32.xlu0 %v4329, 88
    %v4414 = vpop.permute.xlu0 %4413
    %4415 = vrot.lane.b32.xlu0 %v4333, 88
    %v4416 = vpop.permute.xlu0 %4415
    %4417 = vrot.lane.b32.xlu0 %v4337, 88
    %v4418 = vpop.permute.xlu0 %4417
    %4419 = vrot.lane.b32.xlu0 %v4341, 88
    %v4420 = vpop.permute.xlu0 %4419
    %v4425 = vmax.f32 %v4409, %v4414
    %v4426 = vmax.f32 %v4410, %v4416
    %v4427 = vmax.f32 %v4411, %v4418
    %v4428 = vmax.f32 %v4412, %v4420
    %4429 = vrot.lane.b32.xlu0 %v4329, 80
    %v4430 = vpop.permute.xlu0 %4429
    %4431 = vrot.lane.b32.xlu0 %v4333, 80
    %v4432 = vpop.permute.xlu0 %4431
    %4433 = vrot.lane.b32.xlu0 %v4337, 80
    %v4434 = vpop.permute.xlu0 %4433
    %4435 = vrot.lane.b32.xlu0 %v4341, 80
    %v4436 = vpop.permute.xlu0 %4435
    %v4441 = vmax.f32 %v4425, %v4430
    %v4442 = vmax.f32 %v4426, %v4432
    %v4443 = vmax.f32 %v4427, %v4434
    %v4444 = vmax.f32 %v4428, %v4436
    %4445 = vrot.lane.b32.xlu0 %v4329, 72
    %v4446 = vpop.permute.xlu0 %4445
    %4447 = vrot.lane.b32.xlu0 %v4333, 72
    %v4448 = vpop.permute.xlu0 %4447
    %4449 = vrot.lane.b32.xlu0 %v4337, 72
    %v4450 = vpop.permute.xlu0 %4449
    %4451 = vrot.lane.b32.xlu0 %v4341, 72
    %v4452 = vpop.permute.xlu0 %4451
    %v4457 = vmax.f32 %v4441, %v4446
    %v4458 = vmax.f32 %v4442, %v4448
    %v4459 = vmax.f32 %v4443, %v4450
    %v4460 = vmax.f32 %v4444, %v4452
    %4461 = vrot.lane.b32.xlu0 %v4329, 64
    %v4462 = vpop.permute.xlu0 %4461
    %4463 = vrot.lane.b32.xlu0 %v4333, 64
    %v4464 = vpop.permute.xlu0 %4463
    %4465 = vrot.lane.b32.xlu0 %v4337, 64
    %v4466 = vpop.permute.xlu0 %4465
    %4467 = vrot.lane.b32.xlu0 %v4341, 64
    %v4468 = vpop.permute.xlu0 %4467
    %v4473 = vmax.f32 %v4457, %v4462
    %v4474 = vmax.f32 %v4458, %v4464
    %v4475 = vmax.f32 %v4459, %v4466
    %v4476 = vmax.f32 %v4460, %v4468
    %4477 = vrot.lane.b32.xlu0 %v4329, 56
    %v4478 = vpop.permute.xlu0 %4477
    %4479 = vrot.lane.b32.xlu0 %v4333, 56
    %v4480 = vpop.permute.xlu0 %4479
    %4481 = vrot.lane.b32.xlu0 %v4337, 56
    %v4482 = vpop.permute.xlu0 %4481
    %4483 = vrot.lane.b32.xlu0 %v4341, 56
    %v4484 = vpop.permute.xlu0 %4483
    %v4489 = vmax.f32 %v4473, %v4478
    %v4490 = vmax.f32 %v4474, %v4480
    %v4491 = vmax.f32 %v4475, %v4482
    %v4492 = vmax.f32 %v4476, %v4484
    %4493 = vrot.lane.b32.xlu0 %v4329, 48
    %v4494 = vpop.permute.xlu0 %4493
    %4495 = vrot.lane.b32.xlu0 %v4333, 48
    %v4496 = vpop.permute.xlu0 %4495
    %4497 = vrot.lane.b32.xlu0 %v4337, 48
    %v4498 = vpop.permute.xlu0 %4497
    %4499 = vrot.lane.b32.xlu0 %v4341, 48
    %v4500 = vpop.permute.xlu0 %4499
    %v4505 = vmax.f32 %v4489, %v4494
    %v4506 = vmax.f32 %v4490, %v4496
    %v4507 = vmax.f32 %v4491, %v4498
    %v4508 = vmax.f32 %v4492, %v4500
    %4509 = vrot.lane.b32.xlu0 %v4329, 40
    %v4510 = vpop.permute.xlu0 %4509
    %4511 = vrot.lane.b32.xlu0 %v4333, 40
    %v4512 = vpop.permute.xlu0 %4511
    %4513 = vrot.lane.b32.xlu0 %v4337, 40
    %v4514 = vpop.permute.xlu0 %4513
    %4515 = vrot.lane.b32.xlu0 %v4341, 40
    %v4516 = vpop.permute.xlu0 %4515
    %v4521 = vmax.f32 %v4505, %v4510
    %v4522 = vmax.f32 %v4506, %v4512
    %v4523 = vmax.f32 %v4507, %v4514
    %v4524 = vmax.f32 %v4508, %v4516
    %4525 = vrot.lane.b32.xlu0 %v4329, 32
    %v4526 = vpop.permute.xlu0 %4525
    %4527 = vrot.lane.b32.xlu0 %v4333, 32
    %v4528 = vpop.permute.xlu0 %4527
    %4529 = vrot.lane.b32.xlu0 %v4337, 32
    %v4530 = vpop.permute.xlu0 %4529
    %4531 = vrot.lane.b32.xlu0 %v4341, 32
    %v4532 = vpop.permute.xlu0 %4531
    %v4537 = vmax.f32 %v4521, %v4526
    %v4538 = vmax.f32 %v4522, %v4528
    %v4539 = vmax.f32 %v4523, %v4530
    %v4540 = vmax.f32 %v4524, %v4532
    %4541 = vrot.lane.b32.xlu0 %v4329, 24
    %v4542 = vpop.permute.xlu0 %4541
    %4543 = vrot.lane.b32.xlu0 %v4333, 24
    %v4544 = vpop.permute.xlu0 %4543
    %4545 = vrot.lane.b32.xlu0 %v4337, 24
    %v4546 = vpop.permute.xlu0 %4545
    %4547 = vrot.lane.b32.xlu0 %v4341, 24
    %v4548 = vpop.permute.xlu0 %4547
    %v4553 = vmax.f32 %v4537, %v4542
    %v4554 = vmax.f32 %v4538, %v4544
    %v4555 = vmax.f32 %v4539, %v4546
    %v4556 = vmax.f32 %v4540, %v4548
    %4557 = vrot.lane.b32.xlu0 %v4329, 16
    %v4558 = vpop.permute.xlu0 %4557
    %4559 = vrot.lane.b32.xlu0 %v4333, 16
    %v4560 = vpop.permute.xlu0 %4559
    %4561 = vrot.lane.b32.xlu0 %v4337, 16
    %v4562 = vpop.permute.xlu0 %4561
    %4563 = vrot.lane.b32.xlu0 %v4341, 16
    %v4564 = vpop.permute.xlu0 %4563
    %v4569 = vmax.f32 %v4553, %v4558
    %v4570 = vmax.f32 %v4554, %v4560
    %v4571 = vmax.f32 %v4555, %v4562
    %v4572 = vmax.f32 %v4556, %v4564
    %4573 = vrot.lane.b32.xlu0 %v4329, 8
    %v4574 = vpop.permute.xlu0 %4573
    %4575 = vrot.lane.b32.xlu0 %v4333, 8
    %v4576 = vpop.permute.xlu0 %4575
    %4577 = vrot.lane.b32.xlu0 %v4337, 8
    %v4578 = vpop.permute.xlu0 %4577
    %4579 = vrot.lane.b32.xlu0 %v4341, 8
    %v4580 = vpop.permute.xlu0 %4579
    %v4585 = vmax.f32 %v4569, %v4574
    %v4586 = vmax.f32 %v4570, %v4576
    %v4587 = vmax.f32 %v4571, %v4578
    %v4588 = vmax.f32 %v4572, %v4580
    %v4589 = vld [vmem:[#allocation5] sm:$0x1]
    %v4591 = vlaneseq
    %v4592 = vshrl.u32 %v4591, 7
    %v4593 = vsub.s32 0, %v4592
    %v4594 = vrot.slane %v4589, %v4593
    %v4596 = vadd.f32 %v4585, %v4594
    %v4597 = vadd.f32 %v4586, %v4594
    %v4598 = vadd.f32 %v4587, %v4594
    %v4599 = vadd.f32 %v4588, %v4594
    %v4600 = vmax.f32 %v4596, 0.0
    %v4601 = vmax.f32 %v4597, 0.0
    %v4602 = vmax.f32 %v4598, 0.0
    %v4603 = vmax.f32 %v4599, 0.0
    %4608 = vrot.lane.b32.xlu0 %v4330, 120
    %v4609 = vpop.permute.xlu0 %4608
    %4610 = vrot.lane.b32.xlu0 %v4334, 120
    %v4611 = vpop.permute.xlu0 %4610
    %4612 = vrot.lane.b32.xlu0 %v4338, 120
    %v4613 = vpop.permute.xlu0 %4612
    %4614 = vrot.lane.b32.xlu0 %v4342, 120
    %v4615 = vpop.permute.xlu0 %4614
    %v4620 = vmax.f32 %v4330, %v4609
    %v4621 = vmax.f32 %v4334, %v4611
    %v4622 = vmax.f32 %v4338, %v4613
    %v4623 = vmax.f32 %v4342, %v4615
    %4624 = vrot.lane.b32.xlu0 %v4330, 112
    %v4625 = vpop.permute.xlu0 %4624
    %4626 = vrot.lane.b32.xlu0 %v4334, 112
    %v4627 = vpop.permute.xlu0 %4626
    %4628 = vrot.lane.b32.xlu0 %v4338, 112
    %v4629 = vpop.permute.xlu0 %4628
    %4630 = vrot.lane.b32.xlu0 %v4342, 112
    %v4631 = vpop.permute.xlu0 %4630
    %v4636 = vmax.f32 %v4620, %v4625
    %v4637 = vmax.f32 %v4621, %v4627
    %v4638 = vmax.f32 %v4622, %v4629
    %v4639 = vmax.f32 %v4623, %v4631
    %4640 = vrot.lane.b32.xlu0 %v4330, 104
    %v4641 = vpop.permute.xlu0 %4640
    %4642 = vrot.lane.b32.xlu0 %v4334, 104
    %v4643 = vpop.permute.xlu0 %4642
    %4644 = vrot.lane.b32.xlu0 %v4338, 104
    %v4645 = vpop.permute.xlu0 %4644
    %4646 = vrot.lane.b32.xlu0 %v4342, 104
    %v4647 = vpop.permute.xlu0 %4646
    %v4652 = vmax.f32 %v4636, %v4641
    %v4653 = vmax.f32 %v4637, %v4643
    %v4654 = vmax.f32 %v4638, %v4645
    %v4655 = vmax.f32 %v4639, %v4647
    %4656 = vrot.lane.b32.xlu0 %v4330, 96
    %v4657 = vpop.permute.xlu0 %4656
    %4658 = vrot.lane.b32.xlu0 %v4334, 96
    %v4659 = vpop.permute.xlu0 %4658
    %4660 = vrot.lane.b32.xlu0 %v4338, 96
    %v4661 = vpop.permute.xlu0 %4660
    %4662 = vrot.lane.b32.xlu0 %v4342, 96
    %v4663 = vpop.permute.xlu0 %4662
    %v4668 = vmax.f32 %v4652, %v4657
    %v4669 = vmax.f32 %v4653, %v4659
    %v4670 = vmax.f32 %v4654, %v4661
    %v4671 = vmax.f32 %v4655, %v4663
    %4672 = vrot.lane.b32.xlu0 %v4330, 88
    %v4673 = vpop.permute.xlu0 %4672
    %4674 = vrot.lane.b32.xlu0 %v4334, 88
    %v4675 = vpop.permute.xlu0 %4674
    %4676 = vrot.lane.b32.xlu0 %v4338, 88
    %v4677 = vpop.permute.xlu0 %4676
    %4678 = vrot.lane.b32.xlu0 %v4342, 88
    %v4679 = vpop.permute.xlu0 %4678
    %v4684 = vmax.f32 %v4668, %v4673
    %v4685 = vmax.f32 %v4669, %v4675
    %v4686 = vmax.f32 %v4670, %v4677
    %v4687 = vmax.f32 %v4671, %v4679
    %4688 = vrot.lane.b32.xlu0 %v4330, 80
    %v4689 = vpop.permute.xlu0 %4688
    %4690 = vrot.lane.b32.xlu0 %v4334, 80
    %v4691 = vpop.permute.xlu0 %4690
    %4692 = vrot.lane.b32.xlu0 %v4338, 80
    %v4693 = vpop.permute.xlu0 %4692
    %4694 = vrot.lane.b32.xlu0 %v4342, 80
    %v4695 = vpop.permute.xlu0 %4694
    %v4700 = vmax.f32 %v4684, %v4689
    %v4701 = vmax.f32 %v4685, %v4691
    %v4702 = vmax.f32 %v4686, %v4693
    %v4703 = vmax.f32 %v4687, %v4695
    %4704 = vrot.lane.b32.xlu0 %v4330, 72
    %v4705 = vpop.permute.xlu0 %4704
    %4706 = vrot.lane.b32.xlu0 %v4334, 72
    %v4707 = vpop.permute.xlu0 %4706
    %4708 = vrot.lane.b32.xlu0 %v4338, 72
    %v4709 = vpop.permute.xlu0 %4708
    %4710 = vrot.lane.b32.xlu0 %v4342, 72
    %v4711 = vpop.permute.xlu0 %4710
    %v4716 = vmax.f32 %v4700, %v4705
    %v4717 = vmax.f32 %v4701, %v4707
    %v4718 = vmax.f32 %v4702, %v4709
    %v4719 = vmax.f32 %v4703, %v4711
    %4720 = vrot.lane.b32.xlu0 %v4330, 64
    %v4721 = vpop.permute.xlu0 %4720
    %4722 = vrot.lane.b32.xlu0 %v4334, 64
    %v4723 = vpop.permute.xlu0 %4722
    %4724 = vrot.lane.b32.xlu0 %v4338, 64
    %v4725 = vpop.permute.xlu0 %4724
    %4726 = vrot.lane.b32.xlu0 %v4342, 64
    %v4727 = vpop.permute.xlu0 %4726
    %v4732 = vmax.f32 %v4716, %v4721
    %v4733 = vmax.f32 %v4717, %v4723
    %v4734 = vmax.f32 %v4718, %v4725
    %v4735 = vmax.f32 %v4719, %v4727
    %4736 = vrot.lane.b32.xlu0 %v4330, 56
    %v4737 = vpop.permute.xlu0 %4736
    %4738 = vrot.lane.b32.xlu0 %v4334, 56
    %v4739 = vpop.permute.xlu0 %4738
    %4740 = vrot.lane.b32.xlu0 %v4338, 56
    %v4741 = vpop.permute.xlu0 %4740
    %4742 = vrot.lane.b32.xlu0 %v4342, 56
    %v4743 = vpop.permute.xlu0 %4742
    %v4748 = vmax.f32 %v4732, %v4737
    %v4749 = vmax.f32 %v4733, %v4739
    %v4750 = vmax.f32 %v4734, %v4741
    %v4751 = vmax.f32 %v4735, %v4743
    %4752 = vrot.lane.b32.xlu0 %v4330, 48
    %v4753 = vpop.permute.xlu0 %4752
    %4754 = vrot.lane.b32.xlu0 %v4334, 48
    %v4755 = vpop.permute.xlu0 %4754
    %4756 = vrot.lane.b32.xlu0 %v4338, 48
    %v4757 = vpop.permute.xlu0 %4756
    %4758 = vrot.lane.b32.xlu0 %v4342, 48
    %v4759 = vpop.permute.xlu0 %4758
    %v4764 = vmax.f32 %v4748, %v4753
    %v4765 = vmax.f32 %v4749, %v4755
    %v4766 = vmax.f32 %v4750, %v4757
    %v4767 = vmax.f32 %v4751, %v4759
    %4768 = vrot.lane.b32.xlu0 %v4330, 40
    %v4769 = vpop.permute.xlu0 %4768
    %4770 = vrot.lane.b32.xlu0 %v4334, 40
    %v4771 = vpop.permute.xlu0 %4770
    %4772 = vrot.lane.b32.xlu0 %v4338, 40
    %v4773 = vpop.permute.xlu0 %4772
    %4774 = vrot.lane.b32.xlu0 %v4342, 40
    %v4775 = vpop.permute.xlu0 %4774
    %v4780 = vmax.f32 %v4764, %v4769
    %v4781 = vmax.f32 %v4765, %v4771
    %v4782 = vmax.f32 %v4766, %v4773
    %v4783 = vmax.f32 %v4767, %v4775
    %4784 = vrot.lane.b32.xlu0 %v4330, 32
    %v4785 = vpop.permute.xlu0 %4784
    %4786 = vrot.lane.b32.xlu0 %v4334, 32
    %v4787 = vpop.permute.xlu0 %4786
    %4788 = vrot.lane.b32.xlu0 %v4338, 32
    %v4789 = vpop.permute.xlu0 %4788
    %4790 = vrot.lane.b32.xlu0 %v4342, 32
    %v4791 = vpop.permute.xlu0 %4790
    %v4796 = vmax.f32 %v4780, %v4785
    %v4797 = vmax.f32 %v4781, %v4787
    %v4798 = vmax.f32 %v4782, %v4789
    %v4799 = vmax.f32 %v4783, %v4791
    %4800 = vrot.lane.b32.xlu0 %v4330, 24
    %v4801 = vpop.permute.xlu0 %4800
    %4802 = vrot.lane.b32.xlu0 %v4334, 24
    %v4803 = vpop.permute.xlu0 %4802
    %4804 = vrot.lane.b32.xlu0 %v4338, 24
    %v4805 = vpop.permute.xlu0 %4804
    %4806 = vrot.lane.b32.xlu0 %v4342, 24
    %v4807 = vpop.permute.xlu0 %4806
    %v4812 = vmax.f32 %v4796, %v4801
    %v4813 = vmax.f32 %v4797, %v4803
    %v4814 = vmax.f32 %v4798, %v4805
    %v4815 = vmax.f32 %v4799, %v4807
    %4816 = vrot.lane.b32.xlu0 %v4330, 16
    %v4817 = vpop.permute.xlu0 %4816
    %4818 = vrot.lane.b32.xlu0 %v4334, 16
    %v4819 = vpop.permute.xlu0 %4818
    %4820 = vrot.lane.b32.xlu0 %v4338, 16
    %v4821 = vpop.permute.xlu0 %4820
    %4822 = vrot.lane.b32.xlu0 %v4342, 16
    %v4823 = vpop.permute.xlu0 %4822
    %v4828 = vmax.f32 %v4812, %v4817
    %v4829 = vmax.f32 %v4813, %v4819
    %v4830 = vmax.f32 %v4814, %v4821
    %v4831 = vmax.f32 %v4815, %v4823
    %v4832 = vld [vmem:[#allocation7] sm:$0x1]
    %v4834 = vlaneseq
    %v4835 = vshrl.u32 %v4834, 7
    %v4836 = vsub.s32 0, %v4835
    %v4837 = vrot.slane %v4832, %v4836
    %v4839 = vadd.f32 %v4828, %v4837
    %v4840 = vadd.f32 %v4829, %v4837
    %v4841 = vadd.f32 %v4830, %v4837
    %v4842 = vadd.f32 %v4831, %v4837
    %v4843 = vmax.f32 %v4839, 0.0
    %v4844 = vmax.f32 %v4840, 0.0
    %v4845 = vmax.f32 %v4841, 0.0
    %v4846 = vmax.f32 %v4842, 0.0
    %4851 = vrot.lane.b32.xlu0 %v4331, 112
    %v4852 = vpop.permute.xlu0 %4851
    %4853 = vrot.lane.b32.xlu0 %v4335, 112
    %v4854 = vpop.permute.xlu0 %4853
    %4855 = vrot.lane.b32.xlu0 %v4339, 112
    %v4856 = vpop.permute.xlu0 %4855
    %4857 = vrot.lane.b32.xlu0 %v4343, 112
    %v4858 = vpop.permute.xlu0 %4857
    %v4863 = vmax.f32 %v4330, %v4852
    %v4864 = vmax.f32 %v4331, %v4852
    %v4865 = vmax.f32 %v4334, %v4854
    %v4866 = vmax.f32 %v4335, %v4854
    %v4867 = vmax.f32 %v4338, %v4856
    %v4868 = vmax.f32 %v4339, %v4856
    %v4869 = vmax.f32 %v4342, %v4858
    %v4870 = vmax.f32 %v4343, %v4858
    %4871 = vrot.lane.b32.xlu0 %v4331, 96
    %v4872 = vpop.permute.xlu0 %4871
    %4873 = vrot.lane.b32.xlu0 %v4335, 96
    %v4874 = vpop.permute.xlu0 %4873
    %4875 = vrot.lane.b32.xlu0 %v4339, 96
    %v4876 = vpop.permute.xlu0 %4875
    %4877 = vrot.lane.b32.xlu0 %v4343, 96
    %v4878 = vpop.permute.xlu0 %4877
    %v4883 = vmax.f32 %v4863, %v4872
    %v4884 = vmax.f32 %v4864, %v4872
    %v4885 = vmax.f32 %v4865, %v4874
    %v4886 = vmax.f32 %v4866, %v4874
    %v4887 = vmax.f32 %v4867, %v4876
    %v4888 = vmax.f32 %v4868, %v4876
    %v4889 = vmax.f32 %v4869, %v4878
    %v4890 = vmax.f32 %v4870, %v4878
    %4891 = vrot.lane.b32.xlu0 %v4331, 80
    %v4892 = vpop.permute.xlu0 %4891
    %4893 = vrot.lane.b32.xlu0 %v4335, 80
    %v4894 = vpop.permute.xlu0 %4893
    %4895 = vrot.lane.b32.xlu0 %v4339, 80
    %v4896 = vpop.permute.xlu0 %4895
    %4897 = vrot.lane.b32.xlu0 %v4343, 80
    %v4898 = vpop.permute.xlu0 %4897
    %v4903 = vmax.f32 %v4883, %v4892
    %v4904 = vmax.f32 %v4884, %v4892
    %v4905 = vmax.f32 %v4885, %v4894
    %v4906 = vmax.f32 %v4886, %v4894
    %v4907 = vmax.f32 %v4887, %v4896
    %v4908 = vmax.f32 %v4888, %v4896
    %v4909 = vmax.f32 %v4889, %v4898
    %v4910 = vmax.f32 %v4890, %v4898
    %4911 = vrot.lane.b32.xlu0 %v4331, 64
    %v4912 = vpop.permute.xlu0 %4911
    %4913 = vrot.lane.b32.xlu0 %v4335, 64
    %v4914 = vpop.permute.xlu0 %4913
    %4915 = vrot.lane.b32.xlu0 %v4339, 64
    %v4916 = vpop.permute.xlu0 %4915
    %4917 = vrot.lane.b32.xlu0 %v4343, 64
    %v4918 = vpop.permute.xlu0 %4917
    %v4923 = vmax.f32 %v4903, %v4912
    %v4924 = vmax.f32 %v4904, %v4912
    %v4925 = vmax.f32 %v4905, %v4914
    %v4926 = vmax.f32 %v4906, %v4914
    %v4927 = vmax.f32 %v4907, %v4916
    %v4928 = vmax.f32 %v4908, %v4916
    %v4929 = vmax.f32 %v4909, %v4918
    %v4930 = vmax.f32 %v4910, %v4918
    %4931 = vrot.lane.b32.xlu0 %v4331, 48
    %v4932 = vpop.permute.xlu0 %4931
    %4933 = vrot.lane.b32.xlu0 %v4335, 48
    %v4934 = vpop.permute.xlu0 %4933
    %4935 = vrot.lane.b32.xlu0 %v4339, 48
    %v4936 = vpop.permute.xlu0 %4935
    %4937 = vrot.lane.b32.xlu0 %v4343, 48
    %v4938 = vpop.permute.xlu0 %4937
    %v4943 = vmax.f32 %v4923, %v4932
    %v4944 = vmax.f32 %v4924, %v4932
    %v4945 = vmax.f32 %v4925, %v4934
    %v4946 = vmax.f32 %v4926, %v4934
    %v4947 = vmax.f32 %v4927, %v4936
    %v4948 = vmax.f32 %v4928, %v4936
    %v4949 = vmax.f32 %v4929, %v4938
    %v4950 = vmax.f32 %v4930, %v4938
    %4951 = vrot.lane.b32.xlu0 %v4331, 32
    %v4952 = vpop.permute.xlu0 %4951
    %4953 = vrot.lane.b32.xlu0 %v4335, 32
    %v4954 = vpop.permute.xlu0 %4953
    %4955 = vrot.lane.b32.xlu0 %v4339, 32
    %v4956 = vpop.permute.xlu0 %4955
    %4957 = vrot.lane.b32.xlu0 %v4343, 32
    %v4958 = vpop.permute.xlu0 %4957
    %v4963 = vmax.f32 %v4943, %v4952
    %v4964 = vmax.f32 %v4944, %v4952
    %v4965 = vmax.f32 %v4945, %v4954
    %v4966 = vmax.f32 %v4946, %v4954
    %v4967 = vmax.f32 %v4947, %v4956
    %v4968 = vmax.f32 %v4948, %v4956
    %v4969 = vmax.f32 %v4949, %v4958
    %v4970 = vmax.f32 %v4950, %v4958
    %4971 = vrot.lane.b32.xlu0 %v4331, 16
    %v4972 = vpop.permute.xlu0 %4971
    %4973 = vrot.lane.b32.xlu0 %v4335, 16
    %v4974 = vpop.permute.xlu0 %4973
    %4975 = vrot.lane.b32.xlu0 %v4339, 16
    %v4976 = vpop.permute.xlu0 %4975
    %4977 = vrot.lane.b32.xlu0 %v4343, 16
    %v4978 = vpop.permute.xlu0 %4977
    %v4983 = vmax.f32 %v4963, %v4972
    %v4984 = vmax.f32 %v4964, %v4972
    %v4985 = vmax.f32 %v4965, %v4974
    %v4986 = vmax.f32 %v4966, %v4974
    %v4987 = vmax.f32 %v4967, %v4976
    %v4988 = vmax.f32 %v4968, %v4976
    %v4989 = vmax.f32 %v4969, %v4978
    %v4990 = vmax.f32 %v4970, %v4978
    %v4991 = vmax.f32 %v4983, %v4331
    %v4992 = vmax.f32 %v4984, %v4332
    %v4993 = vmax.f32 %v4985, %v4335
    %v4994 = vmax.f32 %v4986, %v4336
    %v4995 = vmax.f32 %v4987, %v4339
    %v4996 = vmax.f32 %v4988, %v4340
    %v4997 = vmax.f32 %v4989, %v4343
    %v4998 = vmax.f32 %v4990, %v4344
    %5003 = vrot.lane.b32.xlu0 %v4332, 112
    %v5004 = vpop.permute.xlu0 %5003
    %5005 = vrot.lane.b32.xlu0 %v4336, 112
    %v5006 = vpop.permute.xlu0 %5005
    %5007 = vrot.lane.b32.xlu0 %v4340, 112
    %v5008 = vpop.permute.xlu0 %5007
    %5009 = vrot.lane.b32.xlu0 %v4344, 112
    %v5010 = vpop.permute.xlu0 %5009
    %v5015 = vmax.f32 %v4991, %v5004
    %v5016 = vmax.f32 %v4992, %v5004
    %v5017 = vmax.f32 %v4993, %v5006
    %v5018 = vmax.f32 %v4994, %v5006
    %v5019 = vmax.f32 %v4995, %v5008
    %v5020 = vmax.f32 %v4996, %v5008
    %v5021 = vmax.f32 %v4997, %v5010
    %v5022 = vmax.f32 %v4998, %v5010
    %5023 = vrot.lane.b32.xlu0 %v4332, 96
    %v5024 = vpop.permute.xlu0 %5023
    %5025 = vrot.lane.b32.xlu0 %v4336, 96
    %v5026 = vpop.permute.xlu0 %5025
    %5027 = vrot.lane.b32.xlu0 %v4340, 96
    %v5028 = vpop.permute.xlu0 %5027
    %5029 = vrot.lane.b32.xlu0 %v4344, 96
    %v5030 = vpop.permute.xlu0 %5029
    %v5035 = vmax.f32 %v5015, %v5024
    %v5036 = vmax.f32 %v5016, %v5024
    %v5037 = vmax.f32 %v5017, %v5026
    %v5038 = vmax.f32 %v5018, %v5026
    %v5039 = vmax.f32 %v5019, %v5028
    %v5040 = vmax.f32 %v5020, %v5028
    %v5041 = vmax.f32 %v5021, %v5030
    %v5042 = vmax.f32 %v5022, %v5030
    %5043 = vrot.lane.b32.xlu0 %v4332, 80
    %v5044 = vpop.permute.xlu0 %5043
    %5045 = vrot.lane.b32.xlu0 %v4336, 80
    %v5046 = vpop.permute.xlu0 %5045
    %5047 = vrot.lane.b32.xlu0 %v4340, 80
    %v5048 = vpop.permute.xlu0 %5047
    %5049 = vrot.lane.b32.xlu0 %v4344, 80
    %v5050 = vpop.permute.xlu0 %5049
    %v5055 = vmax.f32 %v5035, %v5044
    %v5056 = vmax.f32 %v5036, %v5044
    %v5057 = vmax.f32 %v5037, %v5046
    %v5058 = vmax.f32 %v5038, %v5046
    %v5059 = vmax.f32 %v5039, %v5048
    %v5060 = vmax.f32 %v5040, %v5048
    %v5061 = vmax.f32 %v5041, %v5050
    %v5062 = vmax.f32 %v5042, %v5050
    %5063 = vrot.lane.b32.xlu0 %v4332, 64
    %v5064 = vpop.permute.xlu0 %5063
    %5065 = vrot.lane.b32.xlu0 %v4336, 64
    %v5066 = vpop.permute.xlu0 %5065
    %5067 = vrot.lane.b32.xlu0 %v4340, 64
    %v5068 = vpop.permute.xlu0 %5067
    %5069 = vrot.lane.b32.xlu0 %v4344, 64
    %v5070 = vpop.permute.xlu0 %5069
    %v5075 = vmax.f32 %v5055, %v5064
    %v5076 = vmax.f32 %v5056, %v5064
    %v5077 = vmax.f32 %v5057, %v5066
    %v5078 = vmax.f32 %v5058, %v5066
    %v5079 = vmax.f32 %v5059, %v5068
    %v5080 = vmax.f32 %v5060, %v5068
    %v5081 = vmax.f32 %v5061, %v5070
    %v5082 = vmax.f32 %v5062, %v5070
    %5083 = vrot.lane.b32.xlu0 %v4332, 48
    %v5084 = vpop.permute.xlu0 %5083
    %5085 = vrot.lane.b32.xlu0 %v4336, 48
    %v5086 = vpop.permute.xlu0 %5085
    %5087 = vrot.lane.b32.xlu0 %v4340, 48
    %v5088 = vpop.permute.xlu0 %5087
    %5089 = vrot.lane.b32.xlu0 %v4344, 48
    %v5090 = vpop.permute.xlu0 %5089
    %v5095 = vmax.f32 %v5075, %v5084
    %v5096 = vmax.f32 %v5076, %v5084
    %v5097 = vmax.f32 %v5077, %v5086
    %v5098 = vmax.f32 %v5078, %v5086
    %v5099 = vmax.f32 %v5079, %v5088
    %v5100 = vmax.f32 %v5080, %v5088
    %v5101 = vmax.f32 %v5081, %v5090
    %v5102 = vmax.f32 %v5082, %v5090
    %v5103 = vld [vmem:[#allocation8] sm:$0x1]
    %v5105 = vlaneseq
    %v5106 = vshrl.u32 %v5105, 7
    %v5107 = vsub.s32 0, %v5106
    %v5108 = vrot.slane %v5103, %v5107
    %5109 = vrot.lane.b32.xlu0 %v5108, 120
    %v5110 = vpop.permute.xlu0 %5109
    %v5112 = vadd.f32 %v5095, %v5110
    %v5113 = vadd.f32 %v5096, %v5110
    %v5114 = vadd.f32 %v5097, %v5110
    %v5115 = vadd.f32 %v5098, %v5110
    %v5116 = vadd.f32 %v5099, %v5110
    %v5117 = vadd.f32 %v5100, %v5110
    %v5118 = vadd.f32 %v5101, %v5110
    %v5119 = vadd.f32 %v5102, %v5110
    %v5120 = vmax.f32 %v5112, 0.0
    %v5121 = vmax.f32 %v5113, 0.0
    %v5122 = vmax.f32 %v5114, 0.0
    %v5123 = vmax.f32 %v5115, 0.0
    %v5124 = vmax.f32 %v5116, 0.0
    %v5125 = vmax.f32 %v5117, 0.0
    %v5126 = vmax.f32 %v5118, 0.0
    %v5127 = vmax.f32 %v5119, 0.0
    %5132 = vrot.lane.b32.xlu0 %v4843, 8
    %v5133 = vpop.permute.xlu0 %5132
    %5134 = vrot.lane.b32.xlu0 %v4844, 8
    %v5135 = vpop.permute.xlu0 %5134
    %5136 = vrot.lane.b32.xlu0 %v4845, 8
    %v5137 = vpop.permute.xlu0 %5136
    %5138 = vrot.lane.b32.xlu0 %v4846, 8
    %v5139 = vpop.permute.xlu0 %5138
    %5152 = vrot.lane.b32.xlu0 %v5120, 24
    %v5153 = vpop.permute.xlu0 %5152
    %5154 = vrot.lane.b32.xlu0 %v5121, 24
    %v5155 = vpop.permute.xlu0 %5154
    %5156 = vrot.lane.b32.xlu0 %v5122, 24
    %v5157 = vpop.permute.xlu0 %5156
    %5158 = vrot.lane.b32.xlu0 %v5123, 24
    %v5159 = vpop.permute.xlu0 %5158
    %5160 = vrot.lane.b32.xlu0 %v5124, 24
    %v5161 = vpop.permute.xlu0 %5160
    %5162 = vrot.lane.b32.xlu0 %v5125, 24
    %v5163 = vpop.permute.xlu0 %5162
    %5164 = vrot.lane.b32.xlu0 %v5126, 24
    %v5165 = vpop.permute.xlu0 %5164
    %5166 = vrot.lane.b32.xlu0 %v5127, 24
    %v5167 = vpop.permute.xlu0 %5166
    %vm5168 = vcmask 195584
    %v5169 = vsel %vm5168, %v5153, %v5155
    %v5170 = vsel %vm5168, %v5157, %v5159
    %v5171 = vsel %vm5168, %v5161, %v5163
    %v5172 = vsel %vm5168, %v5165, %v5167
    %vm5177 = vcmask 64512
    %v5178 = vsel %vm5177, %v4600, %v5133
    %v5179 = vsel %vm5177, %v4601, %v5135
    %v5180 = vsel %vm5177, %v4602, %v5137
    %v5181 = vsel %vm5177, %v4603, %v5139
    %vm5182 = vcmask 130048
    %v5183 = vsel %vm5182, %v5178, %v5169
    %v5184 = vsel %vm5182, %v5179, %v5170
    %v5185 = vsel %vm5182, %v5180, %v5171
    %v5186 = vsel %vm5182, %v5181, %v5172
    %v5187 = vld [vmem:[#allocation10] sm:$0xff]
    %v5188 = vld [vmem:[#allocation10 + $0x8] sm:$0xff]
    %v5189 = vld [vmem:[#allocation10 + $0x10] sm:$0xff]
    %v5190 = vld [vmem:[#allocation10 + $0x18] sm:$0xff]
    %v5191 = vld [vmem:[#allocation11] sm:$0x1]
    %v5193 = vlaneseq
    %v5194 = vshrl.u32 %v5193, 7
    %v5195 = vsub.s32 0, %v5194
    %v5196 = vrot.slane %v5191, %v5195
    %vm5198 = vcmask 261120
    %v5200 = vsel %vm5198, %v5183, 0
    %v5203 = vsel %vm5198, %v5184, 0
    %v5206 = vsel %vm5198, %v5185, 0
    %v5209 = vsel %vm5198, %v5186, 0
    %5211 = vmatprep.subr.mxu0 0.0
    %5212 = vmatpush1.msra.mxu0 0.0
    %5213 = vmatprep.subr.mxu0 0.0
    %5214 = vmatpush1.msra.mxu0 0.0
    %5215 = vmatprep.subr.mxu0 0.0
    %5216 = vmatpush1.msra.mxu0 0.0
    %5217 = vmatprep.subr.mxu0 0.0
    %5218 = vmatpush1.msra.mxu0 0.0
    %5219 = vmatprep.subr.mxu0 0.0
    %5220 = vmatpush1.msra.mxu0 0.0
    %5221 = vmatprep.subr.mxu0 0.0
    %5222 = vmatpush1.msra.mxu0 0.0
    %5223 = vmatprep.subr.mxu0 0.0
    %5224 = vmatpush1.msra.mxu0 0.0
    %5225 = vmatprep.subr.mxu0 0.0
    %5226 = vmatpush1.msra.mxu0 0.0
    %5227 = vmatprep.subr.mxu0 0.0
    %5228 = vmatpush1.msra.mxu0 0.0
    %5229 = vmatprep.subr.mxu0 0.0
    %5230 = vmatpush1.msra.mxu0 0.0
    %5231 = vmatprep.subr.mxu0 0.0
    %5232 = vmatpush1.msra.mxu0 0.0
    %5233 = vmatprep.subr.mxu0 0.0
    %5234 = vmatpush1.msra.mxu0 0.0
    %5235 = vmatprep.subr.mxu0 0.0
    %5236 = vmatpush1.msra.mxu0 %v5190
    %5237 = vmatprep.subr.mxu0 0.0
    %5238 = vmatpush1.msra.mxu0 %v5189
    %5239 = vmatprep.subr.mxu0 0.0
    %5240 = vmatpush1.msra.mxu0 %v5188
    %5241 = vmatprep.subr.mxu0 0.0
    %5242 = vmatpush1.msra.mxu0 %v5187
    %5243 = vmatprep.subr.mxu0 0.0
    %5244 = vmatpush2.msra.mxu0 0.0
    %5245 = vmatprep.subr.mxu0 0.0
    %5246 = vmatpush2.msra.mxu0 0.0
    %5247 = vmatprep.subr.mxu0 0.0
    %5248 = vmatpush2.msra.mxu0 0.0
    %5249 = vmatprep.subr.mxu0 0.0
    %5250 = vmatpush2.msra.mxu0 0.0
    %5251 = vmatprep.subr.mxu0 0.0
    %5252 = vmatpush2.msra.mxu0 0.0
    %5253 = vmatprep.subr.mxu0 0.0
    %5254 = vmatpush2.msra.mxu0 0.0
    %5255 = vmatprep.subr.mxu0 0.0
    %5256 = vmatpush2.msra.mxu0 0.0
    %5257 = vmatprep.subr.mxu0 0.0
    %5258 = vmatpush2.msra.mxu0 0.0
    %5259 = vmatprep.subr.mxu0 0.0
    %5260 = vmatpush2.msra.mxu0 0.0
    %5261 = vmatprep.subr.mxu0 0.0
    %5262 = vmatpush2.msra.mxu0 0.0
    %5263 = vmatprep.subr.mxu0 0.0
    %5264 = vmatpush2.msra.mxu0 0.0
    %5265 = vmatprep.subr.mxu0 0.0
    %5266 = vmatpush2.msra.mxu0 0.0
    %5267 = vmatprep.subr.mxu0 0.0
    %5268 = vmatpush2.msra.mxu0 0.0
    %5269 = vmatprep.subr.mxu0 0.0
    %5270 = vmatpush2.msra.mxu0 0.0
    %5271 = vmatprep.subr.mxu0 0.0
    %5272 = vmatpush2.msra.mxu0 0.0
    %5273 = vmatprep.subr.mxu0 0.0
    %5274 = vmatpush2.msra.mxu0 0.0
    %5275 = vmatprep.mubr.f32.mxu0 0.0
    %5276 = vmatmul.mubr.f32.gmra.mxu0 %v5200
    %v5277 = vpop.f32.mrf.mxu0
    %v5278 = vadd.f32 %v5196, %v5277
    %v5279 = vpop.f32.mrf.mxu0
    %5280 = vmatprep.mubr.f32.mxu0 0.0
    %5281 = vmatmul.mubr.f32.gmra.mxu0 %v5203
    %v5282 = vpop.f32.mrf.mxu0
    %v5283 = vadd.f32 %v5196, %v5282
    %v5284 = vpop.f32.mrf.mxu0
    %5285 = vmatprep.mubr.f32.mxu0 0.0
    %5286 = vmatmul.mubr.f32.gmra.mxu0 %v5206
    %v5287 = vpop.f32.mrf.mxu0
    %v5288 = vadd.f32 %v5196, %v5287
    %v5289 = vpop.f32.mrf.mxu0
    %5290 = vmatprep.mubr.f32.mxu0 0.0
    %5291 = vmatmul.mubr.f32.gmra.mxu0 %v5209
    %v5292 = vpop.f32.mrf.mxu0
    %v5293 = vadd.f32 %v5196, %v5292
    %v5294 = vpop.f32.mrf.mxu0
    %5295 = vdwg.mxu0
    %v5296 = vmax.f32 %v5278, 0.0
    %v5297 = vmax.f32 %v5283, 0.0
    %v5298 = vmax.f32 %v5288, 0.0
    %v5299 = vmax.f32 %v5293, 0.0
    %v5300 = vxor.u32 %v5278, 2147483648
    %v5301 = vxor.u32 %v5283, 2147483648
    %v5302 = vxor.u32 %v5288, 2147483648
    %v5303 = vxor.u32 %v5293, 2147483648
    %v5304 = vmul.f32 %v5300, 1.442695
    %v5305 = vpow.pop %v5304
    %v5306 = vmul.f32 %v5301, 1.442695
    %v5307 = vpow.pop %v5306
    %v5308 = vmul.f32 %v5302, 1.442695
    %v5309 = vpow.pop %v5308
    %v5310 = vmul.f32 %v5303, 1.442695
    %v5311 = vpow.pop %v5310
    %v5312 = vadd.f32 %v5305, 1.0
    %v5313 = vadd.f32 %v5307, 1.0
    %v5314 = vadd.f32 %v5309, 1.0
    %v5315 = vadd.f32 %v5311, 1.0
    %v5316 = vrcp.pop %v5312
    %v5317 = vmul.f32 1.0, %v5316
    %v5318 = vrcp.pop %v5313
    %v5319 = vmul.f32 1.0, %v5318
    %v5320 = vrcp.pop %v5314
    %v5321 = vmul.f32 1.0, %v5320
    %v5322 = vrcp.pop %v5315
    %v5323 = vmul.f32 1.0, %v5322
    %5324 = vrot.lane.b32.xlu0 %v5183, 32
    %v5325 = vpop.permute.xlu0 %5324
    %5326 = vrot.lane.b32.xlu0 %v5184, 32
    %v5327 = vpop.permute.xlu0 %5326
    %5328 = vrot.lane.b32.xlu0 %v5185, 32
    %v5329 = vpop.permute.xlu0 %5328
    %5330 = vrot.lane.b32.xlu0 %v5186, 32
    %v5331 = vpop.permute.xlu0 %5330
    %v5336 = vmul.f32 %v5317, %v5325
    %v5337 = vmul.f32 %v5319, %v5327
    %v5338 = vmul.f32 %v5321, %v5329
    %v5339 = vmul.f32 %v5323, %v5331
    %v5340 = vsub.f32 1.0, %v5317
    %v5341 = vsub.f32 1.0, %v5319
    %v5342 = vsub.f32 1.0, %v5321
    %v5343 = vsub.f32 1.0, %v5323
    %5348 = vrot.lane.b32.xlu0 %v5296, 32
    %v5349 = vpop.permute.xlu0 %5348
    %5350 = vrot.lane.b32.xlu0 %v5297, 32
    %v5351 = vpop.permute.xlu0 %5350
    %5352 = vrot.lane.b32.xlu0 %v5298, 32
    %v5353 = vpop.permute.xlu0 %5352
    %5354 = vrot.lane.b32.xlu0 %v5299, 32
    %v5355 = vpop.permute.xlu0 %5354
    %v5360 = vmul.f32 %v5340, %v5349
    %v5361 = vmul.f32 %v5341, %v5351
    %v5362 = vmul.f32 %v5342, %v5353
    %v5363 = vmul.f32 %v5343, %v5355
    %v5364 = vadd.f32 %v5336, %v5360
    %v5365 = vadd.f32 %v5337, %v5361
    %v5366 = vadd.f32 %v5338, %v5362
    %v5367 = vadd.f32 %v5339, %v5363
    %v5368 = vld [vmem:[#allocation13] sm:$0xff]
    %v5369 = vld [vmem:[#allocation13 + $0x8] sm:$0xff]
    %v5370 = vld [vmem:[#allocation13 + $0x10] sm:$0xff]
    %v5371 = vld [vmem:[#allocation13 + $0x18] sm:$0xff]
    %v5372 = vld [vmem:[#allocation14] sm:$0x1]
    %v5374 = vlaneseq
    %v5375 = vshrl.u32 %v5374, 7
    %v5376 = vsub.s32 0, %v5375
    %v5377 = vrot.slane %v5372, %v5376
    %5383 = vrot.lane.b32.xlu0 %v5364, 96
    %v5384 = vpop.permute.xlu0 %5383
    %5385 = vrot.lane.b32.xlu0 %v5365, 96
    %v5386 = vpop.permute.xlu0 %5385
    %5387 = vrot.lane.b32.xlu0 %v5366, 96
    %v5388 = vpop.permute.xlu0 %5387
    %5389 = vrot.lane.b32.xlu0 %v5367, 96
    %v5390 = vpop.permute.xlu0 %5389
    %v5391 = vsel %vm5198, %v5384, 0
    %v5393 = vsel %vm5198, %v5386, 0
    %v5395 = vsel %vm5198, %v5388, 0
    %v5397 = vsel %vm5198, %v5390, 0
    %5399 = vmatprep.subr.mxu0 0.0
    %5400 = vmatpush1.msra.mxu0 0.0
    %5401 = vmatprep.subr.mxu0 0.0
    %5402 = vmatpush1.msra.mxu0 0.0
    %5403 = vmatprep.subr.mxu0 0.0
    %5404 = vmatpush1.msra.mxu0 0.0
    %5405 = vmatprep.subr.mxu0 0.0
    %5406 = vmatpush1.msra.mxu0 0.0
    %5407 = vmatprep.subr.mxu0 0.0
    %5408 = vmatpush1.msra.mxu0 0.0
    %5409 = vmatprep.subr.mxu0 0.0
    %5410 = vmatpush1.msra.mxu0 0.0
    %5411 = vmatprep.subr.mxu0 0.0
    %5412 = vmatpush1.msra.mxu0 0.0
    %5413 = vmatprep.subr.mxu0 0.0
    %5414 = vmatpush1.msra.mxu0 0.0
    %5415 = vmatprep.subr.mxu0 0.0
    %5416 = vmatpush1.msra.mxu0 0.0
    %5417 = vmatprep.subr.mxu0 0.0
    %5418 = vmatpush1.msra.mxu0 0.0
    %5419 = vmatprep.subr.mxu0 0.0
    %5420 = vmatpush1.msra.mxu0 0.0
    %5421 = vmatprep.subr.mxu0 0.0
    %5422 = vmatpush1.msra.mxu0 0.0
    %5423 = vmatprep.subr.mxu0 0.0
    %5424 = vmatpush1.msra.mxu0 %v5371
    %5425 = vmatprep.subr.mxu0 0.0
    %5426 = vmatpush1.msra.mxu0 %v5370
    %5427 = vmatprep.subr.mxu0 0.0
    %5428 = vmatpush1.msra.mxu0 %v5369
    %5429 = vmatprep.subr.mxu0 0.0
    %5430 = vmatpush1.msra.mxu0 %v5368
    %5431 = vmatprep.subr.mxu0 0.0
    %5432 = vmatpush2.msra.mxu0 0.0
    %5433 = vmatprep.subr.mxu0 0.0
    %5434 = vmatpush2.msra.mxu0 0.0
    %5435 = vmatprep.subr.mxu0 0.0
    %5436 = vmatpush2.msra.mxu0 0.0
    %5437 = vmatprep.subr.mxu0 0.0
    %5438 = vmatpush2.msra.mxu0 0.0
    %5439 = vmatprep.subr.mxu0 0.0
    %5440 = vmatpush2.msra.mxu0 0.0
    %5441 = vmatprep.subr.mxu0 0.0
    %5442 = vmatpush2.msra.mxu0 0.0
    %5443 = vmatprep.subr.mxu0 0.0
    %5444 = vmatpush2.msra.mxu0 0.0
    %5445 = vmatprep.subr.mxu0 0.0
    %5446 = vmatpush2.msra.mxu0 0.0
    %5447 = vmatprep.subr.mxu0 0.0
    %5448 = vmatpush2.msra.mxu0 0.0
    %5449 = vmatprep.subr.mxu0 0.0
    %5450 = vmatpush2.msra.mxu0 0.0
    %5451 = vmatprep.subr.mxu0 0.0
    %5452 = vmatpush2.msra.mxu0 0.0
    %5453 = vmatprep.subr.mxu0 0.0
    %5454 = vmatpush2.msra.mxu0 0.0
    %5455 = vmatprep.subr.mxu0 0.0
    %5456 = vmatpush2.msra.mxu0 0.0
    %5457 = vmatprep.subr.mxu0 0.0
    %5458 = vmatpush2.msra.mxu0 0.0
    %5459 = vmatprep.subr.mxu0 0.0
    %5460 = vmatpush2.msra.mxu0 0.0
    %5461 = vmatprep.subr.mxu0 0.0
    %5462 = vmatpush2.msra.mxu0 0.0
    %5463 = vmatprep.mubr.f32.mxu0 0.0
    %5464 = vmatmul.mubr.f32.gmra.mxu0 %v5391
    %v5465 = vpop.f32.mrf.mxu0
    %v5466 = vadd.f32 %v5377, %v5465
    %v5467 = vpop.f32.mrf.mxu0
    %5468 = vmatprep.mubr.f32.mxu0 0.0
    %5469 = vmatmul.mubr.f32.gmra.mxu0 %v5393
    %v5470 = vpop.f32.mrf.mxu0
    %v5471 = vadd.f32 %v5377, %v5470
    %v5472 = vpop.f32.mrf.mxu0
    %5473 = vmatprep.mubr.f32.mxu0 0.0
    %5474 = vmatmul.mubr.f32.gmra.mxu0 %v5395
    %v5475 = vpop.f32.mrf.mxu0
    %v5476 = vadd.f32 %v5377, %v5475
    %v5477 = vpop.f32.mrf.mxu0
    %5478 = vmatprep.mubr.f32.mxu0 0.0
    %5479 = vmatmul.mubr.f32.gmra.mxu0 %v5397
    %v5480 = vpop.f32.mrf.mxu0
    %v5481 = vadd.f32 %v5377, %v5480
    %v5482 = vpop.f32.mrf.mxu0
    %5483 = vdwg.mxu0
    %v5484 = vmax.f32 %v5466, 0.0
    %v5485 = vmax.f32 %v5471, 0.0
    %v5486 = vmax.f32 %v5476, 0.0
    %v5487 = vmax.f32 %v5481, 0.0
    %v5488 = vxor.u32 %v5466, 2147483648
    %v5489 = vxor.u32 %v5471, 2147483648
    %v5490 = vxor.u32 %v5476, 2147483648
    %v5491 = vxor.u32 %v5481, 2147483648
    %v5492 = vmul.f32 %v5488, 1.442695
    %v5493 = vpow.pop %v5492
    %v5494 = vmul.f32 %v5489, 1.442695
    %v5495 = vpow.pop %v5494
    %v5496 = vmul.f32 %v5490, 1.442695
    %v5497 = vpow.pop %v5496
    %v5498 = vmul.f32 %v5491, 1.442695
    %v5499 = vpow.pop %v5498
    %v5500 = vadd.f32 %v5493, 1.0
    %v5501 = vadd.f32 %v5495, 1.0
    %v5502 = vadd.f32 %v5497, 1.0
    %v5503 = vadd.f32 %v5499, 1.0
    %v5504 = vrcp.pop %v5500
    %v5505 = vmul.f32 1.0, %v5504
    %v5506 = vrcp.pop %v5501
    %v5507 = vmul.f32 1.0, %v5506
    %v5508 = vrcp.pop %v5502
    %v5509 = vmul.f32 1.0, %v5508
    %v5510 = vrcp.pop %v5503
    %v5511 = vmul.f32 1.0, %v5510
    %v5512 = vmul.f32 %v5505, %v5364
    %v5513 = vmul.f32 %v5507, %v5365
    %v5514 = vmul.f32 %v5509, %v5366
    %v5515 = vmul.f32 %v5511, %v5367
    %v5516 = vsub.f32 1.0, %v5505
    %v5517 = vsub.f32 1.0, %v5507
    %v5518 = vsub.f32 1.0, %v5509
    %v5519 = vsub.f32 1.0, %v5511
    %5524 = vrot.lane.b32.xlu0 %v5484, 32
    %v5525 = vpop.permute.xlu0 %5524
    %5526 = vrot.lane.b32.xlu0 %v5485, 32
    %v5527 = vpop.permute.xlu0 %5526
    %5528 = vrot.lane.b32.xlu0 %v5486, 32
    %v5529 = vpop.permute.xlu0 %5528
    %5530 = vrot.lane.b32.xlu0 %v5487, 32
    %v5531 = vpop.permute.xlu0 %5530
    %v5536 = vmul.f32 %v5516, %v5525
    %v5537 = vmul.f32 %v5517, %v5527
    %v5538 = vmul.f32 %v5518, %v5529
    %v5539 = vmul.f32 %v5519, %v5531
    %v5540 = vadd.f32 %v5512, %v5536
    %v5541 = vadd.f32 %v5513, %v5537
    %v5542 = vadd.f32 %v5514, %v5538
    %v5543 = vadd.f32 %v5515, %v5539
    %v5544 = vld [vmem:[#allocation16] sm:$0xff]
    %v5545 = vld [vmem:[#allocation16 + $0x8] sm:$0xff]
    %v5546 = vld [vmem:[#allocation16 + $0x10] sm:$0xff]
    %v5547 = vld [vmem:[#allocation16 + $0x18] sm:$0xff]
    %v5548 = vld [vmem:[#allocation17] sm:$0x1]
    %v5550 = vlaneseq
    %v5551 = vshrl.u32 %v5550, 7
    %v5552 = vsub.s32 0, %v5551
    %v5553 = vrot.slane %v5548, %v5552
    %5559 = vrot.lane.b32.xlu0 %v5540, 96
    %v5560 = vpop.permute.xlu0 %5559
    %5561 = vrot.lane.b32.xlu0 %v5541, 96
    %v5562 = vpop.permute.xlu0 %5561
    %5563 = vrot.lane.b32.xlu0 %v5542, 96
    %v5564 = vpop.permute.xlu0 %5563
    %5565 = vrot.lane.b32.xlu0 %v5543, 96
    %v5566 = vpop.permute.xlu0 %5565
    %v5567 = vsel %vm5198, %v5560, 0
    %v5569 = vsel %vm5198, %v5562, 0
    %v5571 = vsel %vm5198, %v5564, 0
    %v5573 = vsel %vm5198, %v5566, 0
    %5575 = vmatprep.subr.mxu0 0.0
    %5576 = vmatpush1.msra.mxu0 0.0
    %5577 = vmatprep.subr.mxu0 0.0
    %5578 = vmatpush1.msra.mxu0 0.0
    %5579 = vmatprep.subr.mxu0 0.0
    %5580 = vmatpush1.msra.mxu0 0.0
    %5581 = vmatprep.subr.mxu0 0.0
    %5582 = vmatpush1.msra.mxu0 0.0
    %5583 = vmatprep.subr.mxu0 0.0
    %5584 = vmatpush1.msra.mxu0 0.0
    %5585 = vmatprep.subr.mxu0 0.0
    %5586 = vmatpush1.msra.mxu0 0.0
    %5587 = vmatprep.subr.mxu0 0.0
    %5588 = vmatpush1.msra.mxu0 0.0
    %5589 = vmatprep.subr.mxu0 0.0
    %5590 = vmatpush1.msra.mxu0 0.0
    %5591 = vmatprep.subr.mxu0 0.0
    %5592 = vmatpush1.msra.mxu0 0.0
    %5593 = vmatprep.subr.mxu0 0.0
    %5594 = vmatpush1.msra.mxu0 0.0
    %5595 = vmatprep.subr.mxu0 0.0
    %5596 = vmatpush1.msra.mxu0 0.0
    %5597 = vmatprep.subr.mxu0 0.0
    %5598 = vmatpush1.msra.mxu0 0.0
    %5599 = vmatprep.subr.mxu0 0.0
    %5600 = vmatpush1.msra.mxu0 %v5547
    %5601 = vmatprep.subr.mxu0 0.0
    %5602 = vmatpush1.msra.mxu0 %v5546
    %5603 = vmatprep.subr.mxu0 0.0
    %5604 = vmatpush1.msra.mxu0 %v5545
    %5605 = vmatprep.subr.mxu0 0.0
    %5606 = vmatpush1.msra.mxu0 %v5544
    %5607 = vmatprep.subr.mxu0 0.0
    %5608 = vmatpush2.msra.mxu0 0.0
    %5609 = vmatprep.subr.mxu0 0.0
    %5610 = vmatpush2.msra.mxu0 0.0
    %5611 = vmatprep.subr.mxu0 0.0
    %5612 = vmatpush2.msra.mxu0 0.0
    %5613 = vmatprep.subr.mxu0 0.0
    %5614 = vmatpush2.msra.mxu0 0.0
    %5615 = vmatprep.subr.mxu0 0.0
    %5616 = vmatpush2.msra.mxu0 0.0
    %5617 = vmatprep.subr.mxu0 0.0
    %5618 = vmatpush2.msra.mxu0 0.0
    %5619 = vmatprep.subr.mxu0 0.0
    %5620 = vmatpush2.msra.mxu0 0.0
    %5621 = vmatprep.subr.mxu0 0.0
    %5622 = vmatpush2.msra.mxu0 0.0
    %5623 = vmatprep.subr.mxu0 0.0
    %5624 = vmatpush2.msra.mxu0 0.0
    %5625 = vmatprep.subr.mxu0 0.0
    %5626 = vmatpush2.msra.mxu0 0.0
    %5627 = vmatprep.subr.mxu0 0.0
    %5628 = vmatpush2.msra.mxu0 0.0
    %5629 = vmatprep.subr.mxu0 0.0
    %5630 = vmatpush2.msra.mxu0 0.0
    %5631 = vmatprep.subr.mxu0 0.0
    %5632 = vmatpush2.msra.mxu0 0.0
    %5633 = vmatprep.subr.mxu0 0.0
    %5634 = vmatpush2.msra.mxu0 0.0
    %5635 = vmatprep.subr.mxu0 0.0
    %5636 = vmatpush2.msra.mxu0 0.0
    %5637 = vmatprep.subr.mxu0 0.0
    %5638 = vmatpush2.msra.mxu0 0.0
    %5639 = vmatprep.mubr.f32.mxu0 0.0
    %5640 = vmatmul.mubr.f32.gmra.mxu0 %v5567
    %v5641 = vpop.f32.mrf.mxu0
    %v5642 = vadd.f32 %v5553, %v5641
    %v5643 = vpop.f32.mrf.mxu0
    %5644 = vmatprep.mubr.f32.mxu0 0.0
    %5645 = vmatmul.mubr.f32.gmra.mxu0 %v5569
    %v5646 = vpop.f32.mrf.mxu0
    %v5647 = vadd.f32 %v5553, %v5646
    %v5648 = vpop.f32.mrf.mxu0
    %5649 = vmatprep.mubr.f32.mxu0 0.0
    %5650 = vmatmul.mubr.f32.gmra.mxu0 %v5571
    %v5651 = vpop.f32.mrf.mxu0
    %v5652 = vadd.f32 %v5553, %v5651
    %v5653 = vpop.f32.mrf.mxu0
    %5654 = vmatprep.mubr.f32.mxu0 0.0
    %5655 = vmatmul.mubr.f32.gmra.mxu0 %v5573
    %v5656 = vpop.f32.mrf.mxu0
    %v5657 = vadd.f32 %v5553, %v5656
    %v5658 = vpop.f32.mrf.mxu0
    %5659 = vdwg.mxu0
    %5660 = vst.msk [vmem:[#allocation19] sm:$0xff] %vm5198, %v5642
    %5661 = vst.msk [vmem:[#allocation19 + $0x8] sm:$0xff] %vm5198, %v5647
    %5662 = vst.msk [vmem:[#allocation19 + $0x10] sm:$0xff] %vm5198, %v5652
    %5663 = vst.msk [vmem:[#allocation19 + $0x18] sm:$0xff] %vm5198, %v5657
    // Predicated region
    $region86: #{tpu_custom_call.1} parent=1 // pred_check
      _
    $region87: #{tpu_custom_call.1} parent=1 // pred_check_branch
      %5665 = sbr.rel (0) target = $region89
    $region88: #{tpu_custom_call.1} parent=1 // pred_region
      %s5667 = ssub.s32 512, 512
      %5668 = vsyncadd [#allocation4], %s5667
      %s5669 = sshll.u32 [#allocation19], 4
      %s5670 = int_to_ptr.vmem [resolvable:$true] %s5669
      %5675 = dma.vmem_to_hbm [thread:$0]  %s5670, 512, %s11, [#allocation4], 128, 128, 8
    $region89: #{tpu_custom_call.1} parent=1 // pred_fallthru
      _
    // Predicated region
    $region90: #{tpu_custom_call.1} parent=1 // pred_check
      _
    $region91: #{tpu_custom_call.1} parent=1 // pred_check_branch
      %5677 = sbr.rel (0) target = $region93
    $region92: #{tpu_custom_call.1} parent=1 // pred_region
      %5678 = dma.done [#allocation4], 512
    $region93: #{tpu_custom_call.1} parent=1 // pred_fallthru
      _
    %5679 = vsyncpa [#allocation3], 1
    %5680 = vsyncpa [#allocation6], 1
    %5681 = vsyncpa [#allocation9], 1
    %5682 = vsyncpa [#allocation12], 1
    %5683 = vsyncpa [#allocation15], 1
    %5684 = vsyncpa [#allocation18], 1
    %5685 = vsyncpa [#allocation4], 1

</llo_original>
